<compile_context>
chip_gen: v6e
topology: v6e:2x2x1
jax: 0.10.0
libtpu: 0.0.40
codegen_flags: <defaults>
</compile_context>

<pallas_src>
import functools

import jax
import jax.numpy as jnp
from jax.experimental import pallas as pl
from jax.experimental.pallas import tpu as pltpu


# ---------------------------------------------------------------------------
# Fused inverted-residual Pallas kernel (one batch element per grid step)
# ---------------------------------------------------------------------------

def _fused_inverted_residual_kernel(
    xph_ref,            # (1, S*S, H2, W2, Cin)  stride-phase-decomposed input
    w1_ref, b1_ref,     # expand:   (Cin, Cexp), (1, Cexp)   [BN1 scale pre-folded]
    w2_ref, b2_ref,     # depthwise: (9, Cexp),  (1, Cexp)   [BN2 scale pre-folded]
    w3_ref, b3_ref,     # project:  (Cexp, Cout), (1, Cout)  [BN3 scale pre-folded]
    o_ref,              # (1, Ho, Wo, Cout)
    exp_ref,            # VMEM scratch (S*S, Hpp, Wpp, Cexp): padded expanded activation
    *, stride, has_expand, res_connect, H, W, H2, W2, Ho, Wo):
  S = stride
  Cexp = exp_ref.shape[-1]
  Cout = o_ref.shape[-1]

  # Zero the padded expanded-activation scratch: the halo (padding=1 of the
  # depthwise conv) must be exactly zero, matching zero-padding of the
  # post-BN1-ReLU6 activation in the reference module.
  exp_ref[...] = jnp.zeros(exp_ref.shape, jnp.float32)

  x_all = xph_ref[0].astype(jnp.float32)        # (S*S, H2, W2, Cin)

  # ---- 1x1 expand + BN1 + ReLU6, all stride phases at once.
  if has_expand:
    Cin = x_all.shape[-1]
    if Cin <= 16:
      # Tiny contraction dim: VPU broadcast-FMA; keep the MXU out of it.
      w1 = w1_ref[...]
      acc = jnp.zeros(x_all.shape[:-1] + (Cexp,), jnp.float32)
      for c in range(Cin):
        acc = acc + x_all[..., c:c + 1] * w1[c]
    else:
      acc = jnp.dot(x_all.reshape(-1, Cin), w1_ref[...],
                    preferred_element_type=jnp.float32
                    ).reshape(x_all.shape[:-1] + (Cexp,))
    h_all = jnp.clip(acc + b1_ref[0], 0.0, 6.0)
  else:
    h_all = x_all                                # expansion == 1: no pw1/bn1/relu1

  # ---- Scatter phases into the padded scratch interior (static offsets only).
  for r in range(S):
    for s in range(S):
      hv = (H - r + S - 1) // S                  # valid rows of this phase
      wv = (W - s + S - 1) // S                  # valid cols of this phase
      # Phase (r, s) of the *unpadded* input lands at padded-row parity (r+1)%S
      # with row offset (r+1)//S inside that phase plane (same for columns).
      pr, dr = (r + 1) % S, (r + 1) // S
      pc, dc = (s + 1) % S, (s + 1) // S
      exp_ref[pr * S + pc, dr:dr + hv, dc:dc + wv, :] = h_all[r * S + s, :hv, :wv, :]

  # ---- 3x3 depthwise (stride folded into the phase decomposition) + BN2 + ReLU6.
  w2 = w2_ref[...]
  acc = jnp.zeros((Ho, Wo, Cexp), jnp.float32)
  for kh in range(3):
    for kw in range(3):
      ph = (kh % S) * S + (kw % S)
      dh, dw = kh // S, kw // S
      acc = acc + exp_ref[ph, dh:dh + Ho, dw:dw + Wo, :] * w2[kh * 3 + kw]
  y2 = jnp.clip(acc + b2_ref[0], 0.0, 6.0)

  # ---- 1x1 project + BN3 (+ residual AFTER BN3 — no activation on this path).
  y3 = jnp.dot(y2.reshape(Ho * Wo, Cexp), w3_ref[...],
               preferred_element_type=jnp.float32)
  y3 = (y3 + b3_ref[0]).reshape(Ho, Wo, Cout)
  if res_connect:
    y3 = y3 + x_all[0]       # stride==1 & Cin==Cout: phase 0 IS x
  o_ref[0] = y3.astype(o_ref.dtype)


# ---------------------------------------------------------------------------
# Wrapper: phase decomposition + BN-scale folding + pallas_call plumbing
# ---------------------------------------------------------------------------

def _to_phases(x, stride):
  """x: (N, H, W, C) -> (N, S*S, ceil(H/S), ceil(W/S), C); phase r*S+s = x[:, r::S, s::S]."""
  N, H, W, C = x.shape
  S = stride
  H2, W2 = -(-H // S), -(-W // S)
  if H2 * S != H or W2 * S != W:
    x = jnp.pad(x, ((0, 0), (0, H2 * S - H), (0, W2 * S - W), (0, 0)))
  xr = x.reshape(N, H2, S, W2, S, C)
  xr = jnp.transpose(xr, (0, 2, 4, 1, 3, 5))
  return xr.reshape(N, S * S, H2, W2, C)


def inverted_residual_block(x, params, *, stride, expansion, res_connect):
  """x: (N, H, W, Cin) NHWC float32 -> (N, Ho, Wo, Cout)."""
  N, H, W, Cin = x.shape
  S = stride
  has_expand = expansion != 1
  Cexp = params["w2"].shape[1]
  Cout = params["w3"].shape[1]
  Ho = (H + 2 - 3) // S + 1
  Wo = (W + 2 - 3) // S + 1
  H2, W2 = -(-H // S), -(-W // S)
  Hpp, Wpp = -(-(H + 2) // S), -(-(W + 2) // S)

  xph = _to_phases(x, S)   # cheap XLA-side layout work on the small pre-expansion input

  # Fold BN scales into the conv weights (exact; done once per call on tiny arrays).
  if has_expand:
    w1 = params["w1"] * params["s1"][None, :]
    b1 = params["b1"]
  else:
    w1 = jnp.zeros((Cin, Cexp), jnp.float32)    # unused (static branch in kernel)
    b1 = jnp.zeros((Cexp,), jnp.float32)
  w2 = params["w2"] * params["s2"][None, :]
  b2 = params["b2"]
  w3 = params["w3"] * params["s3"][None, :]
  b3 = params["b3"]

  kernel = functools.partial(
      _fused_inverted_residual_kernel,
      stride=S, has_expand=has_expand, res_connect=res_connect,
      H=H, W=W, H2=H2, W2=W2, Ho=Ho, Wo=Wo)

  return pl.pallas_call(
      kernel,
      out_shape=jax.ShapeDtypeStruct((N, Ho, Wo, Cout), x.dtype),
      grid=(N,),
      in_specs=[
          pl.BlockSpec((1, S * S, H2, W2, Cin), lambda n: (n, 0, 0, 0, 0)),
          pl.BlockSpec((Cin, Cexp), lambda n: (0, 0)),
          pl.BlockSpec((1, Cexp), lambda n: (0, 0)),
          pl.BlockSpec((9, Cexp), lambda n: (0, 0)),
          pl.BlockSpec((1, Cexp), lambda n: (0, 0)),
          pl.BlockSpec((Cexp, Cout), lambda n: (0, 0)),
          pl.BlockSpec((1, Cout), lambda n: (0, 0)),
      ],
      out_specs=pl.BlockSpec((1, Ho, Wo, Cout), lambda n: (n, 0, 0, 0)),
      scratch_shapes=[pltpu.VMEM((S * S, Hpp, Wpp, Cexp), jnp.float32)],
      compiler_params=pltpu.CompilerParams(
          dimension_semantics=("parallel",),      # batch splits across TensorCores
          vmem_limit_bytes=32 * 1024 * 1024),
  )(xph, w1, b1.reshape(1, -1), w2, b2.reshape(1, -1), w3, b3.reshape(1, -1))


# ---------------------------------------------------------------------------
# Pure-jnp reference block (for correctness check; not a Pallas kernel)
# ---------------------------------------------------------------------------

def _reference_block(x, params, *, stride, expansion, res_connect):
  if expansion != 1:
    h = jnp.einsum("nhwc,cd->nhwd", x, params["w1"])
    h = jnp.clip(h * params["s1"] + params["b1"], 0.0, 6.0)
  else:
    h = x
  N, H, W, _ = x.shape
  C = h.shape[-1]
  Ho = (H + 2 - 3) // stride + 1
  Wo = (W + 2 - 3) // stride + 1
  hp = jnp.pad(h, ((0, 0), (1, 1), (1, 1), (0, 0)))
  acc = jnp.zeros((N, Ho, Wo, C), jnp.float32)
  for kh in range(3):
    for kw in range(3):
      tap = hp[:, kh:kh + (Ho - 1) * stride + 1:stride,
               kw:kw + (Wo - 1) * stride + 1:stride, :]
      acc = acc + tap * params["w2"][kh * 3 + kw]
  y2 = jnp.clip(acc * params["s2"] + params["b2"], 0.0, 6.0)
  y3 = jnp.einsum("nhwc,cd->nhwd", y2, params["w3"]) * params["s3"] + params["b3"]
  if res_connect:
    y3 = y3 + x
  return y3


# ---------------------------------------------------------------------------
# Module logic (InvertedResidualConv / Bottleneck)
# ---------------------------------------------------------------------------

def _fold_bn(gamma, beta, mean, var, eps=1e-5):
  scale = gamma / jnp.sqrt(var + eps)
  bias = beta - mean * scale
  return scale, bias


def make_inverted_residual_params(key, in_c, out_c, expansion):
  exp_c = int(in_c * expansion)
  ks = jax.random.split(key, 16)
  it = iter(range(16))

  def nrm(shape, std=0.1):
    return std * jax.random.normal(ks[next(it)], shape, jnp.float32)

  def bn(c):
    g = 1.0 + nrm((c,))
    b = nrm((c,))
    m = nrm((c,))
    v = 1.0 + 0.1 * jnp.abs(jax.random.normal(ks[next(it)], (c,), jnp.float32))
    return _fold_bn(g, b, m, v)

  p = {}
  if expansion != 1:
    p["w1"] = nrm((in_c, exp_c))          # 1x1 expand conv (Cin, Cexp)
    p["s1"], p["b1"] = bn(exp_c)
  p["w2"] = nrm((9, exp_c))               # 3x3 depthwise taps, flattened
  p["s2"], p["b2"] = bn(exp_c)
  p["w3"] = nrm((exp_c, out_c))           # 1x1 project conv (Cexp, Cout)
  p["s3"], p["b3"] = bn(out_c)
  return p


def make_bottleneck(key, in_c, out_c, stride, expansion, repeat):
  pkeys = jax.random.split(key, repeat)
  blocks = [(make_inverted_residual_params(pkeys[0], in_c, out_c, expansion),
             stride, expansion, (in_c == out_c and stride == 1))]
  for r in range(1, repeat):
    blocks.append((make_inverted_residual_params(pkeys[r], out_c, out_c, expansion),
                   1, expansion, True))

  def forward(x_nchw):
    x = jnp.transpose(x_nchw, (0, 2, 3, 1))   # NCHW -> NHWC (channels on lanes)
    for params, s, t, rc in blocks:
      x = inverted_residual_block(x, params, stride=s, expansion=t, res_connect=rc)
    return jnp.transpose(x, (0, 3, 1, 2))     # NHWC -> NCHW

  def forward_ref(x_nchw):
    x = jnp.transpose(x_nchw, (0, 2, 3, 1))
    for params, s, t, rc in blocks:
      x = _reference_block(x, params, stride=s, expansion=t, res_connect=rc)
    return jnp.transpose(x, (0, 3, 1, 2))

  return forward, forward_ref


# ---------------------------------------------------------------------------
# Main
# ---------------------------------------------------------------------------

if __name__ == "__main__":
  key = jax.random.PRNGKey(0)
  k_x, k_p = jax.random.split(key)

  # Bottleneck(in_channels=4, out_channels=8, stride=2, expansion_factor=6, repeat=2)
  in_c, out_c, stride, expansion, repeat = 4, 8, 2, 6, 2
  N, H, W = 2, 16, 16

  x = jax.random.normal(k_x, (N, in_c, H, W), jnp.float32)   # NCHW, like PyTorch
  bottleneck, bottleneck_ref = make_bottleneck(k_p, in_c, out_c, stride, expansion, repeat)

  out = jax.jit(bottleneck)(x)
  jax.block_until_ready(out)

  expected_hw = (H + 2 - 3) // stride + 1
  assert out.shape == (N, out_c, expected_hw, expected_hw), out.shape
  assert bool(jnp.all(jnp.isfinite(out)))

  ref = bottleneck_ref(x)
  assert bool(jnp.allclose(out, ref, rtol=1e-3, atol=1e-4)), \
      float(jnp.max(jnp.abs(out - ref)))

  print("KERNEL_OK")
</pallas_src>

<mosaic_0001>
module attributes {stable_mosaic.version = 11 : i64} {
  func.func @_fused_inverted_residual_kernel(%arg0: i32, %arg1: memref<1x4x8x8x4xf32, #tpu.memory_space<vmem>>, %arg2: memref<4x24xf32, #tpu.memory_space<vmem>>, %arg3: memref<1x24xf32, #tpu.memory_space<vmem>>, %arg4: memref<9x24xf32, #tpu.memory_space<vmem>>, %arg5: memref<1x24xf32, #tpu.memory_space<vmem>>, %arg6: memref<24x8xf32, #tpu.memory_space<vmem>>, %arg7: memref<1x8xf32, #tpu.memory_space<vmem>>, %arg8: memref<1x8x8x8xf32, #tpu.memory_space<vmem>>, %arg9: memref<4x9x9x24xf32, #tpu.memory_space<vmem>>) attributes {dimension_semantics = [#tpu.dimension_semantics<parallel>], iteration_bounds = array<i64: 2>, scalar_prefetch = 0 : i64, scratch_operands = 1 : i64, tpu.core_type = #tpu.core_type<tc>, window_params = [{transform_indices = @transform_0, window_bounds = array<i64: 1, 4, 8, 8, 4>}, {pipeline_mode = #tpu.pipeline_mode<synchronous>, transform_indices = @transform_1, window_bounds = array<i64: 4, 24>}, {pipeline_mode = #tpu.pipeline_mode<synchronous>, transform_indices = @transform_2, window_bounds = array<i64: 1, 24>}, {pipeline_mode = #tpu.pipeline_mode<synchronous>, transform_indices = @transform_3, window_bounds = array<i64: 9, 24>}, {pipeline_mode = #tpu.pipeline_mode<synchronous>, transform_indices = @transform_4, window_bounds = array<i64: 1, 24>}, {pipeline_mode = #tpu.pipeline_mode<synchronous>, transform_indices = @transform_5, window_bounds = array<i64: 24, 8>}, {pipeline_mode = #tpu.pipeline_mode<synchronous>, transform_indices = @transform_6, window_bounds = array<i64: 1, 8>}, {transform_indices = @transform_7, window_bounds = array<i64: 1, 8, 8, 8>}]} {
    %cst = arith.constant 0.000000e+00 : f32
    %0 = vector.broadcast %cst : f32 to vector<4x9x9x24xf32>
    %c0 = arith.constant 0 : index
    %c0_0 = arith.constant 0 : index
    %c0_1 = arith.constant 0 : index
    %c0_2 = arith.constant 0 : index
    %1 = vector.load %arg9[%c0, %c0_0, %c0_1, %c0_2] : memref<4x9x9x24xf32, #tpu.memory_space<vmem>>, vector<4x9x9x24xf32>
    tpu.vector_store %arg9[%c0, %c0_0, %c0_1, %c0_2], %0 {strides = array<i32>} : memref<4x9x9x24xf32, #tpu.memory_space<vmem>>, vector<4x9x9x24xf32>,
    %c0_3 = arith.constant 0 : index
    %c0_4 = arith.constant 0 : index
    %c0_5 = arith.constant 0 : index
    %c0_6 = arith.constant 0 : index
    %c0_7 = arith.constant 0 : index
    %2 = vector.load %arg1[%c0_3, %c0_4, %c0_5, %c0_6, %c0_7] : memref<1x4x8x8x4xf32, #tpu.memory_space<vmem>>, vector<1x4x8x8x4xf32>
    %3 = vector.shape_cast %2 : vector<1x4x8x8x4xf32> to vector<4x8x8x4xf32>
    %c0_8 = arith.constant 0 : index
    %c0_9 = arith.constant 0 : index
    %4 = vector.load %arg2[%c0_8, %c0_9] : memref<4x24xf32, #tpu.memory_space<vmem>>, vector<4x24xf32>
    %cst_10 = arith.constant 0.000000e+00 : f32
    %5 = vector.broadcast %cst_10 : f32 to vector<4x8x8x24xf32>
    %6 = vector.extract_strided_slice %3 {offsets = [0, 0, 0, 0], sizes = [4, 8, 8, 1], strides = [1, 1, 1, 1]} : vector<4x8x8x4xf32> to vector<4x8x8x1xf32>
    %7 = vector.extract_strided_slice %4 {offsets = [0, 0], sizes = [1, 24], strides = [1, 1]} : vector<4x24xf32> to vector<1x24xf32>
    %8 = vector.shape_cast %7 : vector<1x24xf32> to vector<24xf32>
    %9 = vector.shape_cast %8 : vector<24xf32> to vector<1x1x1x24xf32>
    %10 = vector.broadcast %6 : vector<4x8x8x1xf32> to vector<4x8x8x24xf32>
    %11 = vector.broadcast %9 : vector<1x1x1x24xf32> to vector<4x8x8x24xf32>
    %12 = arith.mulf %10, %11 : vector<4x8x8x24xf32>
    %13 = arith.addf %5, %12 : vector<4x8x8x24xf32>
    %14 = vector.extract_strided_slice %3 {offsets = [0, 0, 0, 1], sizes = [4, 8, 8, 1], strides = [1, 1, 1, 1]} : vector<4x8x8x4xf32> to vector<4x8x8x1xf32>
    %15 = vector.extract_strided_slice %4 {offsets = [1, 0], sizes = [1, 24], strides = [1, 1]} : vector<4x24xf32> to vector<1x24xf32>
    %16 = vector.shape_cast %15 : vector<1x24xf32> to vector<24xf32>
    %17 = vector.shape_cast %16 : vector<24xf32> to vector<1x1x1x24xf32>
    %18 = vector.broadcast %14 : vector<4x8x8x1xf32> to vector<4x8x8x24xf32>
    %19 = vector.broadcast %17 : vector<1x1x1x24xf32> to vector<4x8x8x24xf32>
    %20 = arith.mulf %18, %19 : vector<4x8x8x24xf32>
    %21 = arith.addf %13, %20 : vector<4x8x8x24xf32>
    %22 = vector.extract_strided_slice %3 {offsets = [0, 0, 0, 2], sizes = [4, 8, 8, 1], strides = [1, 1, 1, 1]} : vector<4x8x8x4xf32> to vector<4x8x8x1xf32>
    %23 = vector.extract_strided_slice %4 {offsets = [2, 0], sizes = [1, 24], strides = [1, 1]} : vector<4x24xf32> to vector<1x24xf32>
    %24 = vector.shape_cast %23 : vector<1x24xf32> to vector<24xf32>
    %25 = vector.shape_cast %24 : vector<24xf32> to vector<1x1x1x24xf32>
    %26 = vector.broadcast %22 : vector<4x8x8x1xf32> to vector<4x8x8x24xf32>
    %27 = vector.broadcast %25 : vector<1x1x1x24xf32> to vector<4x8x8x24xf32>
    %28 = arith.mulf %26, %27 : vector<4x8x8x24xf32>
    %29 = arith.addf %21, %28 : vector<4x8x8x24xf32>
    %30 = vector.extract_strided_slice %3 {offsets = [0, 0, 0, 3], sizes = [4, 8, 8, 1], strides = [1, 1, 1, 1]} : vector<4x8x8x4xf32> to vector<4x8x8x1xf32>
    %31 = vector.extract_strided_slice %4 {offsets = [3, 0], sizes = [1, 24], strides = [1, 1]} : vector<4x24xf32> to vector<1x24xf32>
    %32 = vector.shape_cast %31 : vector<1x24xf32> to vector<24xf32>
    %33 = vector.shape_cast %32 : vector<24xf32> to vector<1x1x1x24xf32>
    %34 = vector.broadcast %30 : vector<4x8x8x1xf32> to vector<4x8x8x24xf32>
    %35 = vector.broadcast %33 : vector<1x1x1x24xf32> to vector<4x8x8x24xf32>
    %36 = arith.mulf %34, %35 : vector<4x8x8x24xf32>
    %37 = arith.addf %29, %36 : vector<4x8x8x24xf32>
    %c0_11 = arith.constant 0 : index
    %c0_12 = arith.constant 0 : index
    %38 = vector.load %arg3[%c0_11, %c0_12] : memref<1x24xf32, #tpu.memory_space<vmem>>, vector<1x24xf32>
    %39 = vector.shape_cast %38 : vector<1x24xf32> to vector<24xf32>
    %40 = vector.shape_cast %39 : vector<24xf32> to vector<1x1x1x24xf32>
    %41 = vector.broadcast %40 : vector<1x1x1x24xf32> to vector<4x8x8x24xf32>
    %42 = arith.addf %37, %41 : vector<4x8x8x24xf32>
    %cst_13 = arith.constant 0.000000e+00 : f32
    %cst_14 = arith.constant 6.000000e+00 : f32
    %43 = vector.broadcast %cst_13 : f32 to vector<4x8x8x24xf32>
    %44 = arith.maximumf %43, %42 : vector<4x8x8x24xf32>
    %45 = vector.broadcast %cst_14 : f32 to vector<4x8x8x24xf32>
    %46 = arith.minimumf %45, %44 : vector<4x8x8x24xf32>
    %47 = vector.extract_strided_slice %46 {offsets = [0, 0, 0, 0], sizes = [1, 8, 8, 24], strides = [1, 1, 1, 1]} : vector<4x8x8x24xf32> to vector<1x8x8x24xf32>
    %48 = vector.shape_cast %47 : vector<1x8x8x24xf32> to vector<8x8x24xf32>
    %c3 = arith.constant 3 : index
    %c0_15 = arith.constant 0 : index
    %c0_16 = arith.constant 0 : index
    %c0_17 = arith.constant 0 : index
    %49 = vector.load %arg9[%c3, %c0_15, %c0_16, %c0_17] : memref<4x9x9x24xf32, #tpu.memory_space<vmem>>, vector<1x8x8x24xf32>
    %50 = vector.shape_cast %49 : vector<1x8x8x24xf32> to vector<8x8x24xf32>
    %51 = vector.shape_cast %48 : vector<8x8x24xf32> to vector<1x8x8x24xf32>
    tpu.vector_store %arg9[%c3, %c0_15, %c0_16, %c0_17], %51 {strides = array<i32>} : memref<4x9x9x24xf32, #tpu.memory_space<vmem>>, vector<1x8x8x24xf32>,
    %52 = vector.extract_strided_slice %46 {offsets = [1, 0, 0, 0], sizes = [1, 8, 8, 24], strides = [1, 1, 1, 1]} : vector<4x8x8x24xf32> to vector<1x8x8x24xf32>
    %53 = vector.shape_cast %52 : vector<1x8x8x24xf32> to vector<8x8x24xf32>
    %c2 = arith.constant 2 : index
    %c0_18 = arith.constant 0 : index
    %c1 = arith.constant 1 : index
    %c0_19 = arith.constant 0 : index
    %54 = vector.load %arg9[%c2, %c0_18, %c1, %c0_19] : memref<4x9x9x24xf32, #tpu.memory_space<vmem>>, vector<1x8x8x24xf32>
    %55 = vector.shape_cast %54 : vector<1x8x8x24xf32> to vector<8x8x24xf32>
    %56 = vector.shape_cast %53 : vector<8x8x24xf32> to vector<1x8x8x24xf32>
    tpu.vector_store %arg9[%c2, %c0_18, %c1, %c0_19], %56 {strides = array<i32>} : memref<4x9x9x24xf32, #tpu.memory_space<vmem>>, vector<1x8x8x24xf32>,
    %57 = vector.extract_strided_slice %46 {offsets = [2, 0, 0, 0], sizes = [1, 8, 8, 24], strides = [1, 1, 1, 1]} : vector<4x8x8x24xf32> to vector<1x8x8x24xf32>
    %58 = vector.shape_cast %57 : vector<1x8x8x24xf32> to vector<8x8x24xf32>
    %c1_20 = arith.constant 1 : index
    %c1_21 = arith.constant 1 : index
    %c0_22 = arith.constant 0 : index
    %c0_23 = arith.constant 0 : index
    %59 = vector.load %arg9[%c1_20, %c1_21, %c0_22, %c0_23] : memref<4x9x9x24xf32, #tpu.memory_space<vmem>>, vector<1x8x8x24xf32>
    %60 = vector.shape_cast %59 : vector<1x8x8x24xf32> to vector<8x8x24xf32>
    %61 = vector.shape_cast %58 : vector<8x8x24xf32> to vector<1x8x8x24xf32>
    tpu.vector_store %arg9[%c1_20, %c1_21, %c0_22, %c0_23], %61 {strides = array<i32>} : memref<4x9x9x24xf32, #tpu.memory_space<vmem>>, vector<1x8x8x24xf32>,
    %62 = vector.extract_strided_slice %46 {offsets = [3, 0, 0, 0], sizes = [1, 8, 8, 24], strides = [1, 1, 1, 1]} : vector<4x8x8x24xf32> to vector<1x8x8x24xf32>
    %63 = vector.shape_cast %62 : vector<1x8x8x24xf32> to vector<8x8x24xf32>
    %c0_24 = arith.constant 0 : index
    %c1_25 = arith.constant 1 : index
    %c1_26 = arith.constant 1 : index
    %c0_27 = arith.constant 0 : index
    %64 = vector.load %arg9[%c0_24, %c1_25, %c1_26, %c0_27] : memref<4x9x9x24xf32, #tpu.memory_space<vmem>>, vector<1x8x8x24xf32>
    %65 = vector.shape_cast %64 : vector<1x8x8x24xf32> to vector<8x8x24xf32>
    %66 = vector.shape_cast %63 : vector<8x8x24xf32> to vector<1x8x8x24xf32>
    tpu.vector_store %arg9[%c0_24, %c1_25, %c1_26, %c0_27], %66 {strides = array<i32>} : memref<4x9x9x24xf32, #tpu.memory_space<vmem>>, vector<1x8x8x24xf32>,
    %c0_28 = arith.constant 0 : index
    %c0_29 = arith.constant 0 : index
    %67 = vector.load %arg4[%c0_28, %c0_29] : memref<9x24xf32, #tpu.memory_space<vmem>>, vector<9x24xf32>
    %cst_30 = arith.constant 0.000000e+00 : f32
    %68 = vector.broadcast %cst_30 : f32 to vector<8x8x24xf32>
    %c0_31 = arith.constant 0 : index
    %c0_32 = arith.constant 0 : index
    %c0_33 = arith.constant 0 : index
    %c0_34 = arith.constant 0 : index
    %69 = vector.load %arg9[%c0_31, %c0_32, %c0_33, %c0_34] : memref<4x9x9x24xf32, #tpu.memory_space<vmem>>, vector<1x8x8x24xf32>
    %70 = vector.shape_cast %69 : vector<1x8x8x24xf32> to vector<8x8x24xf32>
    %71 = vector.extract_strided_slice %67 {offsets = [0, 0], sizes = [1, 24], strides = [1, 1]} : vector<9x24xf32> to vector<1x24xf32>
    %72 = vector.shape_cast %71 : vector<1x24xf32> to vector<24xf32>
    %73 = vector.shape_cast %72 : vector<24xf32> to vector<1x1x24xf32>
    %74 = vector.broadcast %73 : vector<1x1x24xf32> to vector<8x8x24xf32>
    %75 = arith.mulf %70, %74 : vector<8x8x24xf32>
    %76 = arith.addf %68, %75 : vector<8x8x24xf32>
    %c1_35 = arith.constant 1 : index
    %c0_36 = arith.constant 0 : index
    %c0_37 = arith.constant 0 : index
    %c0_38 = arith.constant 0 : index
    %77 = vector.load %arg9[%c1_35, %c0_36, %c0_37, %c0_38] : memref<4x9x9x24xf32, #tpu.memory_space<vmem>>, vector<1x8x8x24xf32>
    %78 = vector.shape_cast %77 : vector<1x8x8x24xf32> to vector<8x8x24xf32>
    %79 = vector.extract_strided_slice %67 {offsets = [1, 0], sizes = [1, 24], strides = [1, 1]} : vector<9x24xf32> to vector<1x24xf32>
    %80 = vector.shape_cast %79 : vector<1x24xf32> to vector<24xf32>
    %81 = vector.shape_cast %80 : vector<24xf32> to vector<1x1x24xf32>
    %82 = vector.broadcast %81 : vector<1x1x24xf32> to vector<8x8x24xf32>
    %83 = arith.mulf %78, %82 : vector<8x8x24xf32>
    %84 = arith.addf %76, %83 : vector<8x8x24xf32>
    %c0_39 = arith.constant 0 : index
    %c0_40 = arith.constant 0 : index
    %c1_41 = arith.constant 1 : index
    %c0_42 = arith.constant 0 : index
    %85 = vector.load %arg9[%c0_39, %c0_40, %c1_41, %c0_42] : memref<4x9x9x24xf32, #tpu.memory_space<vmem>>, vector<1x8x8x24xf32>
    %86 = vector.shape_cast %85 : vector<1x8x8x24xf32> to vector<8x8x24xf32>
    %87 = vector.extract_strided_slice %67 {offsets = [2, 0], sizes = [1, 24], strides = [1, 1]} : vector<9x24xf32> to vector<1x24xf32>
    %88 = vector.shape_cast %87 : vector<1x24xf32> to vector<24xf32>
    %89 = vector.shape_cast %88 : vector<24xf32> to vector<1x1x24xf32>
    %90 = vector.broadcast %89 : vector<1x1x24xf32> to vector<8x8x24xf32>
    %91 = arith.mulf %86, %90 : vector<8x8x24xf32>
    %92 = arith.addf %84, %91 : vector<8x8x24xf32>
    %c2_43 = arith.constant 2 : index
    %c0_44 = arith.constant 0 : index
    %c0_45 = arith.constant 0 : index
    %c0_46 = arith.constant 0 : index
    %93 = vector.load %arg9[%c2_43, %c0_44, %c0_45, %c0_46] : memref<4x9x9x24xf32, #tpu.memory_space<vmem>>, vector<1x8x8x24xf32>
    %94 = vector.shape_cast %93 : vector<1x8x8x24xf32> to vector<8x8x24xf32>
    %95 = vector.extract_strided_slice %67 {offsets = [3, 0], sizes = [1, 24], strides = [1, 1]} : vector<9x24xf32> to vector<1x24xf32>
    %96 = vector.shape_cast %95 : vector<1x24xf32> to vector<24xf32>
    %97 = vector.shape_cast %96 : vector<24xf32> to vector<1x1x24xf32>
    %98 = vector.broadcast %97 : vector<1x1x24xf32> to vector<8x8x24xf32>
    %99 = arith.mulf %94, %98 : vector<8x8x24xf32>
    %100 = arith.addf %92, %99 : vector<8x8x24xf32>
    %c3_47 = arith.constant 3 : index
    %c0_48 = arith.constant 0 : index
    %c0_49 = arith.constant 0 : index
    %c0_50 = arith.constant 0 : index
    %101 = vector.load %arg9[%c3_47, %c0_48, %c0_49, %c0_50] : memref<4x9x9x24xf32, #tpu.memory_space<vmem>>, vector<1x8x8x24xf32>
    %102 = vector.shape_cast %101 : vector<1x8x8x24xf32> to vector<8x8x24xf32>
    %103 = vector.extract_strided_slice %67 {offsets = [4, 0], sizes = [1, 24], strides = [1, 1]} : vector<9x24xf32> to vector<1x24xf32>
    %104 = vector.shape_cast %103 : vector<1x24xf32> to vector<24xf32>
    %105 = vector.shape_cast %104 : vector<24xf32> to vector<1x1x24xf32>
    %106 = vector.broadcast %105 : vector<1x1x24xf32> to vector<8x8x24xf32>
    %107 = arith.mulf %102, %106 : vector<8x8x24xf32>
    %108 = arith.addf %100, %107 : vector<8x8x24xf32>
    %c2_51 = arith.constant 2 : index
    %c0_52 = arith.constant 0 : index
    %c1_53 = arith.constant 1 : index
    %c0_54 = arith.constant 0 : index
    %109 = vector.load %arg9[%c2_51, %c0_52, %c1_53, %c0_54] : memref<4x9x9x24xf32, #tpu.memory_space<vmem>>, vector<1x8x8x24xf32>
    %110 = vector.shape_cast %109 : vector<1x8x8x24xf32> to vector<8x8x24xf32>
    %111 = vector.extract_strided_slice %67 {offsets = [5, 0], sizes = [1, 24], strides = [1, 1]} : vector<9x24xf32> to vector<1x24xf32>
    %112 = vector.shape_cast %111 : vector<1x24xf32> to vector<24xf32>
    %113 = vector.shape_cast %112 : vector<24xf32> to vector<1x1x24xf32>
    %114 = vector.broadcast %113 : vector<1x1x24xf32> to vector<8x8x24xf32>
    %115 = arith.mulf %110, %114 : vector<8x8x24xf32>
    %116 = arith.addf %108, %115 : vector<8x8x24xf32>
    %c0_55 = arith.constant 0 : index
    %c1_56 = arith.constant 1 : index
    %c0_57 = arith.constant 0 : index
    %c0_58 = arith.constant 0 : index
    %117 = vector.load %arg9[%c0_55, %c1_56, %c0_57, %c0_58] : memref<4x9x9x24xf32, #tpu.memory_space<vmem>>, vector<1x8x8x24xf32>
    %118 = vector.shape_cast %117 : vector<1x8x8x24xf32> to vector<8x8x24xf32>
    %119 = vector.extract_strided_slice %67 {offsets = [6, 0], sizes = [1, 24], strides = [1, 1]} : vector<9x24xf32> to vector<1x24xf32>
    %120 = vector.shape_cast %119 : vector<1x24xf32> to vector<24xf32>
    %121 = vector.shape_cast %120 : vector<24xf32> to vector<1x1x24xf32>
    %122 = vector.broadcast %121 : vector<1x1x24xf32> to vector<8x8x24xf32>
    %123 = arith.mulf %118, %122 : vector<8x8x24xf32>
    %124 = arith.addf %116, %123 : vector<8x8x24xf32>
    %c1_59 = arith.constant 1 : index
    %c1_60 = arith.constant 1 : index
    %c0_61 = arith.constant 0 : index
    %c0_62 = arith.constant 0 : index
    %125 = vector.load %arg9[%c1_59, %c1_60, %c0_61, %c0_62] : memref<4x9x9x24xf32, #tpu.memory_space<vmem>>, vector<1x8x8x24xf32>
    %126 = vector.shape_cast %125 : vector<1x8x8x24xf32> to vector<8x8x24xf32>
    %127 = vector.extract_strided_slice %67 {offsets = [7, 0], sizes = [1, 24], strides = [1, 1]} : vector<9x24xf32> to vector<1x24xf32>
    %128 = vector.shape_cast %127 : vector<1x24xf32> to vector<24xf32>
    %129 = vector.shape_cast %128 : vector<24xf32> to vector<1x1x24xf32>
    %130 = vector.broadcast %129 : vector<1x1x24xf32> to vector<8x8x24xf32>
    %131 = arith.mulf %126, %130 : vector<8x8x24xf32>
    %132 = arith.addf %124, %131 : vector<8x8x24xf32>
    %c0_63 = arith.constant 0 : index
    %c1_64 = arith.constant 1 : index
    %c1_65 = arith.constant 1 : index
    %c0_66 = arith.constant 0 : index
    %133 = vector.load %arg9[%c0_63, %c1_64, %c1_65, %c0_66] : memref<4x9x9x24xf32, #tpu.memory_space<vmem>>, vector<1x8x8x24xf32>
    %134 = vector.shape_cast %133 : vector<1x8x8x24xf32> to vector<8x8x24xf32>
    %135 = vector.extract_strided_slice %67 {offsets = [8, 0], sizes = [1, 24], strides = [1, 1]} : vector<9x24xf32> to vector<1x24xf32>
    %136 = vector.shape_cast %135 : vector<1x24xf32> to vector<24xf32>
    %137 = vector.shape_cast %136 : vector<24xf32> to vector<1x1x24xf32>
    %138 = vector.broadcast %137 : vector<1x1x24xf32> to vector<8x8x24xf32>
    %139 = arith.mulf %134, %138 : vector<8x8x24xf32>
    %140 = arith.addf %132, %139 : vector<8x8x24xf32>
    %c0_67 = arith.constant 0 : index
    %c0_68 = arith.constant 0 : index
    %141 = vector.load %arg5[%c0_67, %c0_68] : memref<1x24xf32, #tpu.memory_space<vmem>>, vector<1x24xf32>
    %142 = vector.shape_cast %141 : vector<1x24xf32> to vector<24xf32>
    %143 = vector.shape_cast %142 : vector<24xf32> to vector<1x1x24xf32>
    %144 = vector.broadcast %143 : vector<1x1x24xf32> to vector<8x8x24xf32>
    %145 = arith.addf %140, %144 : vector<8x8x24xf32>
    %cst_69 = arith.constant 0.000000e+00 : f32
    %cst_70 = arith.constant 6.000000e+00 : f32
    %146 = vector.broadcast %cst_69 : f32 to vector<8x8x24xf32>
    %147 = arith.maximumf %146, %145 : vector<8x8x24xf32>
    %148 = vector.broadcast %cst_70 : f32 to vector<8x8x24xf32>
    %149 = arith.minimumf %148, %147 : vector<8x8x24xf32>
    %150 = vector.shape_cast %149 : vector<8x8x24xf32> to vector<64x24xf32>
    %c0_71 = arith.constant 0 : index
    %c0_72 = arith.constant 0 : index
    %151 = vector.load %arg6[%c0_71, %c0_72] : memref<24x8xf32, #tpu.memory_space<vmem>>, vector<24x8xf32>
    %cst_73 = arith.constant dense<0.000000e+00> : vector<64x8xf32>
    %152 = tpu.matmul %150, %151, %cst_73 {dimension_numbers = #tpu.dot_dimension_numbers<[1], [0], [0], [1], [0, 0, 1, 1], [], []>} : vector<64x24xf32>, vector<24x8xf32>, vector<64x8xf32> -> vector<64x8xf32>
    %c0_74 = arith.constant 0 : index
    %c0_75 = arith.constant 0 : index
    %153 = vector.load %arg7[%c0_74, %c0_75] : memref<1x8xf32, #tpu.memory_space<vmem>>, vector<1x8xf32>
    %154 = vector.shape_cast %153 : vector<1x8xf32> to vector<8xf32>
    %155 = vector.shape_cast %154 : vector<8xf32> to vector<1x8xf32>
    %156 = vector.broadcast %155 : vector<1x8xf32> to vector<64x8xf32>
    %157 = arith.addf %152, %156 : vector<64x8xf32>
    %158 = vector.shape_cast %157 : vector<64x8xf32> to vector<8x8x8xf32>
    %c0_76 = arith.constant 0 : index
    %c0_77 = arith.constant 0 : index
    %c0_78 = arith.constant 0 : index
    %c0_79 = arith.constant 0 : index
    %159 = vector.load %arg8[%c0_76, %c0_77, %c0_78, %c0_79] : memref<1x8x8x8xf32, #tpu.memory_space<vmem>>, vector<1x8x8x8xf32>
    %160 = vector.shape_cast %159 : vector<1x8x8x8xf32> to vector<8x8x8xf32>
    %161 = vector.shape_cast %158 : vector<8x8x8xf32> to vector<1x8x8x8xf32>
    tpu.vector_store %arg8[%c0_76, %c0_77, %c0_78, %c0_79], %161 {strides = array<i32>} : memref<1x8x8x8xf32, #tpu.memory_space<vmem>>, vector<1x8x8x8xf32>,
    return
  }
  func.func @transform_0(%arg0: i32) -> (i32, i32, i32, i32, i32) {
    %c0_i32 = arith.constant 0 : i32
    %c0_i32_0 = arith.constant 0 : i32
    %c0_i32_1 = arith.constant 0 : i32
    %c0_i32_2 = arith.constant 0 : i32
    %c0_i32_3 = arith.constant 0 : i32
    return %arg0, %c0_i32, %c0_i32_0, %c0_i32_1, %c0_i32_2 : i32, i32, i32, i32, i32
  }
  func.func @transform_1(%arg0: i32) -> (i32, i32) {
    %c0_i32 = arith.constant 0 : i32
    %c0_i32_0 = arith.constant 0 : i32
    %c0_i32_1 = arith.constant 0 : i32
    return %c0_i32, %c0_i32_0 : i32, i32
  }
  func.func @transform_2(%arg0: i32) -> (i32, i32) {
    %c0_i32 = arith.constant 0 : i32
    %c0_i32_0 = arith.constant 0 : i32
    %c0_i32_1 = arith.constant 0 : i32
    return %c0_i32, %c0_i32_0 : i32, i32
  }
  func.func @transform_3(%arg0: i32) -> (i32, i32) {
    %c0_i32 = arith.constant 0 : i32
    %c0_i32_0 = arith.constant 0 : i32
    %c0_i32_1 = arith.constant 0 : i32
    return %c0_i32, %c0_i32_0 : i32, i32
  }
  func.func @transform_4(%arg0: i32) -> (i32, i32) {
    %c0_i32 = arith.constant 0 : i32
    %c0_i32_0 = arith.constant 0 : i32
    %c0_i32_1 = arith.constant 0 : i32
    return %c0_i32, %c0_i32_0 : i32, i32
  }
  func.func @transform_5(%arg0: i32) -> (i32, i32) {
    %c0_i32 = arith.constant 0 : i32
    %c0_i32_0 = arith.constant 0 : i32
    %c0_i32_1 = arith.constant 0 : i32
    return %c0_i32, %c0_i32_0 : i32, i32
  }
  func.func @transform_6(%arg0: i32) -> (i32, i32) {
    %c0_i32 = arith.constant 0 : i32
    %c0_i32_0 = arith.constant 0 : i32
    %c0_i32_1 = arith.constant 0 : i32
    return %c0_i32, %c0_i32_0 : i32, i32
  }
  func.func @transform_7(%arg0: i32) -> (i32, i32, i32, i32) {
    %c0_i32 = arith.constant 0 : i32
    %c0_i32_0 = arith.constant 0 : i32
    %c0_i32_1 = arith.constant 0 : i32
    %c0_i32_2 = arith.constant 0 : i32
    return %arg0, %c0_i32, %c0_i32_0, %c0_i32_1 : i32, i32, i32, i32
  }
}

module attributes {stable_mosaic.version = 11 : i64} {
  func.func @_fused_inverted_residual_kernel(%arg0: i32, %arg1: memref<1x1x8x8x8xf32, #tpu.memory_space<vmem>>, %arg2: memref<8x48xf32, #tpu.memory_space<vmem>>, %arg3: memref<1x48xf32, #tpu.memory_space<vmem>>, %arg4: memref<9x48xf32, #tpu.memory_space<vmem>>, %arg5: memref<1x48xf32, #tpu.memory_space<vmem>>, %arg6: memref<48x8xf32, #tpu.memory_space<vmem>>, %arg7: memref<1x8xf32, #tpu.memory_space<vmem>>, %arg8: memref<1x8x8x8xf32, #tpu.memory_space<vmem>>, %arg9: memref<1x10x10x48xf32, #tpu.memory_space<vmem>>) attributes {dimension_semantics = [#tpu.dimension_semantics<parallel>], iteration_bounds = array<i64: 2>, scalar_prefetch = 0 : i64, scratch_operands = 1 : i64, tpu.core_type = #tpu.core_type<tc>, window_params = [{transform_indices = @transform_0, window_bounds = array<i64: 1, 1, 8, 8, 8>}, {pipeline_mode = #tpu.pipeline_mode<synchronous>, transform_indices = @transform_1, window_bounds = array<i64: 8, 48>}, {pipeline_mode = #tpu.pipeline_mode<synchronous>, transform_indices = @transform_2, window_bounds = array<i64: 1, 48>}, {pipeline_mode = #tpu.pipeline_mode<synchronous>, transform_indices = @transform_3, window_bounds = array<i64: 9, 48>}, {pipeline_mode = #tpu.pipeline_mode<synchronous>, transform_indices = @transform_4, window_bounds = array<i64: 1, 48>}, {pipeline_mode = #tpu.pipeline_mode<synchronous>, transform_indices = @transform_5, window_bounds = array<i64: 48, 8>}, {pipeline_mode = #tpu.pipeline_mode<synchronous>, transform_indices = @transform_6, window_bounds = array<i64: 1, 8>}, {transform_indices = @transform_7, window_bounds = array<i64: 1, 8, 8, 8>}]} {
    %cst = arith.constant 0.000000e+00 : f32
    %0 = vector.broadcast %cst : f32 to vector<1x10x10x48xf32>
    %c0 = arith.constant 0 : index
    %c0_0 = arith.constant 0 : index
    %c0_1 = arith.constant 0 : index
    %c0_2 = arith.constant 0 : index
    %1 = vector.load %arg9[%c0, %c0_0, %c0_1, %c0_2] : memref<1x10x10x48xf32, #tpu.memory_space<vmem>>, vector<1x10x10x48xf32>
    tpu.vector_store %arg9[%c0, %c0_0, %c0_1, %c0_2], %0 {strides = array<i32>} : memref<1x10x10x48xf32, #tpu.memory_space<vmem>>, vector<1x10x10x48xf32>,
    %c0_3 = arith.constant 0 : index
    %c0_4 = arith.constant 0 : index
    %c0_5 = arith.constant 0 : index
    %c0_6 = arith.constant 0 : index
    %c0_7 = arith.constant 0 : index
    %2 = vector.load %arg1[%c0_3, %c0_4, %c0_5, %c0_6, %c0_7] : memref<1x1x8x8x8xf32, #tpu.memory_space<vmem>>, vector<1x1x8x8x8xf32>
    %3 = vector.shape_cast %2 : vector<1x1x8x8x8xf32> to vector<1x8x8x8xf32>
    %c0_8 = arith.constant 0 : index
    %c0_9 = arith.constant 0 : index
    %4 = vector.load %arg2[%c0_8, %c0_9] : memref<8x48xf32, #tpu.memory_space<vmem>>, vector<8x48xf32>
    %cst_10 = arith.constant 0.000000e+00 : f32
    %5 = vector.broadcast %cst_10 : f32 to vector<1x8x8x48xf32>
    %6 = vector.extract_strided_slice %3 {offsets = [0, 0, 0, 0], sizes = [1, 8, 8, 1], strides = [1, 1, 1, 1]} : vector<1x8x8x8xf32> to vector<1x8x8x1xf32>
    %7 = vector.extract_strided_slice %4 {offsets = [0, 0], sizes = [1, 48], strides = [1, 1]} : vector<8x48xf32> to vector<1x48xf32>
    %8 = vector.shape_cast %7 : vector<1x48xf32> to vector<48xf32>
    %9 = vector.shape_cast %8 : vector<48xf32> to vector<1x1x1x48xf32>
    %10 = vector.broadcast %6 : vector<1x8x8x1xf32> to vector<1x8x8x48xf32>
    %11 = vector.broadcast %9 : vector<1x1x1x48xf32> to vector<1x8x8x48xf32>
    %12 = arith.mulf %10, %11 : vector<1x8x8x48xf32>
    %13 = arith.addf %5, %12 : vector<1x8x8x48xf32>
    %14 = vector.extract_strided_slice %3 {offsets = [0, 0, 0, 1], sizes = [1, 8, 8, 1], strides = [1, 1, 1, 1]} : vector<1x8x8x8xf32> to vector<1x8x8x1xf32>
    %15 = vector.extract_strided_slice %4 {offsets = [1, 0], sizes = [1, 48], strides = [1, 1]} : vector<8x48xf32> to vector<1x48xf32>
    %16 = vector.shape_cast %15 : vector<1x48xf32> to vector<48xf32>
    %17 = vector.shape_cast %16 : vector<48xf32> to vector<1x1x1x48xf32>
    %18 = vector.broadcast %14 : vector<1x8x8x1xf32> to vector<1x8x8x48xf32>
    %19 = vector.broadcast %17 : vector<1x1x1x48xf32> to vector<1x8x8x48xf32>
    %20 = arith.mulf %18, %19 : vector<1x8x8x48xf32>
    %21 = arith.addf %13, %20 : vector<1x8x8x48xf32>
    %22 = vector.extract_strided_slice %3 {offsets = [0, 0, 0, 2], sizes = [1, 8, 8, 1], strides = [1, 1, 1, 1]} : vector<1x8x8x8xf32> to vector<1x8x8x1xf32>
    %23 = vector.extract_strided_slice %4 {offsets = [2, 0], sizes = [1, 48], strides = [1, 1]} : vector<8x48xf32> to vector<1x48xf32>
    %24 = vector.shape_cast %23 : vector<1x48xf32> to vector<48xf32>
    %25 = vector.shape_cast %24 : vector<48xf32> to vector<1x1x1x48xf32>
    %26 = vector.broadcast %22 : vector<1x8x8x1xf32> to vector<1x8x8x48xf32>
    %27 = vector.broadcast %25 : vector<1x1x1x48xf32> to vector<1x8x8x48xf32>
    %28 = arith.mulf %26, %27 : vector<1x8x8x48xf32>
    %29 = arith.addf %21, %28 : vector<1x8x8x48xf32>
    %30 = vector.extract_strided_slice %3 {offsets = [0, 0, 0, 3], sizes = [1, 8, 8, 1], strides = [1, 1, 1, 1]} : vector<1x8x8x8xf32> to vector<1x8x8x1xf32>
    %31 = vector.extract_strided_slice %4 {offsets = [3, 0], sizes = [1, 48], strides = [1, 1]} : vector<8x48xf32> to vector<1x48xf32>
    %32 = vector.shape_cast %31 : vector<1x48xf32> to vector<48xf32>
    %33 = vector.shape_cast %32 : vector<48xf32> to vector<1x1x1x48xf32>
    %34 = vector.broadcast %30 : vector<1x8x8x1xf32> to vector<1x8x8x48xf32>
    %35 = vector.broadcast %33 : vector<1x1x1x48xf32> to vector<1x8x8x48xf32>
    %36 = arith.mulf %34, %35 : vector<1x8x8x48xf32>
    %37 = arith.addf %29, %36 : vector<1x8x8x48xf32>
    %38 = vector.extract_strided_slice %3 {offsets = [0, 0, 0, 4], sizes = [1, 8, 8, 1], strides = [1, 1, 1, 1]} : vector<1x8x8x8xf32> to vector<1x8x8x1xf32>
    %39 = vector.extract_strided_slice %4 {offsets = [4, 0], sizes = [1, 48], strides = [1, 1]} : vector<8x48xf32> to vector<1x48xf32>
    %40 = vector.shape_cast %39 : vector<1x48xf32> to vector<48xf32>
    %41 = vector.shape_cast %40 : vector<48xf32> to vector<1x1x1x48xf32>
    %42 = vector.broadcast %38 : vector<1x8x8x1xf32> to vector<1x8x8x48xf32>
    %43 = vector.broadcast %41 : vector<1x1x1x48xf32> to vector<1x8x8x48xf32>
    %44 = arith.mulf %42, %43 : vector<1x8x8x48xf32>
    %45 = arith.addf %37, %44 : vector<1x8x8x48xf32>
    %46 = vector.extract_strided_slice %3 {offsets = [0, 0, 0, 5], sizes = [1, 8, 8, 1], strides = [1, 1, 1, 1]} : vector<1x8x8x8xf32> to vector<1x8x8x1xf32>
    %47 = vector.extract_strided_slice %4 {offsets = [5, 0], sizes = [1, 48], strides = [1, 1]} : vector<8x48xf32> to vector<1x48xf32>
    %48 = vector.shape_cast %47 : vector<1x48xf32> to vector<48xf32>
    %49 = vector.shape_cast %48 : vector<48xf32> to vector<1x1x1x48xf32>
    %50 = vector.broadcast %46 : vector<1x8x8x1xf32> to vector<1x8x8x48xf32>
    %51 = vector.broadcast %49 : vector<1x1x1x48xf32> to vector<1x8x8x48xf32>
    %52 = arith.mulf %50, %51 : vector<1x8x8x48xf32>
    %53 = arith.addf %45, %52 : vector<1x8x8x48xf32>
    %54 = vector.extract_strided_slice %3 {offsets = [0, 0, 0, 6], sizes = [1, 8, 8, 1], strides = [1, 1, 1, 1]} : vector<1x8x8x8xf32> to vector<1x8x8x1xf32>
    %55 = vector.extract_strided_slice %4 {offsets = [6, 0], sizes = [1, 48], strides = [1, 1]} : vector<8x48xf32> to vector<1x48xf32>
    %56 = vector.shape_cast %55 : vector<1x48xf32> to vector<48xf32>
    %57 = vector.shape_cast %56 : vector<48xf32> to vector<1x1x1x48xf32>
    %58 = vector.broadcast %54 : vector<1x8x8x1xf32> to vector<1x8x8x48xf32>
    %59 = vector.broadcast %57 : vector<1x1x1x48xf32> to vector<1x8x8x48xf32>
    %60 = arith.mulf %58, %59 : vector<1x8x8x48xf32>
    %61 = arith.addf %53, %60 : vector<1x8x8x48xf32>
    %62 = vector.extract_strided_slice %3 {offsets = [0, 0, 0, 7], sizes = [1, 8, 8, 1], strides = [1, 1, 1, 1]} : vector<1x8x8x8xf32> to vector<1x8x8x1xf32>
    %63 = vector.extract_strided_slice %4 {offsets = [7, 0], sizes = [1, 48], strides = [1, 1]} : vector<8x48xf32> to vector<1x48xf32>
    %64 = vector.shape_cast %63 : vector<1x48xf32> to vector<48xf32>
    %65 = vector.shape_cast %64 : vector<48xf32> to vector<1x1x1x48xf32>
    %66 = vector.broadcast %62 : vector<1x8x8x1xf32> to vector<1x8x8x48xf32>
    %67 = vector.broadcast %65 : vector<1x1x1x48xf32> to vector<1x8x8x48xf32>
    %68 = arith.mulf %66, %67 : vector<1x8x8x48xf32>
    %69 = arith.addf %61, %68 : vector<1x8x8x48xf32>
    %c0_11 = arith.constant 0 : index
    %c0_12 = arith.constant 0 : index
    %70 = vector.load %arg3[%c0_11, %c0_12] : memref<1x48xf32, #tpu.memory_space<vmem>>, vector<1x48xf32>
    %71 = vector.shape_cast %70 : vector<1x48xf32> to vector<48xf32>
    %72 = vector.shape_cast %71 : vector<48xf32> to vector<1x1x1x48xf32>
    %73 = vector.broadcast %72 : vector<1x1x1x48xf32> to vector<1x8x8x48xf32>
    %74 = arith.addf %69, %73 : vector<1x8x8x48xf32>
    %cst_13 = arith.constant 0.000000e+00 : f32
    %cst_14 = arith.constant 6.000000e+00 : f32
    %75 = vector.broadcast %cst_13 : f32 to vector<1x8x8x48xf32>
    %76 = arith.maximumf %75, %74 : vector<1x8x8x48xf32>
    %77 = vector.broadcast %cst_14 : f32 to vector<1x8x8x48xf32>
    %78 = arith.minimumf %77, %76 : vector<1x8x8x48xf32>
    %79 = vector.shape_cast %78 : vector<1x8x8x48xf32> to vector<8x8x48xf32>
    %c0_15 = arith.constant 0 : index
    %c1 = arith.constant 1 : index
    %c1_16 = arith.constant 1 : index
    %c0_17 = arith.constant 0 : index
    %80 = vector.load %arg9[%c0_15, %c1, %c1_16, %c0_17] : memref<1x10x10x48xf32, #tpu.memory_space<vmem>>, vector<1x8x8x48xf32>
    %81 = vector.shape_cast %80 : vector<1x8x8x48xf32> to vector<8x8x48xf32>
    %82 = vector.shape_cast %79 : vector<8x8x48xf32> to vector<1x8x8x48xf32>
    tpu.vector_store %arg9[%c0_15, %c1, %c1_16, %c0_17], %82 {strides = array<i32>} : memref<1x10x10x48xf32, #tpu.memory_space<vmem>>, vector<1x8x8x48xf32>,
    %c0_18 = arith.constant 0 : index
    %c0_19 = arith.constant 0 : index
    %83 = vector.load %arg4[%c0_18, %c0_19] : memref<9x48xf32, #tpu.memory_space<vmem>>, vector<9x48xf32>
    %cst_20 = arith.constant 0.000000e+00 : f32
    %84 = vector.broadcast %cst_20 : f32 to vector<8x8x48xf32>
    %c0_21 = arith.constant 0 : index
    %c0_22 = arith.constant 0 : index
    %c0_23 = arith.constant 0 : index
    %c0_24 = arith.constant 0 : index
    %85 = vector.load %arg9[%c0_21, %c0_22, %c0_23, %c0_24] : memref<1x10x10x48xf32, #tpu.memory_space<vmem>>, vector<1x8x8x48xf32>
    %86 = vector.shape_cast %85 : vector<1x8x8x48xf32> to vector<8x8x48xf32>
    %87 = vector.extract_strided_slice %83 {offsets = [0, 0], sizes = [1, 48], strides = [1, 1]} : vector<9x48xf32> to vector<1x48xf32>
    %88 = vector.shape_cast %87 : vector<1x48xf32> to vector<48xf32>
    %89 = vector.shape_cast %88 : vector<48xf32> to vector<1x1x48xf32>
    %90 = vector.broadcast %89 : vector<1x1x48xf32> to vector<8x8x48xf32>
    %91 = arith.mulf %86, %90 : vector<8x8x48xf32>
    %92 = arith.addf %84, %91 : vector<8x8x48xf32>
    %c0_25 = arith.constant 0 : index
    %c0_26 = arith.constant 0 : index
    %c1_27 = arith.constant 1 : index
    %c0_28 = arith.constant 0 : index
    %93 = vector.load %arg9[%c0_25, %c0_26, %c1_27, %c0_28] : memref<1x10x10x48xf32, #tpu.memory_space<vmem>>, vector<1x8x8x48xf32>
    %94 = vector.shape_cast %93 : vector<1x8x8x48xf32> to vector<8x8x48xf32>
    %95 = vector.extract_strided_slice %83 {offsets = [1, 0], sizes = [1, 48], strides = [1, 1]} : vector<9x48xf32> to vector<1x48xf32>
    %96 = vector.shape_cast %95 : vector<1x48xf32> to vector<48xf32>
    %97 = vector.shape_cast %96 : vector<48xf32> to vector<1x1x48xf32>
    %98 = vector.broadcast %97 : vector<1x1x48xf32> to vector<8x8x48xf32>
    %99 = arith.mulf %94, %98 : vector<8x8x48xf32>
    %100 = arith.addf %92, %99 : vector<8x8x48xf32>
    %c0_29 = arith.constant 0 : index
    %c0_30 = arith.constant 0 : index
    %c2 = arith.constant 2 : index
    %c0_31 = arith.constant 0 : index
    %101 = vector.load %arg9[%c0_29, %c0_30, %c2, %c0_31] : memref<1x10x10x48xf32, #tpu.memory_space<vmem>>, vector<1x8x8x48xf32>
    %102 = vector.shape_cast %101 : vector<1x8x8x48xf32> to vector<8x8x48xf32>
    %103 = vector.extract_strided_slice %83 {offsets = [2, 0], sizes = [1, 48], strides = [1, 1]} : vector<9x48xf32> to vector<1x48xf32>
    %104 = vector.shape_cast %103 : vector<1x48xf32> to vector<48xf32>
    %105 = vector.shape_cast %104 : vector<48xf32> to vector<1x1x48xf32>
    %106 = vector.broadcast %105 : vector<1x1x48xf32> to vector<8x8x48xf32>
    %107 = arith.mulf %102, %106 : vector<8x8x48xf32>
    %108 = arith.addf %100, %107 : vector<8x8x48xf32>
    %c0_32 = arith.constant 0 : index
    %c1_33 = arith.constant 1 : index
    %c0_34 = arith.constant 0 : index
    %c0_35 = arith.constant 0 : index
    %109 = vector.load %arg9[%c0_32, %c1_33, %c0_34, %c0_35] : memref<1x10x10x48xf32, #tpu.memory_space<vmem>>, vector<1x8x8x48xf32>
    %110 = vector.shape_cast %109 : vector<1x8x8x48xf32> to vector<8x8x48xf32>
    %111 = vector.extract_strided_slice %83 {offsets = [3, 0], sizes = [1, 48], strides = [1, 1]} : vector<9x48xf32> to vector<1x48xf32>
    %112 = vector.shape_cast %111 : vector<1x48xf32> to vector<48xf32>
    %113 = vector.shape_cast %112 : vector<48xf32> to vector<1x1x48xf32>
    %114 = vector.broadcast %113 : vector<1x1x48xf32> to vector<8x8x48xf32>
    %115 = arith.mulf %110, %114 : vector<8x8x48xf32>
    %116 = arith.addf %108, %115 : vector<8x8x48xf32>
    %c0_36 = arith.constant 0 : index
    %c1_37 = arith.constant 1 : index
    %c1_38 = arith.constant 1 : index
    %c0_39 = arith.constant 0 : index
    %117 = vector.load %arg9[%c0_36, %c1_37, %c1_38, %c0_39] : memref<1x10x10x48xf32, #tpu.memory_space<vmem>>, vector<1x8x8x48xf32>
    %118 = vector.shape_cast %117 : vector<1x8x8x48xf32> to vector<8x8x48xf32>
    %119 = vector.extract_strided_slice %83 {offsets = [4, 0], sizes = [1, 48], strides = [1, 1]} : vector<9x48xf32> to vector<1x48xf32>
    %120 = vector.shape_cast %119 : vector<1x48xf32> to vector<48xf32>
    %121 = vector.shape_cast %120 : vector<48xf32> to vector<1x1x48xf32>
    %122 = vector.broadcast %121 : vector<1x1x48xf32> to vector<8x8x48xf32>
    %123 = arith.mulf %118, %122 : vector<8x8x48xf32>
    %124 = arith.addf %116, %123 : vector<8x8x48xf32>
    %c0_40 = arith.constant 0 : index
    %c1_41 = arith.constant 1 : index
    %c2_42 = arith.constant 2 : index
    %c0_43 = arith.constant 0 : index
    %125 = vector.load %arg9[%c0_40, %c1_41, %c2_42, %c0_43] : memref<1x10x10x48xf32, #tpu.memory_space<vmem>>, vector<1x8x8x48xf32>
    %126 = vector.shape_cast %125 : vector<1x8x8x48xf32> to vector<8x8x48xf32>
    %127 = vector.extract_strided_slice %83 {offsets = [5, 0], sizes = [1, 48], strides = [1, 1]} : vector<9x48xf32> to vector<1x48xf32>
    %128 = vector.shape_cast %127 : vector<1x48xf32> to vector<48xf32>
    %129 = vector.shape_cast %128 : vector<48xf32> to vector<1x1x48xf32>
    %130 = vector.broadcast %129 : vector<1x1x48xf32> to vector<8x8x48xf32>
    %131 = arith.mulf %126, %130 : vector<8x8x48xf32>
    %132 = arith.addf %124, %131 : vector<8x8x48xf32>
    %c0_44 = arith.constant 0 : index
    %c2_45 = arith.constant 2 : index
    %c0_46 = arith.constant 0 : index
    %c0_47 = arith.constant 0 : index
    %133 = vector.load %arg9[%c0_44, %c2_45, %c0_46, %c0_47] : memref<1x10x10x48xf32, #tpu.memory_space<vmem>>, vector<1x8x8x48xf32>
    %134 = vector.shape_cast %133 : vector<1x8x8x48xf32> to vector<8x8x48xf32>
    %135 = vector.extract_strided_slice %83 {offsets = [6, 0], sizes = [1, 48], strides = [1, 1]} : vector<9x48xf32> to vector<1x48xf32>
    %136 = vector.shape_cast %135 : vector<1x48xf32> to vector<48xf32>
    %137 = vector.shape_cast %136 : vector<48xf32> to vector<1x1x48xf32>
    %138 = vector.broadcast %137 : vector<1x1x48xf32> to vector<8x8x48xf32>
    %139 = arith.mulf %134, %138 : vector<8x8x48xf32>
    %140 = arith.addf %132, %139 : vector<8x8x48xf32>
    %c0_48 = arith.constant 0 : index
    %c2_49 = arith.constant 2 : index
    %c1_50 = arith.constant 1 : index
    %c0_51 = arith.constant 0 : index
    %141 = vector.load %arg9[%c0_48, %c2_49, %c1_50, %c0_51] : memref<1x10x10x48xf32, #tpu.memory_space<vmem>>, vector<1x8x8x48xf32>
    %142 = vector.shape_cast %141 : vector<1x8x8x48xf32> to vector<8x8x48xf32>
    %143 = vector.extract_strided_slice %83 {offsets = [7, 0], sizes = [1, 48], strides = [1, 1]} : vector<9x48xf32> to vector<1x48xf32>
    %144 = vector.shape_cast %143 : vector<1x48xf32> to vector<48xf32>
    %145 = vector.shape_cast %144 : vector<48xf32> to vector<1x1x48xf32>
    %146 = vector.broadcast %145 : vector<1x1x48xf32> to vector<8x8x48xf32>
    %147 = arith.mulf %142, %146 : vector<8x8x48xf32>
    %148 = arith.addf %140, %147 : vector<8x8x48xf32>
    %c0_52 = arith.constant 0 : index
    %c2_53 = arith.constant 2 : index
    %c2_54 = arith.constant 2 : index
    %c0_55 = arith.constant 0 : index
    %149 = vector.load %arg9[%c0_52, %c2_53, %c2_54, %c0_55] : memref<1x10x10x48xf32, #tpu.memory_space<vmem>>, vector<1x8x8x48xf32>
    %150 = vector.shape_cast %149 : vector<1x8x8x48xf32> to vector<8x8x48xf32>
    %151 = vector.extract_strided_slice %83 {offsets = [8, 0], sizes = [1, 48], strides = [1, 1]} : vector<9x48xf32> to vector<1x48xf32>
    %152 = vector.shape_cast %151 : vector<1x48xf32> to vector<48xf32>
    %153 = vector.shape_cast %152 : vector<48xf32> to vector<1x1x48xf32>
    %154 = vector.broadcast %153 : vector<1x1x48xf32> to vector<8x8x48xf32>
    %155 = arith.mulf %150, %154 : vector<8x8x48xf32>
    %156 = arith.addf %148, %155 : vector<8x8x48xf32>
    %c0_56 = arith.constant 0 : index
    %c0_57 = arith.constant 0 : index
    %157 = vector.load %arg5[%c0_56, %c0_57] : memref<1x48xf32, #tpu.memory_space<vmem>>, vector<1x48xf32>
    %158 = vector.shape_cast %157 : vector<1x48xf32> to vector<48xf32>
    %159 = vector.shape_cast %158 : vector<48xf32> to vector<1x1x48xf32>
    %160 = vector.broadcast %159 : vector<1x1x48xf32> to vector<8x8x48xf32>
    %161 = arith.addf %156, %160 : vector<8x8x48xf32>
    %cst_58 = arith.constant 0.000000e+00 : f32
    %cst_59 = arith.constant 6.000000e+00 : f32
    %162 = vector.broadcast %cst_58 : f32 to vector<8x8x48xf32>
    %163 = arith.maximumf %162, %161 : vector<8x8x48xf32>
    %164 = vector.broadcast %cst_59 : f32 to vector<8x8x48xf32>
    %165 = arith.minimumf %164, %163 : vector<8x8x48xf32>
    %166 = vector.shape_cast %165 : vector<8x8x48xf32> to vector<64x48xf32>
    %c0_60 = arith.constant 0 : index
    %c0_61 = arith.constant 0 : index
    %167 = vector.load %arg6[%c0_60, %c0_61] : memref<48x8xf32, #tpu.memory_space<vmem>>, vector<48x8xf32>
    %cst_62 = arith.constant dense<0.000000e+00> : vector<64x8xf32>
    %168 = tpu.matmul %166, %167, %cst_62 {dimension_numbers = #tpu.dot_dimension_numbers<[1], [0], [0], [1], [0, 0, 1, 1], [], []>} : vector<64x48xf32>, vector<48x8xf32>, vector<64x8xf32> -> vector<64x8xf32>
    %c0_63 = arith.constant 0 : index
    %c0_64 = arith.constant 0 : index
    %169 = vector.load %arg7[%c0_63, %c0_64] : memref<1x8xf32, #tpu.memory_space<vmem>>, vector<1x8xf32>
    %170 = vector.shape_cast %169 : vector<1x8xf32> to vector<8xf32>
    %171 = vector.shape_cast %170 : vector<8xf32> to vector<1x8xf32>
    %172 = vector.broadcast %171 : vector<1x8xf32> to vector<64x8xf32>
    %173 = arith.addf %168, %172 : vector<64x8xf32>
    %174 = vector.shape_cast %173 : vector<64x8xf32> to vector<8x8x8xf32>
    %175 = vector.shape_cast %3 : vector<1x8x8x8xf32> to vector<8x8x8xf32>
    %176 = arith.addf %174, %175 : vector<8x8x8xf32>
    %c0_65 = arith.constant 0 : index
    %c0_66 = arith.constant 0 : index
    %c0_67 = arith.constant 0 : index
    %c0_68 = arith.constant 0 : index
    %177 = vector.load %arg8[%c0_65, %c0_66, %c0_67, %c0_68] : memref<1x8x8x8xf32, #tpu.memory_space<vmem>>, vector<1x8x8x8xf32>
    %178 = vector.shape_cast %177 : vector<1x8x8x8xf32> to vector<8x8x8xf32>
    %179 = vector.shape_cast %176 : vector<8x8x8xf32> to vector<1x8x8x8xf32>
    tpu.vector_store %arg8[%c0_65, %c0_66, %c0_67, %c0_68], %179 {strides = array<i32>} : memref<1x8x8x8xf32, #tpu.memory_space<vmem>>, vector<1x8x8x8xf32>,
    return
  }
  func.func @transform_0(%arg0: i32) -> (i32, i32, i32, i32, i32) {
    %c0_i32 = arith.constant 0 : i32
    %c0_i32_0 = arith.constant 0 : i32
    %c0_i32_1 = arith.constant 0 : i32
    %c0_i32_2 = arith.constant 0 : i32
    %c0_i32_3 = arith.constant 0 : i32
    return %arg0, %c0_i32, %c0_i32_0, %c0_i32_1, %c0_i32_2 : i32, i32, i32, i32, i32
  }
  func.func @transform_1(%arg0: i32) -> (i32, i32) {
    %c0_i32 = arith.constant 0 : i32
    %c0_i32_0 = arith.constant 0 : i32
    %c0_i32_1 = arith.constant 0 : i32
    return %c0_i32, %c0_i32_0 : i32, i32
  }
  func.func @transform_2(%arg0: i32) -> (i32, i32) {
    %c0_i32 = arith.constant 0 : i32
    %c0_i32_0 = arith.constant 0 : i32
    %c0_i32_1 = arith.constant 0 : i32
    return %c0_i32, %c0_i32_0 : i32, i32
  }
  func.func @transform_3(%arg0: i32) -> (i32, i32) {
    %c0_i32 = arith.constant 0 : i32
    %c0_i32_0 = arith.constant 0 : i32
    %c0_i32_1 = arith.constant 0 : i32
    return %c0_i32, %c0_i32_0 : i32, i32
  }
  func.func @transform_4(%arg0: i32) -> (i32, i32) {
    %c0_i32 = arith.constant 0 : i32
    %c0_i32_0 = arith.constant 0 : i32
    %c0_i32_1 = arith.constant 0 : i32
    return %c0_i32, %c0_i32_0 : i32, i32
  }
  func.func @transform_5(%arg0: i32) -> (i32, i32) {
    %c0_i32 = arith.constant 0 : i32
    %c0_i32_0 = arith.constant 0 : i32
    %c0_i32_1 = arith.constant 0 : i32
    return %c0_i32, %c0_i32_0 : i32, i32
  }
  func.func @transform_6(%arg0: i32) -> (i32, i32) {
    %c0_i32 = arith.constant 0 : i32
    %c0_i32_0 = arith.constant 0 : i32
    %c0_i32_1 = arith.constant 0 : i32
    return %c0_i32, %c0_i32_0 : i32, i32
  }
  func.func @transform_7(%arg0: i32) -> (i32, i32, i32, i32) {
    %c0_i32 = arith.constant 0 : i32
    %c0_i32_0 = arith.constant 0 : i32
    %c0_i32_1 = arith.constant 0 : i32
    %c0_i32_2 = arith.constant 0 : i32
    return %arg0, %c0_i32, %c0_i32_0, %c0_i32_1 : i32, i32, i32, i32
  }
}

</mosaic_0001>

<llo_original>
// kernel: forward.3
$region0: #{forward.3}
  #allocation0 [shape = 'u32[]', space=smem, size = 0x4, offset = 0x4, fixed_abs, tag = 'smem constant byte address 0x4 - core index']
  #allocation1 [shape = 'u32[144,128]{1,0:T(1,128)}', space=vmem, size = 0x12000, scoped, tag = 'internal scratch']
  #allocation2 [shape = 'f32[1,10,10,48]{3,2,1,0:T(8,128)}', space=vmem, size = 0x14000, scoped, tag = 'scratch operand']
  %s0 = inlined_call_operand.vmem [shape: f32[2,1,8,8,8], index: 0, kind: input, shape index: {}]
  %s1 = inlined_call_operand.vmem [shape: f32[8,48], index: 1, kind: input, shape index: {}]
  %s2 = inlined_call_operand.vmem [shape: f32[1,48], index: 2, kind: input, shape index: {}]
  %s3 = inlined_call_operand.vmem [shape: f32[9,48], index: 3, kind: input, shape index: {}]
  %s4 = inlined_call_operand.vmem [shape: f32[1,48], index: 4, kind: input, shape index: {}]
  %s5 = inlined_call_operand.vmem [shape: f32[48,8], index: 5, kind: input, shape index: {}]
  %s6 = inlined_call_operand.vmem [shape: f32[1,8], index: 6, kind: input, shape index: {}]
  %s7 = inlined_call_operand.vmem [shape: f32[2,8,8,8], index: 7, kind: output, shape index: {}]
  %s8 = sld [smem:[#allocation0]]
  $region61: #{forward.3} parent=0
    _
  %s10 = ssub.s32 1, %s8
  %s11 = scalar_select 0, %s10, %s8
  loop: start=0, step=1, limit=4
  $region2: #{forward.3} parent=0 // loop_pre_header
    _
  $region3: #{forward.3} parent=0 // loop_header
    %s13 = sphi 0, %s17
    %p14 = scmp.ge.s32.totalorder %s13, 4
    %s23 = sphi 0, %s25
    %s26 = sphi 0, %s23
    %s27 = sphi 0, %s26
    %s43 = sphi 0, %s27
    %s47 = sphi 0, %s47
    %s49 = sphi 0, %s47
    %s50 = sphi 0, %s49
    %s64 = sphi 0, %s50
    %s68 = sphi 0, %s68
    %s70 = sphi 0, %s68
    %s71 = sphi 0, %s70
    %s85 = sphi 0, %s71
    %s89 = sphi 0, %s89
    %s91 = sphi 0, %s89
    %s92 = sphi 0, %s91
    %s106 = sphi 0, %s92
    %s110 = sphi 0, %s110
    %s112 = sphi 0, %s110
    %s113 = sphi 0, %s112
    %s127 = sphi 0, %s113
    %s131 = sphi 0, %s131
    %s133 = sphi 0, %s131
    %s134 = sphi 0, %s133
    %s148 = sphi 0, %s134
    %s152 = sphi 0, %s152
    %s154 = sphi 0, %s152
    %s155 = sphi 0, %s154
    %s169 = sphi 0, %s155
    %s175 = sphi 0, %s177
    %s178 = sphi 0, %s175
    %s179 = sphi 0, %s178
    %s195 = sphi 0, %s179
  $region4: #{forward.3} parent=0 // loop_header_branch
    %16 = sbr.rel (%p14) target = $region8
  $region5: #{forward.3} parent=0 // loop_body
    %s18 = ssub.s32 %s13, 1
    %s19 = ssub.s32 %s13, 2
    %s20 = sadd.s32 %s13, 1
    %s21 = ssub.s32 %s13, %s20
    %p22 = scmp.eq.s32.totalorder %s21, 0
    %s24 = sadd.s32 %s23, 1
    %s25 = scalar_select %p22, %s23, %s24
    %p28 = pneg %p22
    %p29 = scmp.eq.s32.totalorder %s13, 1
    %p30 = por %p28, %p29
    %p31 = scmp.ne.s32.totalorder %s23, %s26
    %p32 = scmp.eq.s32.totalorder %s13, 0
    %p33 = por %p31, %p32
    %p34 = scmp.ne.s32.totalorder %s23, %s26
    %p35 = scmp.eq.s32.totalorder %s18, 1
    %p36 = por %p34, %p35
    %p37 = scmp.ne.s32.totalorder %s26, %s27
    %p38 = scmp.eq.s32.totalorder %s18, 0
    %p39 = por %p37, %p38
    %p40 = scmp.ne.s32.totalorder %s26, %s27
    %p41 = scmp.eq.s32.totalorder %s19, 1
    %p42 = por %p40, %p41
    %p44 = scmp.ne.s32.totalorder %s27, %s43
    %p45 = scmp.eq.s32.totalorder %s19, 0
    %p46 = por %p44, %p45
    %s48 = sadd.s32 %s47, 1
    %p51 = scmp.eq.s32.totalorder %s13, 1
    %p52 = scmp.ne.s32.totalorder %s47, %s49
    %p53 = scmp.eq.s32.totalorder %s13, 0
    %p54 = por %p52, %p53
    %p55 = scmp.ne.s32.totalorder %s47, %s49
    %p56 = scmp.eq.s32.totalorder %s18, 1
    %p57 = por %p55, %p56
    %p58 = scmp.ne.s32.totalorder %s49, %s50
    %p59 = scmp.eq.s32.totalorder %s18, 0
    %p60 = por %p58, %p59
    %p61 = scmp.ne.s32.totalorder %s49, %s50
    %p62 = scmp.eq.s32.totalorder %s19, 1
    %p63 = por %p61, %p62
    %p65 = scmp.ne.s32.totalorder %s50, %s64
    %p66 = scmp.eq.s32.totalorder %s19, 0
    %p67 = por %p65, %p66
    %s69 = sadd.s32 %s68, 1
    %p72 = scmp.eq.s32.totalorder %s13, 1
    %p73 = scmp.ne.s32.totalorder %s68, %s70
    %p74 = scmp.eq.s32.totalorder %s13, 0
    %p75 = por %p73, %p74
    %p76 = scmp.ne.s32.totalorder %s68, %s70
    %p77 = scmp.eq.s32.totalorder %s18, 1
    %p78 = por %p76, %p77
    %p79 = scmp.ne.s32.totalorder %s70, %s71
    %p80 = scmp.eq.s32.totalorder %s18, 0
    %p81 = por %p79, %p80
    %p82 = scmp.ne.s32.totalorder %s70, %s71
    %p83 = scmp.eq.s32.totalorder %s19, 1
    %p84 = por %p82, %p83
    %p86 = scmp.ne.s32.totalorder %s71, %s85
    %p87 = scmp.eq.s32.totalorder %s19, 0
    %p88 = por %p86, %p87
    %s90 = sadd.s32 %s89, 1
    %p93 = scmp.eq.s32.totalorder %s13, 1
    %p94 = scmp.ne.s32.totalorder %s89, %s91
    %p95 = scmp.eq.s32.totalorder %s13, 0
    %p96 = por %p94, %p95
    %p97 = scmp.ne.s32.totalorder %s89, %s91
    %p98 = scmp.eq.s32.totalorder %s18, 1
    %p99 = por %p97, %p98
    %p100 = scmp.ne.s32.totalorder %s91, %s92
    %p101 = scmp.eq.s32.totalorder %s18, 0
    %p102 = por %p100, %p101
    %p103 = scmp.ne.s32.totalorder %s91, %s92
    %p104 = scmp.eq.s32.totalorder %s19, 1
    %p105 = por %p103, %p104
    %p107 = scmp.ne.s32.totalorder %s92, %s106
    %p108 = scmp.eq.s32.totalorder %s19, 0
    %p109 = por %p107, %p108
    %s111 = sadd.s32 %s110, 1
    %p114 = scmp.eq.s32.totalorder %s13, 1
    %p115 = scmp.ne.s32.totalorder %s110, %s112
    %p116 = scmp.eq.s32.totalorder %s13, 0
    %p117 = por %p115, %p116
    %p118 = scmp.ne.s32.totalorder %s110, %s112
    %p119 = scmp.eq.s32.totalorder %s18, 1
    %p120 = por %p118, %p119
    %p121 = scmp.ne.s32.totalorder %s112, %s113
    %p122 = scmp.eq.s32.totalorder %s18, 0
    %p123 = por %p121, %p122
    %p124 = scmp.ne.s32.totalorder %s112, %s113
    %p125 = scmp.eq.s32.totalorder %s19, 1
    %p126 = por %p124, %p125
    %p128 = scmp.ne.s32.totalorder %s113, %s127
    %p129 = scmp.eq.s32.totalorder %s19, 0
    %p130 = por %p128, %p129
    %s132 = sadd.s32 %s131, 1
    %p135 = scmp.eq.s32.totalorder %s13, 1
    %p136 = scmp.ne.s32.totalorder %s131, %s133
    %p137 = scmp.eq.s32.totalorder %s13, 0
    %p138 = por %p136, %p137
    %p139 = scmp.ne.s32.totalorder %s131, %s133
    %p140 = scmp.eq.s32.totalorder %s18, 1
    %p141 = por %p139, %p140
    %p142 = scmp.ne.s32.totalorder %s133, %s134
    %p143 = scmp.eq.s32.totalorder %s18, 0
    %p144 = por %p142, %p143
    %p145 = scmp.ne.s32.totalorder %s133, %s134
    %p146 = scmp.eq.s32.totalorder %s19, 1
    %p147 = por %p145, %p146
    %p149 = scmp.ne.s32.totalorder %s134, %s148
    %p150 = scmp.eq.s32.totalorder %s19, 0
    %p151 = por %p149, %p150
    %s153 = sadd.s32 %s152, 1
    %p156 = scmp.eq.s32.totalorder %s13, 1
    %p157 = scmp.ne.s32.totalorder %s152, %s154
    %p158 = scmp.eq.s32.totalorder %s13, 0
    %p159 = por %p157, %p158
    %p160 = scmp.ne.s32.totalorder %s152, %s154
    %p161 = scmp.eq.s32.totalorder %s18, 1
    %p162 = por %p160, %p161
    %p163 = scmp.ne.s32.totalorder %s154, %s155
    %p164 = scmp.eq.s32.totalorder %s18, 0
    %p165 = por %p163, %p164
    %p166 = scmp.ne.s32.totalorder %s154, %s155
    %p167 = scmp.eq.s32.totalorder %s19, 1
    %p168 = por %p166, %p167
    %p170 = scmp.ne.s32.totalorder %s155, %s169
    %p171 = scmp.eq.s32.totalorder %s19, 0
    %p172 = por %p170, %p171
    %s173 = ssub.s32 %s13, %s20
    %p174 = scmp.eq.s32.totalorder %s173, 0
    %s176 = sadd.s32 %s175, 1
    %s177 = scalar_select %p174, %s175, %s176
    %p180 = pneg %p174
    %p181 = scmp.eq.s32.totalorder %s13, 1
    %p182 = por %p180, %p181
    %p183 = scmp.ne.s32.totalorder %s175, %s178
    %p184 = scmp.eq.s32.totalorder %s13, 0
    %p185 = por %p183, %p184
    %p186 = scmp.ne.s32.totalorder %s175, %s178
    %p187 = scmp.eq.s32.totalorder %s18, 1
    %p188 = por %p186, %p187
    %p189 = scmp.ne.s32.totalorder %s178, %s179
    %p190 = scmp.eq.s32.totalorder %s18, 0
    %p191 = por %p189, %p190
    %p192 = scmp.ne.s32.totalorder %s178, %s179
    %p193 = scmp.eq.s32.totalorder %s19, 1
    %p194 = por %p192, %p193
    %p196 = scmp.ne.s32.totalorder %s179, %s195
    %p197 = scmp.eq.s32.totalorder %s19, 0
    %p198 = por %p196, %p197
    %p199 = scmp.le.s32.totalorder 1, %s13
    %p200 = scmp.lt.s32.totalorder %s13, 3
    %p201 = pnand %p199, %p200
    %p202 = pneg %p201
    // Predicated region
    $region9: #{forward.3} parent=5 // pred_check
      _
    $region10: #{forward.3} parent=5 // pred_check_branch
      %204 = sbr.rel (%p201) target = $region12
    $region11: #{forward.3} parent=5 // pred_region
      %s205 = ssub.s32 %s13, 1
      // Predicated region
      $region13: #{forward.3} parent=11 // pred_check
        %p206 = pneg %p60
      $region14: #{forward.3} parent=11 // pred_check_branch
        %208 = sbr.rel (%p206) target = $region16
      $region15: #{forward.3} parent=11 // pred_region
        _
      $region16: #{forward.3} parent=11 // pred_fallthru
        _
      // Predicated region
      $region17: #{forward.3} parent=11 // pred_check
        %p209 = pneg %p81
      $region18: #{forward.3} parent=11 // pred_check_branch
        %211 = sbr.rel (%p209) target = $region20
      $region19: #{forward.3} parent=11 // pred_region
        _
      $region20: #{forward.3} parent=11 // pred_fallthru
        _
      // Predicated region
      $region21: #{forward.3} parent=11 // pred_check
        %p212 = pneg %p102
      $region22: #{forward.3} parent=11 // pred_check_branch
        %214 = sbr.rel (%p212) target = $region24
      $region23: #{forward.3} parent=11 // pred_region
        _
      $region24: #{forward.3} parent=11 // pred_fallthru
        _
      // Predicated region
      $region25: #{forward.3} parent=11 // pred_check
        %p215 = pneg %p123
      $region26: #{forward.3} parent=11 // pred_check_branch
        %217 = sbr.rel (%p215) target = $region28
      $region27: #{forward.3} parent=11 // pred_region
        _
      $region28: #{forward.3} parent=11 // pred_fallthru
        _
      // Predicated region
      $region29: #{forward.3} parent=11 // pred_check
        %p218 = pneg %p144
      $region30: #{forward.3} parent=11 // pred_check_branch
        %220 = sbr.rel (%p218) target = $region32
      $region31: #{forward.3} parent=11 // pred_region
        _
      $region32: #{forward.3} parent=11 // pred_fallthru
        _
      // Predicated region
      $region33: #{forward.3} parent=11 // pred_check
        %p221 = pneg %p165
      $region34: #{forward.3} parent=11 // pred_check_branch
        %223 = sbr.rel (%p221) target = $region36
      $region35: #{forward.3} parent=11 // pred_region
        _
      $region36: #{forward.3} parent=11 // pred_fallthru
        _
    $region12: #{forward.3} parent=5 // pred_fallthru
      _
    %p224 = scmp.lt.s32.totalorder %s13, 2
    // Predicated region
    $region37: #{forward.3} parent=5 // pred_check
      %p225 = pneg %p224
    $region38: #{forward.3} parent=5 // pred_check_branch
      %227 = sbr.rel (%p225) target = $region40
    $region39: #{forward.3} parent=5 // pred_region
      // Predicated region
      $region41: #{forward.3} parent=39 // pred_check
        %p228 = pneg %p33
      $region42: #{forward.3} parent=39 // pred_check_branch
        %230 = sbr.rel (%p228) target = $region44
      $region43: #{forward.3} parent=39 // pred_region
        %p231 = scmp.lt.s32.totalorder %s13, 1
        %s232 = scalar_select %p231, %s13, 1
        %s233 = smul.addr %s232, 8
        %s234 = smul.addr %s233, 8
        %s235 = scalar_lea.vmem %s0, %s234
      $region44: #{forward.3} parent=39 // pred_fallthru
        _
    $region40: #{forward.3} parent=5 // pred_fallthru
      _
    %p236 = scmp.le.s32.totalorder 1, %s13
    %p237 = scmp.lt.s32.totalorder %s13, 3
    %p238 = pnand %p236, %p237
    %p239 = pneg %p238
    // Predicated region
    $region45: #{forward.3} parent=5 // pred_check
      _
    $region46: #{forward.3} parent=5 // pred_check_branch
      %241 = sbr.rel (%p238) target = $region48
    $region47: #{forward.3} parent=5 // pred_region
      %s242 = ssub.s32 %s13, 1
      %p243 = scmp.lt.s32.totalorder %s18, 1
      %s244 = scalar_select %p243, %s18, 1
      %s245 = smul.addr %s244, 8
      %s246 = smul.addr %s245, 8
      %s247 = scalar_lea.vmem %s0, %s246
      %p248 = pneg %p39
      %p249 = pneg %p36
      %p250 = pneg %p60
      %p251 = pneg %p57
      %p252 = pneg %p81
      %p253 = pneg %p78
      %p254 = pneg %p102
      %p255 = pneg %p99
      %p256 = pneg %p123
      %p257 = pneg %p120
      %p258 = pneg %p144
      %p259 = pneg %p141
      %p260 = pneg %p165
      %p261 = pneg %p162
      %p262 = pneg %p191
      %p263 = pneg %p188
      %p264 = scmp.lt.s32.totalorder %s18, 1
      %s265 = scalar_select %p264, %s18, 1
      %s266 = smul.addr %s265, 8
      %s267 = smul.addr %s266, 8
      %s268 = scalar_lea.vmem %s7, %s267
      %p269 = scmp.lt.s32.totalorder %s18, 1
      %s270 = scalar_select %p269, %s18, 1
      %s271 = smul.addr %s270, 8
      %s272 = smul.addr %s271, 8
      %s273 = scalar_lea.vmem %s0, %s272
      %p274 = scmp.lt.s32.totalorder %s18, 1
      %s275 = scalar_select %p274, %s18, 1
      %s276 = smul.addr %s275, 8
      %s277 = smul.addr %s276, 8
      %s278 = scalar_lea.vmem %s7, %s277
      %vm279 = vcmask 392192
      %280 = vst.msk [vmem:[#allocation2] sm:$0xff] %vm279, 0.0
      %vm281 = vcmask 386048
      %282 = vst.msk [vmem:[#allocation2 + $0x8] sm:$0x3] %vm281, 0.0
      %283 = vst.msk [vmem:[#allocation2 + $0x10] sm:$0xff] %vm279, 0.0
      %284 = vst.msk [vmem:[#allocation2 + $0x18] sm:$0x3] %vm281, 0.0
      %285 = vst.msk [vmem:[#allocation2 + $0x20] sm:$0xff] %vm279, 0.0
      %286 = vst.msk [vmem:[#allocation2 + $0x28] sm:$0x3] %vm281, 0.0
      %287 = vst.msk [vmem:[#allocation2 + $0x30] sm:$0xff] %vm279, 0.0
      %288 = vst.msk [vmem:[#allocation2 + $0x38] sm:$0x3] %vm281, 0.0
      %289 = vst.msk [vmem:[#allocation2 + $0x40] sm:$0xff] %vm279, 0.0
      %290 = vst.msk [vmem:[#allocation2 + $0x48] sm:$0x3] %vm281, 0.0
      %291 = vst.msk [vmem:[#allocation2 + $0x50] sm:$0xff] %vm279, 0.0
      %292 = vst.msk [vmem:[#allocation2 + $0x58] sm:$0x3] %vm281, 0.0
      %293 = vst.msk [vmem:[#allocation2 + $0x60] sm:$0xff] %vm279, 0.0
      %294 = vst.msk [vmem:[#allocation2 + $0x68] sm:$0x3] %vm281, 0.0
      %295 = vst.msk [vmem:[#allocation2 + $0x70] sm:$0xff] %vm279, 0.0
      %296 = vst.msk [vmem:[#allocation2 + $0x78] sm:$0x3] %vm281, 0.0
      %297 = vst.msk [vmem:[#allocation2 + $0x80] sm:$0xff] %vm279, 0.0
      %298 = vst.msk [vmem:[#allocation2 + $0x88] sm:$0x3] %vm281, 0.0
      %299 = vst.msk [vmem:[#allocation2 + $0x90] sm:$0xff] %vm279, 0.0
      %300 = vst.msk [vmem:[#allocation2 + $0x98] sm:$0x3] %vm281, 0.0
      %v301 = vld [vmem:[%s273] sm:$0xff]
      %v302 = vld [vmem:[%s273 + $0x8] sm:$0xff]
      %v303 = vld [vmem:[%s273 + $0x10] sm:$0xff]
      %v304 = vld [vmem:[%s273 + $0x18] sm:$0xff]
      %v305 = vld [vmem:[%s273 + $0x20] sm:$0xff]
      %v306 = vld [vmem:[%s273 + $0x28] sm:$0xff]
      %v307 = vld [vmem:[%s273 + $0x30] sm:$0xff]
      %v308 = vld [vmem:[%s273 + $0x38] sm:$0xff]
      %v309 = vld [vmem:[%s1] sm:$0xff]
      %311 = vset.pattern.permute.xlu0 0
      %312 = vperm.xlu0 %311, %v301
      %v313 = vpop.permute.xlu0 %312
      %316 = vset.pattern.permute.xlu0 0
      %317 = vperm.xlu0 %316, %v302
      %v318 = vpop.permute.xlu0 %317
      %321 = vset.pattern.permute.xlu0 0
      %322 = vperm.xlu0 %321, %v303
      %v323 = vpop.permute.xlu0 %322
      %326 = vset.pattern.permute.xlu0 0
      %327 = vperm.xlu0 %326, %v304
      %v328 = vpop.permute.xlu0 %327
      %331 = vset.pattern.permute.xlu0 0
      %332 = vperm.xlu0 %331, %v305
      %v333 = vpop.permute.xlu0 %332
      %336 = vset.pattern.permute.xlu0 0
      %337 = vperm.xlu0 %336, %v306
      %v338 = vpop.permute.xlu0 %337
      %341 = vset.pattern.permute.xlu0 0
      %342 = vperm.xlu0 %341, %v307
      %v343 = vpop.permute.xlu0 %342
      %346 = vset.pattern.permute.xlu0 0
      %347 = vperm.xlu0 %346, %v308
      %v348 = vpop.permute.xlu0 %347
      %v350 = vlaneseq
      %v351 = vshrl.u32 %v350, 7
      %v352 = vsub.s32 0, %v351
      %v353 = vrot.slane %v309, %v352
      %v354 = vmul.f32 %v313, %v353
      %v355 = vmul.f32 %v318, %v353
      %v356 = vmul.f32 %v323, %v353
      %v357 = vmul.f32 %v328, %v353
      %v358 = vmul.f32 %v333, %v353
      %v359 = vmul.f32 %v338, %v353
      %v360 = vmul.f32 %v343, %v353
      %v361 = vmul.f32 %v348, %v353
      %v362 = vadd.f32 %v354, 0.0
      %v363 = vadd.f32 %v355, 0.0
      %v364 = vadd.f32 %v356, 0.0
      %v365 = vadd.f32 %v357, 0.0
      %v366 = vadd.f32 %v358, 0.0
      %v367 = vadd.f32 %v359, 0.0
      %v368 = vadd.f32 %v360, 0.0
      %v369 = vadd.f32 %v361, 0.0
      %370 = vset.pattern.permute.xlu0 1
      %371 = vperm.xlu0 %370, %v301
      %v372 = vpop.permute.xlu0 %371
      %374 = vset.pattern.permute.xlu0 1
      %375 = vperm.xlu0 %374, %v302
      %v376 = vpop.permute.xlu0 %375
      %378 = vset.pattern.permute.xlu0 1
      %379 = vperm.xlu0 %378, %v303
      %v380 = vpop.permute.xlu0 %379
      %382 = vset.pattern.permute.xlu0 1
      %383 = vperm.xlu0 %382, %v304
      %v384 = vpop.permute.xlu0 %383
      %386 = vset.pattern.permute.xlu0 1
      %387 = vperm.xlu0 %386, %v305
      %v388 = vpop.permute.xlu0 %387
      %390 = vset.pattern.permute.xlu0 1
      %391 = vperm.xlu0 %390, %v306
      %v392 = vpop.permute.xlu0 %391
      %394 = vset.pattern.permute.xlu0 1
      %395 = vperm.xlu0 %394, %v307
      %v396 = vpop.permute.xlu0 %395
      %398 = vset.pattern.permute.xlu0 1
      %399 = vperm.xlu0 %398, %v308
      %v400 = vpop.permute.xlu0 %399
      %v402 = vlaneseq
      %v403 = vshrl.u32 %v402, 7
      %v404 = vsub.s32 1, %v403
      %v405 = vrot.slane %v309, %v404
      %v406 = vmul.f32 %v372, %v405
      %v407 = vmul.f32 %v376, %v405
      %v408 = vmul.f32 %v380, %v405
      %v409 = vmul.f32 %v384, %v405
      %v410 = vmul.f32 %v388, %v405
      %v411 = vmul.f32 %v392, %v405
      %v412 = vmul.f32 %v396, %v405
      %v413 = vmul.f32 %v400, %v405
      %v414 = vadd.f32 %v362, %v406
      %v415 = vadd.f32 %v363, %v407
      %v416 = vadd.f32 %v364, %v408
      %v417 = vadd.f32 %v365, %v409
      %v418 = vadd.f32 %v366, %v410
      %v419 = vadd.f32 %v367, %v411
      %v420 = vadd.f32 %v368, %v412
      %v421 = vadd.f32 %v369, %v413
      %422 = vset.pattern.permute.xlu0 2
      %423 = vperm.xlu0 %422, %v301
      %v424 = vpop.permute.xlu0 %423
      %426 = vset.pattern.permute.xlu0 2
      %427 = vperm.xlu0 %426, %v302
      %v428 = vpop.permute.xlu0 %427
      %430 = vset.pattern.permute.xlu0 2
      %431 = vperm.xlu0 %430, %v303
      %v432 = vpop.permute.xlu0 %431
      %434 = vset.pattern.permute.xlu0 2
      %435 = vperm.xlu0 %434, %v304
      %v436 = vpop.permute.xlu0 %435
      %438 = vset.pattern.permute.xlu0 2
      %439 = vperm.xlu0 %438, %v305
      %v440 = vpop.permute.xlu0 %439
      %442 = vset.pattern.permute.xlu0 2
      %443 = vperm.xlu0 %442, %v306
      %v444 = vpop.permute.xlu0 %443
      %446 = vset.pattern.permute.xlu0 2
      %447 = vperm.xlu0 %446, %v307
      %v448 = vpop.permute.xlu0 %447
      %450 = vset.pattern.permute.xlu0 2
      %451 = vperm.xlu0 %450, %v308
      %v452 = vpop.permute.xlu0 %451
      %v454 = vlaneseq
      %v455 = vshrl.u32 %v454, 7
      %v456 = vsub.s32 2, %v455
      %v457 = vrot.slane %v309, %v456
      %v458 = vmul.f32 %v424, %v457
      %v459 = vmul.f32 %v428, %v457
      %v460 = vmul.f32 %v432, %v457
      %v461 = vmul.f32 %v436, %v457
      %v462 = vmul.f32 %v440, %v457
      %v463 = vmul.f32 %v444, %v457
      %v464 = vmul.f32 %v448, %v457
      %v465 = vmul.f32 %v452, %v457
      %v466 = vadd.f32 %v414, %v458
      %v467 = vadd.f32 %v415, %v459
      %v468 = vadd.f32 %v416, %v460
      %v469 = vadd.f32 %v417, %v461
      %v470 = vadd.f32 %v418, %v462
      %v471 = vadd.f32 %v419, %v463
      %v472 = vadd.f32 %v420, %v464
      %v473 = vadd.f32 %v421, %v465
      %474 = vset.pattern.permute.xlu0 3
      %475 = vperm.xlu0 %474, %v301
      %v476 = vpop.permute.xlu0 %475
      %478 = vset.pattern.permute.xlu0 3
      %479 = vperm.xlu0 %478, %v302
      %v480 = vpop.permute.xlu0 %479
      %482 = vset.pattern.permute.xlu0 3
      %483 = vperm.xlu0 %482, %v303
      %v484 = vpop.permute.xlu0 %483
      %486 = vset.pattern.permute.xlu0 3
      %487 = vperm.xlu0 %486, %v304
      %v488 = vpop.permute.xlu0 %487
      %490 = vset.pattern.permute.xlu0 3
      %491 = vperm.xlu0 %490, %v305
      %v492 = vpop.permute.xlu0 %491
      %494 = vset.pattern.permute.xlu0 3
      %495 = vperm.xlu0 %494, %v306
      %v496 = vpop.permute.xlu0 %495
      %498 = vset.pattern.permute.xlu0 3
      %499 = vperm.xlu0 %498, %v307
      %v500 = vpop.permute.xlu0 %499
      %502 = vset.pattern.permute.xlu0 3
      %503 = vperm.xlu0 %502, %v308
      %v504 = vpop.permute.xlu0 %503
      %v506 = vlaneseq
      %v507 = vshrl.u32 %v506, 7
      %v508 = vsub.s32 3, %v507
      %v509 = vrot.slane %v309, %v508
      %v510 = vmul.f32 %v476, %v509
      %v511 = vmul.f32 %v480, %v509
      %v512 = vmul.f32 %v484, %v509
      %v513 = vmul.f32 %v488, %v509
      %v514 = vmul.f32 %v492, %v509
      %v515 = vmul.f32 %v496, %v509
      %v516 = vmul.f32 %v500, %v509
      %v517 = vmul.f32 %v504, %v509
      %v518 = vadd.f32 %v466, %v510
      %v519 = vadd.f32 %v467, %v511
      %v520 = vadd.f32 %v468, %v512
      %v521 = vadd.f32 %v469, %v513
      %v522 = vadd.f32 %v470, %v514
      %v523 = vadd.f32 %v471, %v515
      %v524 = vadd.f32 %v472, %v516
      %v525 = vadd.f32 %v473, %v517
      %526 = vset.pattern.permute.xlu0 4
      %527 = vperm.xlu0 %526, %v301
      %v528 = vpop.permute.xlu0 %527
      %530 = vset.pattern.permute.xlu0 4
      %531 = vperm.xlu0 %530, %v302
      %v532 = vpop.permute.xlu0 %531
      %534 = vset.pattern.permute.xlu0 4
      %535 = vperm.xlu0 %534, %v303
      %v536 = vpop.permute.xlu0 %535
      %538 = vset.pattern.permute.xlu0 4
      %539 = vperm.xlu0 %538, %v304
      %v540 = vpop.permute.xlu0 %539
      %542 = vset.pattern.permute.xlu0 4
      %543 = vperm.xlu0 %542, %v305
      %v544 = vpop.permute.xlu0 %543
      %546 = vset.pattern.permute.xlu0 4
      %547 = vperm.xlu0 %546, %v306
      %v548 = vpop.permute.xlu0 %547
      %550 = vset.pattern.permute.xlu0 4
      %551 = vperm.xlu0 %550, %v307
      %v552 = vpop.permute.xlu0 %551
      %554 = vset.pattern.permute.xlu0 4
      %555 = vperm.xlu0 %554, %v308
      %v556 = vpop.permute.xlu0 %555
      %v558 = vlaneseq
      %v559 = vshrl.u32 %v558, 7
      %v560 = vsub.s32 4, %v559
      %v561 = vrot.slane %v309, %v560
      %v562 = vmul.f32 %v528, %v561
      %v563 = vmul.f32 %v532, %v561
      %v564 = vmul.f32 %v536, %v561
      %v565 = vmul.f32 %v540, %v561
      %v566 = vmul.f32 %v544, %v561
      %v567 = vmul.f32 %v548, %v561
      %v568 = vmul.f32 %v552, %v561
      %v569 = vmul.f32 %v556, %v561
      %v570 = vadd.f32 %v518, %v562
      %v571 = vadd.f32 %v519, %v563
      %v572 = vadd.f32 %v520, %v564
      %v573 = vadd.f32 %v521, %v565
      %v574 = vadd.f32 %v522, %v566
      %v575 = vadd.f32 %v523, %v567
      %v576 = vadd.f32 %v524, %v568
      %v577 = vadd.f32 %v525, %v569
      %578 = vset.pattern.permute.xlu0 5
      %579 = vperm.xlu0 %578, %v301
      %v580 = vpop.permute.xlu0 %579
      %582 = vset.pattern.permute.xlu0 5
      %583 = vperm.xlu0 %582, %v302
      %v584 = vpop.permute.xlu0 %583
      %586 = vset.pattern.permute.xlu0 5
      %587 = vperm.xlu0 %586, %v303
      %v588 = vpop.permute.xlu0 %587
      %590 = vset.pattern.permute.xlu0 5
      %591 = vperm.xlu0 %590, %v304
      %v592 = vpop.permute.xlu0 %591
      %594 = vset.pattern.permute.xlu0 5
      %595 = vperm.xlu0 %594, %v305
      %v596 = vpop.permute.xlu0 %595
      %598 = vset.pattern.permute.xlu0 5
      %599 = vperm.xlu0 %598, %v306
      %v600 = vpop.permute.xlu0 %599
      %602 = vset.pattern.permute.xlu0 5
      %603 = vperm.xlu0 %602, %v307
      %v604 = vpop.permute.xlu0 %603
      %606 = vset.pattern.permute.xlu0 5
      %607 = vperm.xlu0 %606, %v308
      %v608 = vpop.permute.xlu0 %607
      %v610 = vlaneseq
      %v611 = vshrl.u32 %v610, 7
      %v612 = vsub.s32 5, %v611
      %v613 = vrot.slane %v309, %v612
      %v614 = vmul.f32 %v580, %v613
      %v615 = vmul.f32 %v584, %v613
      %v616 = vmul.f32 %v588, %v613
      %v617 = vmul.f32 %v592, %v613
      %v618 = vmul.f32 %v596, %v613
      %v619 = vmul.f32 %v600, %v613
      %v620 = vmul.f32 %v604, %v613
      %v621 = vmul.f32 %v608, %v613
      %v622 = vadd.f32 %v570, %v614
      %v623 = vadd.f32 %v571, %v615
      %v624 = vadd.f32 %v572, %v616
      %v625 = vadd.f32 %v573, %v617
      %v626 = vadd.f32 %v574, %v618
      %v627 = vadd.f32 %v575, %v619
      %v628 = vadd.f32 %v576, %v620
      %v629 = vadd.f32 %v577, %v621
      %630 = vset.pattern.permute.xlu0 6
      %631 = vperm.xlu0 %630, %v301
      %v632 = vpop.permute.xlu0 %631
      %634 = vset.pattern.permute.xlu0 6
      %635 = vperm.xlu0 %634, %v302
      %v636 = vpop.permute.xlu0 %635
      %638 = vset.pattern.permute.xlu0 6
      %639 = vperm.xlu0 %638, %v303
      %v640 = vpop.permute.xlu0 %639
      %642 = vset.pattern.permute.xlu0 6
      %643 = vperm.xlu0 %642, %v304
      %v644 = vpop.permute.xlu0 %643
      %646 = vset.pattern.permute.xlu0 6
      %647 = vperm.xlu0 %646, %v305
      %v648 = vpop.permute.xlu0 %647
      %650 = vset.pattern.permute.xlu0 6
      %651 = vperm.xlu0 %650, %v306
      %v652 = vpop.permute.xlu0 %651
      %654 = vset.pattern.permute.xlu0 6
      %655 = vperm.xlu0 %654, %v307
      %v656 = vpop.permute.xlu0 %655
      %658 = vset.pattern.permute.xlu0 6
      %659 = vperm.xlu0 %658, %v308
      %v660 = vpop.permute.xlu0 %659
      %v662 = vlaneseq
      %v663 = vshrl.u32 %v662, 7
      %v664 = vsub.s32 6, %v663
      %v665 = vrot.slane %v309, %v664
      %v666 = vmul.f32 %v632, %v665
      %v667 = vmul.f32 %v636, %v665
      %v668 = vmul.f32 %v640, %v665
      %v669 = vmul.f32 %v644, %v665
      %v670 = vmul.f32 %v648, %v665
      %v671 = vmul.f32 %v652, %v665
      %v672 = vmul.f32 %v656, %v665
      %v673 = vmul.f32 %v660, %v665
      %v674 = vadd.f32 %v622, %v666
      %v675 = vadd.f32 %v623, %v667
      %v676 = vadd.f32 %v624, %v668
      %v677 = vadd.f32 %v625, %v669
      %v678 = vadd.f32 %v626, %v670
      %v679 = vadd.f32 %v627, %v671
      %v680 = vadd.f32 %v628, %v672
      %v681 = vadd.f32 %v629, %v673
      %682 = vset.pattern.permute.xlu0 7
      %683 = vperm.xlu0 %682, %v301
      %v684 = vpop.permute.xlu0 %683
      %686 = vset.pattern.permute.xlu0 7
      %687 = vperm.xlu0 %686, %v302
      %v688 = vpop.permute.xlu0 %687
      %690 = vset.pattern.permute.xlu0 7
      %691 = vperm.xlu0 %690, %v303
      %v692 = vpop.permute.xlu0 %691
      %694 = vset.pattern.permute.xlu0 7
      %695 = vperm.xlu0 %694, %v304
      %v696 = vpop.permute.xlu0 %695
      %698 = vset.pattern.permute.xlu0 7
      %699 = vperm.xlu0 %698, %v305
      %v700 = vpop.permute.xlu0 %699
      %702 = vset.pattern.permute.xlu0 7
      %703 = vperm.xlu0 %702, %v306
      %v704 = vpop.permute.xlu0 %703
      %706 = vset.pattern.permute.xlu0 7
      %707 = vperm.xlu0 %706, %v307
      %v708 = vpop.permute.xlu0 %707
      %710 = vset.pattern.permute.xlu0 7
      %711 = vperm.xlu0 %710, %v308
      %v712 = vpop.permute.xlu0 %711
      %v714 = vlaneseq
      %v715 = vshrl.u32 %v714, 7
      %v716 = vsub.s32 7, %v715
      %v717 = vrot.slane %v309, %v716
      %v718 = vmul.f32 %v684, %v717
      %v719 = vmul.f32 %v688, %v717
      %v720 = vmul.f32 %v692, %v717
      %v721 = vmul.f32 %v696, %v717
      %v722 = vmul.f32 %v700, %v717
      %v723 = vmul.f32 %v704, %v717
      %v724 = vmul.f32 %v708, %v717
      %v725 = vmul.f32 %v712, %v717
      %v726 = vadd.f32 %v674, %v718
      %v727 = vadd.f32 %v675, %v719
      %v728 = vadd.f32 %v676, %v720
      %v729 = vadd.f32 %v677, %v721
      %v730 = vadd.f32 %v678, %v722
      %v731 = vadd.f32 %v679, %v723
      %v732 = vadd.f32 %v680, %v724
      %v733 = vadd.f32 %v681, %v725
      %v734 = vld [vmem:[%s2] sm:$0x1]
      %v736 = vlaneseq
      %v737 = vshrl.u32 %v736, 7
      %v738 = vsub.s32 0, %v737
      %v739 = vrot.slane %v734, %v738
      %v741 = vadd.f32 %v726, %v739
      %v742 = vadd.f32 %v727, %v739
      %v743 = vadd.f32 %v728, %v739
      %v744 = vadd.f32 %v729, %v739
      %v745 = vadd.f32 %v730, %v739
      %v746 = vadd.f32 %v731, %v739
      %v747 = vadd.f32 %v732, %v739
      %v748 = vadd.f32 %v733, %v739
      %v749 = vmax.f32 %v741, 0.0
      %v750 = vmax.f32 %v742, 0.0
      %v751 = vmax.f32 %v743, 0.0
      %v752 = vmax.f32 %v744, 0.0
      %v753 = vmax.f32 %v745, 0.0
      %v754 = vmax.f32 %v746, 0.0
      %v755 = vmax.f32 %v747, 0.0
      %v756 = vmax.f32 %v748, 0.0
      %v757 = vmin.f32 %v749, 6.0
      %v758 = vmin.f32 %v750, 6.0
      %v759 = vmin.f32 %v751, 6.0
      %v760 = vmin.f32 %v752, 6.0
      %v761 = vmin.f32 %v753, 6.0
      %v762 = vmin.f32 %v754, 6.0
      %v763 = vmin.f32 %v755, 6.0
      %v764 = vmin.f32 %v756, 6.0
      %s765 = scalar_lea.vmem [#allocation2], 16
      %766 = vst.msk [vmem:[%s765 + $0x1] sm:$0xff] %vm279, %v757
      %767 = vst.msk [vmem:[%s765 + $0x11] sm:$0xff] %vm279, %v758
      %768 = vst.msk [vmem:[%s765 + $0x21] sm:$0xff] %vm279, %v759
      %769 = vst.msk [vmem:[%s765 + $0x31] sm:$0xff] %vm279, %v760
      %770 = vst.msk [vmem:[%s765 + $0x41] sm:$0xff] %vm279, %v761
      %771 = vst.msk [vmem:[%s765 + $0x51] sm:$0xff] %vm279, %v762
      %772 = vst.msk [vmem:[%s765 + $0x61] sm:$0xff] %vm279, %v763
      %773 = vst.msk [vmem:[%s765 + $0x71] sm:$0xff] %vm279, %v764
      %v774 = vld [vmem:[%s3] sm:$0xff]
      %v775 = vld [vmem:[%s3 + $0x8] sm:$0x1]
      %v776 = vld [vmem:[#allocation2] sm:$0xff]
      %v777 = vld [vmem:[#allocation2 + $0x10] sm:$0xff]
      %v778 = vld [vmem:[#allocation2 + $0x20] sm:$0xff]
      %v779 = vld [vmem:[#allocation2 + $0x30] sm:$0xff]
      %v780 = vld [vmem:[#allocation2 + $0x40] sm:$0xff]
      %v781 = vld [vmem:[#allocation2 + $0x50] sm:$0xff]
      %v782 = vld [vmem:[#allocation2 + $0x60] sm:$0xff]
      %v783 = vld [vmem:[#allocation2 + $0x70] sm:$0xff]
      %v784 = vlaneseq
      %v785 = vshrl.u32 %v784, 7
      %v786 = vsub.s32 0, %v785
      %v787 = vrot.slane %v774, %v786
      %v788 = vmul.f32 %v776, %v787
      %v789 = vmul.f32 %v777, %v787
      %v790 = vmul.f32 %v778, %v787
      %v791 = vmul.f32 %v779, %v787
      %v792 = vmul.f32 %v780, %v787
      %v793 = vmul.f32 %v781, %v787
      %v794 = vmul.f32 %v782, %v787
      %v795 = vmul.f32 %v783, %v787
      %v796 = vadd.f32 %v788, 0.0
      %v797 = vadd.f32 %v789, 0.0
      %v798 = vadd.f32 %v790, 0.0
      %v799 = vadd.f32 %v791, 0.0
      %v800 = vadd.f32 %v792, 0.0
      %v801 = vadd.f32 %v793, 0.0
      %v802 = vadd.f32 %v794, 0.0
      %v803 = vadd.f32 %v795, 0.0
      %v804 = vld [vmem:[#allocation2 + $0x1] sm:$0xff]
      %v805 = vld [vmem:[#allocation2 + $0x11] sm:$0xff]
      %v806 = vld [vmem:[#allocation2 + $0x21] sm:$0xff]
      %v807 = vld [vmem:[#allocation2 + $0x31] sm:$0xff]
      %v808 = vld [vmem:[#allocation2 + $0x41] sm:$0xff]
      %v809 = vld [vmem:[#allocation2 + $0x51] sm:$0xff]
      %v810 = vld [vmem:[#allocation2 + $0x61] sm:$0xff]
      %v811 = vld [vmem:[#allocation2 + $0x71] sm:$0xff]
      %v812 = vlaneseq
      %v813 = vshrl.u32 %v812, 7
      %v814 = vsub.s32 1, %v813
      %v815 = vrot.slane %v774, %v814
      %v816 = vmul.f32 %v804, %v815
      %v817 = vmul.f32 %v805, %v815
      %v818 = vmul.f32 %v806, %v815
      %v819 = vmul.f32 %v807, %v815
      %v820 = vmul.f32 %v808, %v815
      %v821 = vmul.f32 %v809, %v815
      %v822 = vmul.f32 %v810, %v815
      %v823 = vmul.f32 %v811, %v815
      %v824 = vadd.f32 %v796, %v816
      %v825 = vadd.f32 %v797, %v817
      %v826 = vadd.f32 %v798, %v818
      %v827 = vadd.f32 %v799, %v819
      %v828 = vadd.f32 %v800, %v820
      %v829 = vadd.f32 %v801, %v821
      %v830 = vadd.f32 %v802, %v822
      %v831 = vadd.f32 %v803, %v823
      %v832 = vld [vmem:[#allocation2 + $0x2] sm:$0xff]
      %v833 = vld [vmem:[#allocation2 + $0x12] sm:$0xff]
      %v834 = vld [vmem:[#allocation2 + $0x22] sm:$0xff]
      %v835 = vld [vmem:[#allocation2 + $0x32] sm:$0xff]
      %v836 = vld [vmem:[#allocation2 + $0x42] sm:$0xff]
      %v837 = vld [vmem:[#allocation2 + $0x52] sm:$0xff]
      %v838 = vld [vmem:[#allocation2 + $0x62] sm:$0xff]
      %v839 = vld [vmem:[#allocation2 + $0x72] sm:$0xff]
      %v840 = vlaneseq
      %v841 = vshrl.u32 %v840, 7
      %v842 = vsub.s32 2, %v841
      %v843 = vrot.slane %v774, %v842
      %v844 = vmul.f32 %v832, %v843
      %v845 = vmul.f32 %v833, %v843
      %v846 = vmul.f32 %v834, %v843
      %v847 = vmul.f32 %v835, %v843
      %v848 = vmul.f32 %v836, %v843
      %v849 = vmul.f32 %v837, %v843
      %v850 = vmul.f32 %v838, %v843
      %v851 = vmul.f32 %v839, %v843
      %v852 = vadd.f32 %v824, %v844
      %v853 = vadd.f32 %v825, %v845
      %v854 = vadd.f32 %v826, %v846
      %v855 = vadd.f32 %v827, %v847
      %v856 = vadd.f32 %v828, %v848
      %v857 = vadd.f32 %v829, %v849
      %v858 = vadd.f32 %v830, %v850
      %v859 = vadd.f32 %v831, %v851
      %v860 = vld [vmem:[%s765] sm:$0xff]
      %v861 = vld [vmem:[%s765 + $0x10] sm:$0xff]
      %v862 = vld [vmem:[%s765 + $0x20] sm:$0xff]
      %v863 = vld [vmem:[%s765 + $0x30] sm:$0xff]
      %v864 = vld [vmem:[%s765 + $0x40] sm:$0xff]
      %v865 = vld [vmem:[%s765 + $0x50] sm:$0xff]
      %v866 = vld [vmem:[%s765 + $0x60] sm:$0xff]
      %v867 = vld [vmem:[%s765 + $0x70] sm:$0xff]
      %v868 = vlaneseq
      %v869 = vshrl.u32 %v868, 7
      %v870 = vsub.s32 3, %v869
      %v871 = vrot.slane %v774, %v870
      %v872 = vmul.f32 %v860, %v871
      %v873 = vmul.f32 %v861, %v871
      %v874 = vmul.f32 %v862, %v871
      %v875 = vmul.f32 %v863, %v871
      %v876 = vmul.f32 %v864, %v871
      %v877 = vmul.f32 %v865, %v871
      %v878 = vmul.f32 %v866, %v871
      %v879 = vmul.f32 %v867, %v871
      %v880 = vadd.f32 %v852, %v872
      %v881 = vadd.f32 %v853, %v873
      %v882 = vadd.f32 %v854, %v874
      %v883 = vadd.f32 %v855, %v875
      %v884 = vadd.f32 %v856, %v876
      %v885 = vadd.f32 %v857, %v877
      %v886 = vadd.f32 %v858, %v878
      %v887 = vadd.f32 %v859, %v879
      %v888 = vld [vmem:[%s765 + $0x1] sm:$0xff]
      %v889 = vld [vmem:[%s765 + $0x11] sm:$0xff]
      %v890 = vld [vmem:[%s765 + $0x21] sm:$0xff]
      %v891 = vld [vmem:[%s765 + $0x31] sm:$0xff]
      %v892 = vld [vmem:[%s765 + $0x41] sm:$0xff]
      %v893 = vld [vmem:[%s765 + $0x51] sm:$0xff]
      %v894 = vld [vmem:[%s765 + $0x61] sm:$0xff]
      %v895 = vld [vmem:[%s765 + $0x71] sm:$0xff]
      %v896 = vlaneseq
      %v897 = vshrl.u32 %v896, 7
      %v898 = vsub.s32 4, %v897
      %v899 = vrot.slane %v774, %v898
      %v900 = vmul.f32 %v888, %v899
      %v901 = vmul.f32 %v889, %v899
      %v902 = vmul.f32 %v890, %v899
      %v903 = vmul.f32 %v891, %v899
      %v904 = vmul.f32 %v892, %v899
      %v905 = vmul.f32 %v893, %v899
      %v906 = vmul.f32 %v894, %v899
      %v907 = vmul.f32 %v895, %v899
      %v908 = vadd.f32 %v880, %v900
      %v909 = vadd.f32 %v881, %v901
      %v910 = vadd.f32 %v882, %v902
      %v911 = vadd.f32 %v883, %v903
      %v912 = vadd.f32 %v884, %v904
      %v913 = vadd.f32 %v885, %v905
      %v914 = vadd.f32 %v886, %v906
      %v915 = vadd.f32 %v887, %v907
      %v916 = vld [vmem:[%s765 + $0x2] sm:$0xff]
      %v917 = vld [vmem:[%s765 + $0x12] sm:$0xff]
      %v918 = vld [vmem:[%s765 + $0x22] sm:$0xff]
      %v919 = vld [vmem:[%s765 + $0x32] sm:$0xff]
      %v920 = vld [vmem:[%s765 + $0x42] sm:$0xff]
      %v921 = vld [vmem:[%s765 + $0x52] sm:$0xff]
      %v922 = vld [vmem:[%s765 + $0x62] sm:$0xff]
      %v923 = vld [vmem:[%s765 + $0x72] sm:$0xff]
      %v924 = vlaneseq
      %v925 = vshrl.u32 %v924, 7
      %v926 = vsub.s32 5, %v925
      %v927 = vrot.slane %v774, %v926
      %v928 = vmul.f32 %v916, %v927
      %v929 = vmul.f32 %v917, %v927
      %v930 = vmul.f32 %v918, %v927
      %v931 = vmul.f32 %v919, %v927
      %v932 = vmul.f32 %v920, %v927
      %v933 = vmul.f32 %v921, %v927
      %v934 = vmul.f32 %v922, %v927
      %v935 = vmul.f32 %v923, %v927
      %v936 = vadd.f32 %v908, %v928
      %v937 = vadd.f32 %v909, %v929
      %v938 = vadd.f32 %v910, %v930
      %v939 = vadd.f32 %v911, %v931
      %v940 = vadd.f32 %v912, %v932
      %v941 = vadd.f32 %v913, %v933
      %v942 = vadd.f32 %v914, %v934
      %v943 = vadd.f32 %v915, %v935
      %s944 = scalar_lea.vmem [#allocation2], 32
      %v945 = vld [vmem:[%s944] sm:$0xff]
      %v946 = vld [vmem:[%s944 + $0x10] sm:$0xff]
      %v947 = vld [vmem:[%s944 + $0x20] sm:$0xff]
      %v948 = vld [vmem:[%s944 + $0x30] sm:$0xff]
      %v949 = vld [vmem:[%s944 + $0x40] sm:$0xff]
      %v950 = vld [vmem:[%s944 + $0x50] sm:$0xff]
      %v951 = vld [vmem:[%s944 + $0x60] sm:$0xff]
      %v952 = vld [vmem:[%s944 + $0x70] sm:$0xff]
      %v953 = vlaneseq
      %v954 = vshrl.u32 %v953, 7
      %v955 = vsub.s32 6, %v954
      %v956 = vrot.slane %v774, %v955
      %v957 = vmul.f32 %v945, %v956
      %v958 = vmul.f32 %v946, %v956
      %v959 = vmul.f32 %v947, %v956
      %v960 = vmul.f32 %v948, %v956
      %v961 = vmul.f32 %v949, %v956
      %v962 = vmul.f32 %v950, %v956
      %v963 = vmul.f32 %v951, %v956
      %v964 = vmul.f32 %v952, %v956
      %v965 = vadd.f32 %v936, %v957
      %v966 = vadd.f32 %v937, %v958
      %v967 = vadd.f32 %v938, %v959
      %v968 = vadd.f32 %v939, %v960
      %v969 = vadd.f32 %v940, %v961
      %v970 = vadd.f32 %v941, %v962
      %v971 = vadd.f32 %v942, %v963
      %v972 = vadd.f32 %v943, %v964
      %v973 = vld [vmem:[%s944 + $0x1] sm:$0xff]
      %v974 = vld [vmem:[%s944 + $0x11] sm:$0xff]
      %v975 = vld [vmem:[%s944 + $0x21] sm:$0xff]
      %v976 = vld [vmem:[%s944 + $0x31] sm:$0xff]
      %v977 = vld [vmem:[%s944 + $0x41] sm:$0xff]
      %v978 = vld [vmem:[%s944 + $0x51] sm:$0xff]
      %v979 = vld [vmem:[%s944 + $0x61] sm:$0xff]
      %v980 = vld [vmem:[%s944 + $0x71] sm:$0xff]
      %v981 = vlaneseq
      %v982 = vshrl.u32 %v981, 7
      %v983 = vsub.s32 7, %v982
      %v984 = vrot.slane %v774, %v983
      %v985 = vmul.f32 %v973, %v984
      %v986 = vmul.f32 %v974, %v984
      %v987 = vmul.f32 %v975, %v984
      %v988 = vmul.f32 %v976, %v984
      %v989 = vmul.f32 %v977, %v984
      %v990 = vmul.f32 %v978, %v984
      %v991 = vmul.f32 %v979, %v984
      %v992 = vmul.f32 %v980, %v984
      %v993 = vadd.f32 %v965, %v985
      %v994 = vadd.f32 %v966, %v986
      %v995 = vadd.f32 %v967, %v987
      %v996 = vadd.f32 %v968, %v988
      %v997 = vadd.f32 %v969, %v989
      %v998 = vadd.f32 %v970, %v990
      %v999 = vadd.f32 %v971, %v991
      %v1000 = vadd.f32 %v972, %v992
      %v1001 = vld [vmem:[%s944 + $0x2] sm:$0xff]
      %v1002 = vld [vmem:[%s944 + $0x12] sm:$0xff]
      %v1003 = vld [vmem:[%s944 + $0x22] sm:$0xff]
      %v1004 = vld [vmem:[%s944 + $0x32] sm:$0xff]
      %v1005 = vld [vmem:[%s944 + $0x42] sm:$0xff]
      %v1006 = vld [vmem:[%s944 + $0x52] sm:$0xff]
      %v1007 = vld [vmem:[%s944 + $0x62] sm:$0xff]
      %v1008 = vld [vmem:[%s944 + $0x72] sm:$0xff]
      %v1009 = vlaneseq
      %v1010 = vshrl.u32 %v1009, 7
      %v1011 = vsub.s32 0, %v1010
      %v1012 = vrot.slane %v775, %v1011
      %v1013 = vmul.f32 %v1001, %v1012
      %v1014 = vmul.f32 %v1002, %v1012
      %v1015 = vmul.f32 %v1003, %v1012
      %v1016 = vmul.f32 %v1004, %v1012
      %v1017 = vmul.f32 %v1005, %v1012
      %v1018 = vmul.f32 %v1006, %v1012
      %v1019 = vmul.f32 %v1007, %v1012
      %v1020 = vmul.f32 %v1008, %v1012
      %v1021 = vadd.f32 %v993, %v1013
      %v1022 = vadd.f32 %v994, %v1014
      %v1023 = vadd.f32 %v995, %v1015
      %v1024 = vadd.f32 %v996, %v1016
      %v1025 = vadd.f32 %v997, %v1017
      %v1026 = vadd.f32 %v998, %v1018
      %v1027 = vadd.f32 %v999, %v1019
      %v1028 = vadd.f32 %v1000, %v1020
      %v1029 = vld [vmem:[%s4] sm:$0x1]
      %v1031 = vlaneseq
      %v1032 = vshrl.u32 %v1031, 7
      %v1033 = vsub.s32 0, %v1032
      %v1034 = vrot.slane %v1029, %v1033
      %v1036 = vadd.f32 %v1021, %v1034
      %v1037 = vadd.f32 %v1022, %v1034
      %v1038 = vadd.f32 %v1023, %v1034
      %v1039 = vadd.f32 %v1024, %v1034
      %v1040 = vadd.f32 %v1025, %v1034
      %v1041 = vadd.f32 %v1026, %v1034
      %v1042 = vadd.f32 %v1027, %v1034
      %v1043 = vadd.f32 %v1028, %v1034
      %v1044 = vmax.f32 %v1036, 0.0
      %v1045 = vmax.f32 %v1037, 0.0
      %v1046 = vmax.f32 %v1038, 0.0
      %v1047 = vmax.f32 %v1039, 0.0
      %v1048 = vmax.f32 %v1040, 0.0
      %v1049 = vmax.f32 %v1041, 0.0
      %v1050 = vmax.f32 %v1042, 0.0
      %v1051 = vmax.f32 %v1043, 0.0
      %v1052 = vmin.f32 %v1044, 6.0
      %v1053 = vmin.f32 %v1045, 6.0
      %v1054 = vmin.f32 %v1046, 6.0
      %v1055 = vmin.f32 %v1047, 6.0
      %v1056 = vmin.f32 %v1048, 6.0
      %v1057 = vmin.f32 %v1049, 6.0
      %v1058 = vmin.f32 %v1050, 6.0
      %v1059 = vmin.f32 %v1051, 6.0
      %v1060 = vld [vmem:[%s5] sm:$0xff]
      %v1061 = vld [vmem:[%s5 + $0x8] sm:$0xff]
      %v1062 = vld [vmem:[%s5 + $0x10] sm:$0xff]
      %v1063 = vld [vmem:[%s5 + $0x18] sm:$0xff]
      %v1064 = vld [vmem:[%s5 + $0x20] sm:$0xff]
      %v1065 = vld [vmem:[%s5 + $0x28] sm:$0xff]
      %v1066 = vld [vmem:[%s6] sm:$0x1]
      %v1068 = vlaneseq
      %v1069 = vshrl.u32 %v1068, 7
      %v1070 = vsub.s32 0, %v1069
      %v1071 = vrot.slane %v1066, %v1070
      %v1074 = vsel %vm279, %v1052, 0
      %v1077 = vsel %vm279, %v1053, 0
      %v1080 = vsel %vm279, %v1054, 0
      %v1083 = vsel %vm279, %v1055, 0
      %v1086 = vsel %vm279, %v1056, 0
      %v1089 = vsel %vm279, %v1057, 0
      %v1092 = vsel %vm279, %v1058, 0
      %v1095 = vsel %vm279, %v1059, 0
      %1097 = vmatprep.subr.mxu0 0.0
      %1098 = vmatpush1.msra.mxu0 0.0
      %1099 = vmatprep.subr.mxu0 0.0
      %1100 = vmatpush1.msra.mxu0 0.0
      %1101 = vmatprep.subr.mxu0 0.0
      %1102 = vmatpush1.msra.mxu0 0.0
      %1103 = vmatprep.subr.mxu0 0.0
      %1104 = vmatpush1.msra.mxu0 0.0
      %1105 = vmatprep.subr.mxu0 0.0
      %1106 = vmatpush1.msra.mxu0 0.0
      %1107 = vmatprep.subr.mxu0 0.0
      %1108 = vmatpush1.msra.mxu0 0.0
      %1109 = vmatprep.subr.mxu0 0.0
      %1110 = vmatpush1.msra.mxu0 0.0
      %1111 = vmatprep.subr.mxu0 0.0
      %1112 = vmatpush1.msra.mxu0 0.0
      %1113 = vmatprep.subr.mxu0 0.0
      %1114 = vmatpush1.msra.mxu0 0.0
      %1115 = vmatprep.subr.mxu0 0.0
      %1116 = vmatpush1.msra.mxu0 0.0
      %1117 = vmatprep.subr.mxu0 0.0
      %1118 = vmatpush1.msra.mxu0 %v1065
      %1119 = vmatprep.subr.mxu0 0.0
      %1120 = vmatpush1.msra.mxu0 %v1064
      %1121 = vmatprep.subr.mxu0 0.0
      %1122 = vmatpush1.msra.mxu0 %v1063
      %1123 = vmatprep.subr.mxu0 0.0
      %1124 = vmatpush1.msra.mxu0 %v1062
      %1125 = vmatprep.subr.mxu0 0.0
      %1126 = vmatpush1.msra.mxu0 %v1061
      %1127 = vmatprep.subr.mxu0 0.0
      %1128 = vmatpush1.msra.mxu0 %v1060
      %1129 = vmatprep.subr.mxu0 0.0
      %1130 = vmatpush2.msra.mxu0 0.0
      %1131 = vmatprep.subr.mxu0 0.0
      %1132 = vmatpush2.msra.mxu0 0.0
      %1133 = vmatprep.subr.mxu0 0.0
      %1134 = vmatpush2.msra.mxu0 0.0
      %1135 = vmatprep.subr.mxu0 0.0
      %1136 = vmatpush2.msra.mxu0 0.0
      %1137 = vmatprep.subr.mxu0 0.0
      %1138 = vmatpush2.msra.mxu0 0.0
      %1139 = vmatprep.subr.mxu0 0.0
      %1140 = vmatpush2.msra.mxu0 0.0
      %1141 = vmatprep.subr.mxu0 0.0
      %1142 = vmatpush2.msra.mxu0 0.0
      %1143 = vmatprep.subr.mxu0 0.0
      %1144 = vmatpush2.msra.mxu0 0.0
      %1145 = vmatprep.subr.mxu0 0.0
      %1146 = vmatpush2.msra.mxu0 0.0
      %1147 = vmatprep.subr.mxu0 0.0
      %1148 = vmatpush2.msra.mxu0 0.0
      %1149 = vmatprep.subr.mxu0 0.0
      %1150 = vmatpush2.msra.mxu0 0.0
      %1151 = vmatprep.subr.mxu0 0.0
      %1152 = vmatpush2.msra.mxu0 0.0
      %1153 = vmatprep.subr.mxu0 0.0
      %1154 = vmatpush2.msra.mxu0 0.0
      %1155 = vmatprep.subr.mxu0 0.0
      %1156 = vmatpush2.msra.mxu0 0.0
      %1157 = vmatprep.subr.mxu0 0.0
      %1158 = vmatpush2.msra.mxu0 0.0
      %1159 = vmatprep.subr.mxu0 0.0
      %1160 = vmatpush2.msra.mxu0 0.0
      %1161 = vmatprep.mubr.f32.mxu0 0.0
      %1162 = vmatmul.mubr.f32.gmra.mxu0 %v1074
      %v1163 = vpop.f32.mrf.mxu0
      %v1164 = vadd.f32 %v1071, %v1163
      %v1165 = vpop.f32.mrf.mxu0
      %1166 = vmatprep.mubr.f32.mxu0 0.0
      %1167 = vmatmul.mubr.f32.gmra.mxu0 %v1077
      %v1168 = vpop.f32.mrf.mxu0
      %v1169 = vadd.f32 %v1071, %v1168
      %v1170 = vpop.f32.mrf.mxu0
      %1171 = vmatprep.mubr.f32.mxu0 0.0
      %1172 = vmatmul.mubr.f32.gmra.mxu0 %v1080
      %v1173 = vpop.f32.mrf.mxu0
      %v1174 = vadd.f32 %v1071, %v1173
      %v1175 = vpop.f32.mrf.mxu0
      %1176 = vmatprep.mubr.f32.mxu0 0.0
      %1177 = vmatmul.mubr.f32.gmra.mxu0 %v1083
      %v1178 = vpop.f32.mrf.mxu0
      %v1179 = vadd.f32 %v1071, %v1178
      %v1180 = vpop.f32.mrf.mxu0
      %1181 = vmatprep.mubr.f32.mxu0 0.0
      %1182 = vmatmul.mubr.f32.gmra.mxu0 %v1086
      %v1183 = vpop.f32.mrf.mxu0
      %v1184 = vadd.f32 %v1071, %v1183
      %v1185 = vpop.f32.mrf.mxu0
      %1186 = vmatprep.mubr.f32.mxu0 0.0
      %1187 = vmatmul.mubr.f32.gmra.mxu0 %v1089
      %v1188 = vpop.f32.mrf.mxu0
      %v1189 = vadd.f32 %v1071, %v1188
      %v1190 = vpop.f32.mrf.mxu0
      %1191 = vmatprep.mubr.f32.mxu0 0.0
      %1192 = vmatmul.mubr.f32.gmra.mxu0 %v1092
      %v1193 = vpop.f32.mrf.mxu0
      %v1194 = vadd.f32 %v1071, %v1193
      %v1195 = vpop.f32.mrf.mxu0
      %1196 = vmatprep.mubr.f32.mxu0 0.0
      %1197 = vmatmul.mubr.f32.gmra.mxu0 %v1095
      %v1198 = vpop.f32.mrf.mxu0
      %v1199 = vadd.f32 %v1071, %v1198
      %v1200 = vpop.f32.mrf.mxu0
      %1201 = vdwg.mxu0
      %v1202 = vadd.f32 %v1164, %v301
      %v1203 = vadd.f32 %v1169, %v302
      %v1204 = vadd.f32 %v1174, %v303
      %v1205 = vadd.f32 %v1179, %v304
      %v1206 = vadd.f32 %v1184, %v305
      %v1207 = vadd.f32 %v1189, %v306
      %v1208 = vadd.f32 %v1194, %v307
      %v1209 = vadd.f32 %v1199, %v308
      %vm1210 = vcmask 64512
      %1211 = vst.msk [vmem:[%s278] sm:$0xff] %vm1210, %v1202
      %1212 = vst.msk [vmem:[%s278 + $0x8] sm:$0xff] %vm1210, %v1203
      %1213 = vst.msk [vmem:[%s278 + $0x10] sm:$0xff] %vm1210, %v1204
      %1214 = vst.msk [vmem:[%s278 + $0x18] sm:$0xff] %vm1210, %v1205
      %1215 = vst.msk [vmem:[%s278 + $0x20] sm:$0xff] %vm1210, %v1206
      %1216 = vst.msk [vmem:[%s278 + $0x28] sm:$0xff] %vm1210, %v1207
      %1217 = vst.msk [vmem:[%s278 + $0x30] sm:$0xff] %vm1210, %v1208
      %1218 = vst.msk [vmem:[%s278 + $0x38] sm:$0xff] %vm1210, %v1209
      %p1219 = scmp.lt.s32.totalorder %s18, 1
      %s1220 = scalar_select %p1219, %s18, 1
      %s1221 = smul.addr %s1220, 8
      %s1222 = smul.addr %s1221, 8
      %s1223 = scalar_lea.vmem %s7, %s1222
      // Predicated region
      $region49: #{forward.3} parent=47 // pred_check
        %p1224 = pneg %p188
      $region50: #{forward.3} parent=47 // pred_check_branch
        %1226 = sbr.rel (%p1224) target = $region52
      $region51: #{forward.3} parent=47 // pred_region
        _
      $region52: #{forward.3} parent=47 // pred_fallthru
        _
    $region48: #{forward.3} parent=5 // pred_fallthru
      _
    %p1227 = scmp.le.s32.totalorder 2, %s13
    // Predicated region
    $region53: #{forward.3} parent=5 // pred_check
      %p1228 = pneg %p1227
    $region54: #{forward.3} parent=5 // pred_check_branch
      %1230 = sbr.rel (%p1228) target = $region56
    $region55: #{forward.3} parent=5 // pred_region
      %s1231 = ssub.s32 %s13, 2
      // Predicated region
      $region57: #{forward.3} parent=55 // pred_check
        %p1232 = pneg %p194
      $region58: #{forward.3} parent=55 // pred_check_branch
        %1234 = sbr.rel (%p1232) target = $region60
      $region59: #{forward.3} parent=55 // pred_region
        %p1235 = scmp.lt.s32.totalorder %s19, 1
        %s1236 = scalar_select %p1235, %s19, 1
        %s1237 = smul.addr %s1236, 8
        %s1238 = smul.addr %s1237, 8
        %s1239 = scalar_lea.vmem %s7, %s1238
      $region60: #{forward.3} parent=55 // pred_fallthru
        _
    $region56: #{forward.3} parent=5 // pred_fallthru
      _
  $region6: #{forward.3} parent=0 // loop_footer
    %s17 = sadd.s32 1, %s13
  $region7: #{forward.3} parent=0 // loop_footer_branch
    %12 = sbr.rel target = $region3
  $region8: #{forward.3} parent=0 // loop_exit
    _

// kernel: forward.2
$region0: #{forward.2}
  #allocation0 [shape = 'u32[]', space=smem, size = 0x4, offset = 0x4, fixed_abs, tag = 'smem constant byte address 0x4 - core index']
  #allocation1 [shape = 'u32[144,128]{1,0:T(1,128)}', space=vmem, size = 0x12000, scoped, tag = 'internal scratch']
  #allocation2 [shape = 'f32[4,9,9,24]{3,2,1,0:T(8,128)}', space=vmem, size = 0x48000, scoped, tag = 'scratch operand']
  %s0 = inlined_call_operand.vmem [shape: f32[2,4,8,8,4], index: 0, kind: input, shape index: {}]
  %s1 = inlined_call_operand.vmem [shape: f32[4,24], index: 1, kind: input, shape index: {}]
  %s2 = inlined_call_operand.vmem [shape: f32[1,24], index: 2, kind: input, shape index: {}]
  %s3 = inlined_call_operand.vmem [shape: f32[9,24], index: 3, kind: input, shape index: {}]
  %s4 = inlined_call_operand.vmem [shape: f32[1,24], index: 4, kind: input, shape index: {}]
  %s5 = inlined_call_operand.vmem [shape: f32[24,8], index: 5, kind: input, shape index: {}]
  %s6 = inlined_call_operand.vmem [shape: f32[1,8], index: 6, kind: input, shape index: {}]
  %s7 = inlined_call_operand.vmem [shape: f32[2,8,8,8], index: 7, kind: output, shape index: {}]
  %s8 = sld [smem:[#allocation0]]
  $region61: #{forward.2} parent=0
    _
  %s10 = ssub.s32 1, %s8
  %s11 = scalar_select 0, %s10, %s8
  loop: start=0, step=1, limit=4
  $region2: #{forward.2} parent=0 // loop_pre_header
    _
  $region3: #{forward.2} parent=0 // loop_header
    %s13 = sphi 0, %s17
    %p14 = scmp.ge.s32.totalorder %s13, 4
    %s23 = sphi 0, %s25
    %s26 = sphi 0, %s23
    %s27 = sphi 0, %s26
    %s43 = sphi 0, %s27
    %s47 = sphi 0, %s47
    %s49 = sphi 0, %s47
    %s50 = sphi 0, %s49
    %s64 = sphi 0, %s50
    %s68 = sphi 0, %s68
    %s70 = sphi 0, %s68
    %s71 = sphi 0, %s70
    %s85 = sphi 0, %s71
    %s89 = sphi 0, %s89
    %s91 = sphi 0, %s89
    %s92 = sphi 0, %s91
    %s106 = sphi 0, %s92
    %s110 = sphi 0, %s110
    %s112 = sphi 0, %s110
    %s113 = sphi 0, %s112
    %s127 = sphi 0, %s113
    %s131 = sphi 0, %s131
    %s133 = sphi 0, %s131
    %s134 = sphi 0, %s133
    %s148 = sphi 0, %s134
    %s152 = sphi 0, %s152
    %s154 = sphi 0, %s152
    %s155 = sphi 0, %s154
    %s169 = sphi 0, %s155
    %s175 = sphi 0, %s177
    %s178 = sphi 0, %s175
    %s179 = sphi 0, %s178
    %s195 = sphi 0, %s179
  $region4: #{forward.2} parent=0 // loop_header_branch
    %16 = sbr.rel (%p14) target = $region8
  $region5: #{forward.2} parent=0 // loop_body
    %s18 = ssub.s32 %s13, 1
    %s19 = ssub.s32 %s13, 2
    %s20 = sadd.s32 %s13, 1
    %s21 = ssub.s32 %s13, %s20
    %p22 = scmp.eq.s32.totalorder %s21, 0
    %s24 = sadd.s32 %s23, 1
    %s25 = scalar_select %p22, %s23, %s24
    %p28 = pneg %p22
    %p29 = scmp.eq.s32.totalorder %s13, 1
    %p30 = por %p28, %p29
    %p31 = scmp.ne.s32.totalorder %s23, %s26
    %p32 = scmp.eq.s32.totalorder %s13, 0
    %p33 = por %p31, %p32
    %p34 = scmp.ne.s32.totalorder %s23, %s26
    %p35 = scmp.eq.s32.totalorder %s18, 1
    %p36 = por %p34, %p35
    %p37 = scmp.ne.s32.totalorder %s26, %s27
    %p38 = scmp.eq.s32.totalorder %s18, 0
    %p39 = por %p37, %p38
    %p40 = scmp.ne.s32.totalorder %s26, %s27
    %p41 = scmp.eq.s32.totalorder %s19, 1
    %p42 = por %p40, %p41
    %p44 = scmp.ne.s32.totalorder %s27, %s43
    %p45 = scmp.eq.s32.totalorder %s19, 0
    %p46 = por %p44, %p45
    %s48 = sadd.s32 %s47, 1
    %p51 = scmp.eq.s32.totalorder %s13, 1
    %p52 = scmp.ne.s32.totalorder %s47, %s49
    %p53 = scmp.eq.s32.totalorder %s13, 0
    %p54 = por %p52, %p53
    %p55 = scmp.ne.s32.totalorder %s47, %s49
    %p56 = scmp.eq.s32.totalorder %s18, 1
    %p57 = por %p55, %p56
    %p58 = scmp.ne.s32.totalorder %s49, %s50
    %p59 = scmp.eq.s32.totalorder %s18, 0
    %p60 = por %p58, %p59
    %p61 = scmp.ne.s32.totalorder %s49, %s50
    %p62 = scmp.eq.s32.totalorder %s19, 1
    %p63 = por %p61, %p62
    %p65 = scmp.ne.s32.totalorder %s50, %s64
    %p66 = scmp.eq.s32.totalorder %s19, 0
    %p67 = por %p65, %p66
    %s69 = sadd.s32 %s68, 1
    %p72 = scmp.eq.s32.totalorder %s13, 1
    %p73 = scmp.ne.s32.totalorder %s68, %s70
    %p74 = scmp.eq.s32.totalorder %s13, 0
    %p75 = por %p73, %p74
    %p76 = scmp.ne.s32.totalorder %s68, %s70
    %p77 = scmp.eq.s32.totalorder %s18, 1
    %p78 = por %p76, %p77
    %p79 = scmp.ne.s32.totalorder %s70, %s71
    %p80 = scmp.eq.s32.totalorder %s18, 0
    %p81 = por %p79, %p80
    %p82 = scmp.ne.s32.totalorder %s70, %s71
    %p83 = scmp.eq.s32.totalorder %s19, 1
    %p84 = por %p82, %p83
    %p86 = scmp.ne.s32.totalorder %s71, %s85
    %p87 = scmp.eq.s32.totalorder %s19, 0
    %p88 = por %p86, %p87
    %s90 = sadd.s32 %s89, 1
    %p93 = scmp.eq.s32.totalorder %s13, 1
    %p94 = scmp.ne.s32.totalorder %s89, %s91
    %p95 = scmp.eq.s32.totalorder %s13, 0
    %p96 = por %p94, %p95
    %p97 = scmp.ne.s32.totalorder %s89, %s91
    %p98 = scmp.eq.s32.totalorder %s18, 1
    %p99 = por %p97, %p98
    %p100 = scmp.ne.s32.totalorder %s91, %s92
    %p101 = scmp.eq.s32.totalorder %s18, 0
    %p102 = por %p100, %p101
    %p103 = scmp.ne.s32.totalorder %s91, %s92
    %p104 = scmp.eq.s32.totalorder %s19, 1
    %p105 = por %p103, %p104
    %p107 = scmp.ne.s32.totalorder %s92, %s106
    %p108 = scmp.eq.s32.totalorder %s19, 0
    %p109 = por %p107, %p108
    %s111 = sadd.s32 %s110, 1
    %p114 = scmp.eq.s32.totalorder %s13, 1
    %p115 = scmp.ne.s32.totalorder %s110, %s112
    %p116 = scmp.eq.s32.totalorder %s13, 0
    %p117 = por %p115, %p116
    %p118 = scmp.ne.s32.totalorder %s110, %s112
    %p119 = scmp.eq.s32.totalorder %s18, 1
    %p120 = por %p118, %p119
    %p121 = scmp.ne.s32.totalorder %s112, %s113
    %p122 = scmp.eq.s32.totalorder %s18, 0
    %p123 = por %p121, %p122
    %p124 = scmp.ne.s32.totalorder %s112, %s113
    %p125 = scmp.eq.s32.totalorder %s19, 1
    %p126 = por %p124, %p125
    %p128 = scmp.ne.s32.totalorder %s113, %s127
    %p129 = scmp.eq.s32.totalorder %s19, 0
    %p130 = por %p128, %p129
    %s132 = sadd.s32 %s131, 1
    %p135 = scmp.eq.s32.totalorder %s13, 1
    %p136 = scmp.ne.s32.totalorder %s131, %s133
    %p137 = scmp.eq.s32.totalorder %s13, 0
    %p138 = por %p136, %p137
    %p139 = scmp.ne.s32.totalorder %s131, %s133
    %p140 = scmp.eq.s32.totalorder %s18, 1
    %p141 = por %p139, %p140
    %p142 = scmp.ne.s32.totalorder %s133, %s134
    %p143 = scmp.eq.s32.totalorder %s18, 0
    %p144 = por %p142, %p143
    %p145 = scmp.ne.s32.totalorder %s133, %s134
    %p146 = scmp.eq.s32.totalorder %s19, 1
    %p147 = por %p145, %p146
    %p149 = scmp.ne.s32.totalorder %s134, %s148
    %p150 = scmp.eq.s32.totalorder %s19, 0
    %p151 = por %p149, %p150
    %s153 = sadd.s32 %s152, 1
    %p156 = scmp.eq.s32.totalorder %s13, 1
    %p157 = scmp.ne.s32.totalorder %s152, %s154
    %p158 = scmp.eq.s32.totalorder %s13, 0
    %p159 = por %p157, %p158
    %p160 = scmp.ne.s32.totalorder %s152, %s154
    %p161 = scmp.eq.s32.totalorder %s18, 1
    %p162 = por %p160, %p161
    %p163 = scmp.ne.s32.totalorder %s154, %s155
    %p164 = scmp.eq.s32.totalorder %s18, 0
    %p165 = por %p163, %p164
    %p166 = scmp.ne.s32.totalorder %s154, %s155
    %p167 = scmp.eq.s32.totalorder %s19, 1
    %p168 = por %p166, %p167
    %p170 = scmp.ne.s32.totalorder %s155, %s169
    %p171 = scmp.eq.s32.totalorder %s19, 0
    %p172 = por %p170, %p171
    %s173 = ssub.s32 %s13, %s20
    %p174 = scmp.eq.s32.totalorder %s173, 0
    %s176 = sadd.s32 %s175, 1
    %s177 = scalar_select %p174, %s175, %s176
    %p180 = pneg %p174
    %p181 = scmp.eq.s32.totalorder %s13, 1
    %p182 = por %p180, %p181
    %p183 = scmp.ne.s32.totalorder %s175, %s178
    %p184 = scmp.eq.s32.totalorder %s13, 0
    %p185 = por %p183, %p184
    %p186 = scmp.ne.s32.totalorder %s175, %s178
    %p187 = scmp.eq.s32.totalorder %s18, 1
    %p188 = por %p186, %p187
    %p189 = scmp.ne.s32.totalorder %s178, %s179
    %p190 = scmp.eq.s32.totalorder %s18, 0
    %p191 = por %p189, %p190
    %p192 = scmp.ne.s32.totalorder %s178, %s179
    %p193 = scmp.eq.s32.totalorder %s19, 1
    %p194 = por %p192, %p193
    %p196 = scmp.ne.s32.totalorder %s179, %s195
    %p197 = scmp.eq.s32.totalorder %s19, 0
    %p198 = por %p196, %p197
    %p199 = scmp.le.s32.totalorder 1, %s13
    %p200 = scmp.lt.s32.totalorder %s13, 3
    %p201 = pnand %p199, %p200
    %p202 = pneg %p201
    // Predicated region
    $region9: #{forward.2} parent=5 // pred_check
      _
    $region10: #{forward.2} parent=5 // pred_check_branch
      %204 = sbr.rel (%p201) target = $region12
    $region11: #{forward.2} parent=5 // pred_region
      %s205 = ssub.s32 %s13, 1
      // Predicated region
      $region13: #{forward.2} parent=11 // pred_check
        %p206 = pneg %p60
      $region14: #{forward.2} parent=11 // pred_check_branch
        %208 = sbr.rel (%p206) target = $region16
      $region15: #{forward.2} parent=11 // pred_region
        _
      $region16: #{forward.2} parent=11 // pred_fallthru
        _
      // Predicated region
      $region17: #{forward.2} parent=11 // pred_check
        %p209 = pneg %p81
      $region18: #{forward.2} parent=11 // pred_check_branch
        %211 = sbr.rel (%p209) target = $region20
      $region19: #{forward.2} parent=11 // pred_region
        _
      $region20: #{forward.2} parent=11 // pred_fallthru
        _
      // Predicated region
      $region21: #{forward.2} parent=11 // pred_check
        %p212 = pneg %p102
      $region22: #{forward.2} parent=11 // pred_check_branch
        %214 = sbr.rel (%p212) target = $region24
      $region23: #{forward.2} parent=11 // pred_region
        _
      $region24: #{forward.2} parent=11 // pred_fallthru
        _
      // Predicated region
      $region25: #{forward.2} parent=11 // pred_check
        %p215 = pneg %p123
      $region26: #{forward.2} parent=11 // pred_check_branch
        %217 = sbr.rel (%p215) target = $region28
      $region27: #{forward.2} parent=11 // pred_region
        _
      $region28: #{forward.2} parent=11 // pred_fallthru
        _
      // Predicated region
      $region29: #{forward.2} parent=11 // pred_check
        %p218 = pneg %p144
      $region30: #{forward.2} parent=11 // pred_check_branch
        %220 = sbr.rel (%p218) target = $region32
      $region31: #{forward.2} parent=11 // pred_region
        _
      $region32: #{forward.2} parent=11 // pred_fallthru
        _
      // Predicated region
      $region33: #{forward.2} parent=11 // pred_check
        %p221 = pneg %p165
      $region34: #{forward.2} parent=11 // pred_check_branch
        %223 = sbr.rel (%p221) target = $region36
      $region35: #{forward.2} parent=11 // pred_region
        _
      $region36: #{forward.2} parent=11 // pred_fallthru
        _
    $region12: #{forward.2} parent=5 // pred_fallthru
      _
    %p224 = scmp.lt.s32.totalorder %s13, 2
    // Predicated region
    $region37: #{forward.2} parent=5 // pred_check
      %p225 = pneg %p224
    $region38: #{forward.2} parent=5 // pred_check_branch
      %227 = sbr.rel (%p225) target = $region40
    $region39: #{forward.2} parent=5 // pred_region
      // Predicated region
      $region41: #{forward.2} parent=39 // pred_check
        %p228 = pneg %p33
      $region42: #{forward.2} parent=39 // pred_check_branch
        %230 = sbr.rel (%p228) target = $region44
      $region43: #{forward.2} parent=39 // pred_region
        %p231 = scmp.lt.s32.totalorder %s13, 1
        %s232 = scalar_select %p231, %s13, 1
        %s233 = smul.addr %s232, 32
        %s234 = smul.addr %s233, 8
        %s235 = scalar_lea.vmem %s0, %s234
      $region44: #{forward.2} parent=39 // pred_fallthru
        _
    $region40: #{forward.2} parent=5 // pred_fallthru
      _
    %p236 = scmp.le.s32.totalorder 1, %s13
    %p237 = scmp.lt.s32.totalorder %s13, 3
    %p238 = pnand %p236, %p237
    %p239 = pneg %p238
    // Predicated region
    $region45: #{forward.2} parent=5 // pred_check
      _
    $region46: #{forward.2} parent=5 // pred_check_branch
      %241 = sbr.rel (%p238) target = $region48
    $region47: #{forward.2} parent=5 // pred_region
      %s242 = ssub.s32 %s13, 1
      %p243 = scmp.lt.s32.totalorder %s18, 1
      %s244 = scalar_select %p243, %s18, 1
      %s245 = smul.addr %s244, 32
      %s246 = smul.addr %s245, 8
      %s247 = scalar_lea.vmem %s0, %s246
      %p248 = pneg %p39
      %p249 = pneg %p36
      %p250 = pneg %p60
      %p251 = pneg %p57
      %p252 = pneg %p81
      %p253 = pneg %p78
      %p254 = pneg %p102
      %p255 = pneg %p99
      %p256 = pneg %p123
      %p257 = pneg %p120
      %p258 = pneg %p144
      %p259 = pneg %p141
      %p260 = pneg %p165
      %p261 = pneg %p162
      %p262 = pneg %p191
      %p263 = pneg %p188
      %p264 = scmp.lt.s32.totalorder %s18, 1
      %s265 = scalar_select %p264, %s18, 1
      %s266 = smul.addr %s265, 8
      %s267 = smul.addr %s266, 8
      %s268 = scalar_lea.vmem %s7, %s267
      %p269 = scmp.lt.s32.totalorder %s18, 1
      %s270 = scalar_select %p269, %s18, 1
      %s271 = smul.addr %s270, 32
      %s272 = smul.addr %s271, 8
      %s273 = scalar_lea.vmem %s0, %s272
      %p274 = scmp.lt.s32.totalorder %s18, 1
      %s275 = scalar_select %p274, %s18, 1
      %s276 = smul.addr %s275, 8
      %s277 = smul.addr %s276, 8
      %s278 = scalar_lea.vmem %s7, %s277
      %vm279 = vcmask 195584
      %280 = vst.msk [vmem:[#allocation2] sm:$0xff] %vm279, 0.0
      %vm281 = vcmask 188416
      %282 = vst.msk [vmem:[#allocation2 + $0x8] sm:$0x1] %vm281, 0.0
      %283 = vst.msk [vmem:[#allocation2 + $0x10] sm:$0xff] %vm279, 0.0
      %284 = vst.msk [vmem:[#allocation2 + $0x18] sm:$0x1] %vm281, 0.0
      %285 = vst.msk [vmem:[#allocation2 + $0x20] sm:$0xff] %vm279, 0.0
      %286 = vst.msk [vmem:[#allocation2 + $0x28] sm:$0x1] %vm281, 0.0
      %287 = vst.msk [vmem:[#allocation2 + $0x30] sm:$0xff] %vm279, 0.0
      %288 = vst.msk [vmem:[#allocation2 + $0x38] sm:$0x1] %vm281, 0.0
      %289 = vst.msk [vmem:[#allocation2 + $0x40] sm:$0xff] %vm279, 0.0
      %290 = vst.msk [vmem:[#allocation2 + $0x48] sm:$0x1] %vm281, 0.0
      %291 = vst.msk [vmem:[#allocation2 + $0x50] sm:$0xff] %vm279, 0.0
      %292 = vst.msk [vmem:[#allocation2 + $0x58] sm:$0x1] %vm281, 0.0
      %293 = vst.msk [vmem:[#allocation2 + $0x60] sm:$0xff] %vm279, 0.0
      %294 = vst.msk [vmem:[#allocation2 + $0x68] sm:$0x1] %vm281, 0.0
      %295 = vst.msk [vmem:[#allocation2 + $0x70] sm:$0xff] %vm279, 0.0
      %296 = vst.msk [vmem:[#allocation2 + $0x78] sm:$0x1] %vm281, 0.0
      %297 = vst.msk [vmem:[#allocation2 + $0x80] sm:$0xff] %vm279, 0.0
      %298 = vst.msk [vmem:[#allocation2 + $0x88] sm:$0x1] %vm281, 0.0
      %299 = vst.msk [vmem:[#allocation2 + $0x90] sm:$0xff] %vm279, 0.0
      %300 = vst.msk [vmem:[#allocation2 + $0x98] sm:$0x1] %vm281, 0.0
      %301 = vst.msk [vmem:[#allocation2 + $0xa0] sm:$0xff] %vm279, 0.0
      %302 = vst.msk [vmem:[#allocation2 + $0xa8] sm:$0x1] %vm281, 0.0
      %303 = vst.msk [vmem:[#allocation2 + $0xb0] sm:$0xff] %vm279, 0.0
      %304 = vst.msk [vmem:[#allocation2 + $0xb8] sm:$0x1] %vm281, 0.0
      %305 = vst.msk [vmem:[#allocation2 + $0xc0] sm:$0xff] %vm279, 0.0
      %306 = vst.msk [vmem:[#allocation2 + $0xc8] sm:$0x1] %vm281, 0.0
      %307 = vst.msk [vmem:[#allocation2 + $0xd0] sm:$0xff] %vm279, 0.0
      %308 = vst.msk [vmem:[#allocation2 + $0xd8] sm:$0x1] %vm281, 0.0
      %309 = vst.msk [vmem:[#allocation2 + $0xe0] sm:$0xff] %vm279, 0.0
      %310 = vst.msk [vmem:[#allocation2 + $0xe8] sm:$0x1] %vm281, 0.0
      %311 = vst.msk [vmem:[#allocation2 + $0xf0] sm:$0xff] %vm279, 0.0
      %312 = vst.msk [vmem:[#allocation2 + $0xf8] sm:$0x1] %vm281, 0.0
      %313 = vst.msk [vmem:[#allocation2 + $0x100] sm:$0xff] %vm279, 0.0
      %314 = vst.msk [vmem:[#allocation2 + $0x108] sm:$0x1] %vm281, 0.0
      %315 = vst.msk [vmem:[#allocation2 + $0x110] sm:$0xff] %vm279, 0.0
      %316 = vst.msk [vmem:[#allocation2 + $0x118] sm:$0x1] %vm281, 0.0
      %317 = vst.msk [vmem:[#allocation2 + $0x120] sm:$0xff] %vm279, 0.0
      %318 = vst.msk [vmem:[#allocation2 + $0x128] sm:$0x1] %vm281, 0.0
      %319 = vst.msk [vmem:[#allocation2 + $0x130] sm:$0xff] %vm279, 0.0
      %320 = vst.msk [vmem:[#allocation2 + $0x138] sm:$0x1] %vm281, 0.0
      %321 = vst.msk [vmem:[#allocation2 + $0x140] sm:$0xff] %vm279, 0.0
      %322 = vst.msk [vmem:[#allocation2 + $0x148] sm:$0x1] %vm281, 0.0
      %323 = vst.msk [vmem:[#allocation2 + $0x150] sm:$0xff] %vm279, 0.0
      %324 = vst.msk [vmem:[#allocation2 + $0x158] sm:$0x1] %vm281, 0.0
      %325 = vst.msk [vmem:[#allocation2 + $0x160] sm:$0xff] %vm279, 0.0
      %326 = vst.msk [vmem:[#allocation2 + $0x168] sm:$0x1] %vm281, 0.0
      %327 = vst.msk [vmem:[#allocation2 + $0x170] sm:$0xff] %vm279, 0.0
      %328 = vst.msk [vmem:[#allocation2 + $0x178] sm:$0x1] %vm281, 0.0
      %329 = vst.msk [vmem:[#allocation2 + $0x180] sm:$0xff] %vm279, 0.0
      %330 = vst.msk [vmem:[#allocation2 + $0x188] sm:$0x1] %vm281, 0.0
      %331 = vst.msk [vmem:[#allocation2 + $0x190] sm:$0xff] %vm279, 0.0
      %332 = vst.msk [vmem:[#allocation2 + $0x198] sm:$0x1] %vm281, 0.0
      %333 = vst.msk [vmem:[#allocation2 + $0x1a0] sm:$0xff] %vm279, 0.0
      %334 = vst.msk [vmem:[#allocation2 + $0x1a8] sm:$0x1] %vm281, 0.0
      %335 = vst.msk [vmem:[#allocation2 + $0x1b0] sm:$0xff] %vm279, 0.0
      %336 = vst.msk [vmem:[#allocation2 + $0x1b8] sm:$0x1] %vm281, 0.0
      %337 = vst.msk [vmem:[#allocation2 + $0x1c0] sm:$0xff] %vm279, 0.0
      %338 = vst.msk [vmem:[#allocation2 + $0x1c8] sm:$0x1] %vm281, 0.0
      %339 = vst.msk [vmem:[#allocation2 + $0x1d0] sm:$0xff] %vm279, 0.0
      %340 = vst.msk [vmem:[#allocation2 + $0x1d8] sm:$0x1] %vm281, 0.0
      %341 = vst.msk [vmem:[#allocation2 + $0x1e0] sm:$0xff] %vm279, 0.0
      %342 = vst.msk [vmem:[#allocation2 + $0x1e8] sm:$0x1] %vm281, 0.0
      %343 = vst.msk [vmem:[#allocation2 + $0x1f0] sm:$0xff] %vm279, 0.0
      %344 = vst.msk [vmem:[#allocation2 + $0x1f8] sm:$0x1] %vm281, 0.0
      %345 = vst.msk [vmem:[#allocation2 + $0x200] sm:$0xff] %vm279, 0.0
      %346 = vst.msk [vmem:[#allocation2 + $0x208] sm:$0x1] %vm281, 0.0
      %347 = vst.msk [vmem:[#allocation2 + $0x210] sm:$0xff] %vm279, 0.0
      %348 = vst.msk [vmem:[#allocation2 + $0x218] sm:$0x1] %vm281, 0.0
      %349 = vst.msk [vmem:[#allocation2 + $0x220] sm:$0xff] %vm279, 0.0
      %350 = vst.msk [vmem:[#allocation2 + $0x228] sm:$0x1] %vm281, 0.0
      %351 = vst.msk [vmem:[#allocation2 + $0x230] sm:$0xff] %vm279, 0.0
      %352 = vst.msk [vmem:[#allocation2 + $0x238] sm:$0x1] %vm281, 0.0
      %v353 = vld [vmem:[%s273] sm:$0xff]
      %v354 = vld [vmem:[%s273 + $0x8] sm:$0xff]
      %v355 = vld [vmem:[%s273 + $0x10] sm:$0xff]
      %v356 = vld [vmem:[%s273 + $0x18] sm:$0xff]
      %v357 = vld [vmem:[%s273 + $0x20] sm:$0xff]
      %v358 = vld [vmem:[%s273 + $0x28] sm:$0xff]
      %v359 = vld [vmem:[%s273 + $0x30] sm:$0xff]
      %v360 = vld [vmem:[%s273 + $0x38] sm:$0xff]
      %v361 = vld [vmem:[%s273 + $0x40] sm:$0xff]
      %v362 = vld [vmem:[%s273 + $0x48] sm:$0xff]
      %v363 = vld [vmem:[%s273 + $0x50] sm:$0xff]
      %v364 = vld [vmem:[%s273 + $0x58] sm:$0xff]
      %v365 = vld [vmem:[%s273 + $0x60] sm:$0xff]
      %v366 = vld [vmem:[%s273 + $0x68] sm:$0xff]
      %v367 = vld [vmem:[%s273 + $0x70] sm:$0xff]
      %v368 = vld [vmem:[%s273 + $0x78] sm:$0xff]
      %v369 = vld [vmem:[%s273 + $0x80] sm:$0xff]
      %v370 = vld [vmem:[%s273 + $0x88] sm:$0xff]
      %v371 = vld [vmem:[%s273 + $0x90] sm:$0xff]
      %v372 = vld [vmem:[%s273 + $0x98] sm:$0xff]
      %v373 = vld [vmem:[%s273 + $0xa0] sm:$0xff]
      %v374 = vld [vmem:[%s273 + $0xa8] sm:$0xff]
      %v375 = vld [vmem:[%s273 + $0xb0] sm:$0xff]
      %v376 = vld [vmem:[%s273 + $0xb8] sm:$0xff]
      %v377 = vld [vmem:[%s273 + $0xc0] sm:$0xff]
      %v378 = vld [vmem:[%s273 + $0xc8] sm:$0xff]
      %v379 = vld [vmem:[%s273 + $0xd0] sm:$0xff]
      %v380 = vld [vmem:[%s273 + $0xd8] sm:$0xff]
      %v381 = vld [vmem:[%s273 + $0xe0] sm:$0xff]
      %v382 = vld [vmem:[%s273 + $0xe8] sm:$0xff]
      %v383 = vld [vmem:[%s273 + $0xf0] sm:$0xff]
      %v384 = vld [vmem:[%s273 + $0xf8] sm:$0xff]
      %v385 = vld [vmem:[%s1] sm:$0xf]
      %387 = vset.pattern.permute.xlu0 0
      %388 = vperm.xlu0 %387, %v353
      %v389 = vpop.permute.xlu0 %388
      %392 = vset.pattern.permute.xlu0 0
      %393 = vperm.xlu0 %392, %v354
      %v394 = vpop.permute.xlu0 %393
      %397 = vset.pattern.permute.xlu0 0
      %398 = vperm.xlu0 %397, %v355
      %v399 = vpop.permute.xlu0 %398
      %402 = vset.pattern.permute.xlu0 0
      %403 = vperm.xlu0 %402, %v356
      %v404 = vpop.permute.xlu0 %403
      %407 = vset.pattern.permute.xlu0 0
      %408 = vperm.xlu0 %407, %v357
      %v409 = vpop.permute.xlu0 %408
      %412 = vset.pattern.permute.xlu0 0
      %413 = vperm.xlu0 %412, %v358
      %v414 = vpop.permute.xlu0 %413
      %417 = vset.pattern.permute.xlu0 0
      %418 = vperm.xlu0 %417, %v359
      %v419 = vpop.permute.xlu0 %418
      %422 = vset.pattern.permute.xlu0 0
      %423 = vperm.xlu0 %422, %v360
      %v424 = vpop.permute.xlu0 %423
      %427 = vset.pattern.permute.xlu0 0
      %428 = vperm.xlu0 %427, %v361
      %v429 = vpop.permute.xlu0 %428
      %432 = vset.pattern.permute.xlu0 0
      %433 = vperm.xlu0 %432, %v362
      %v434 = vpop.permute.xlu0 %433
      %437 = vset.pattern.permute.xlu0 0
      %438 = vperm.xlu0 %437, %v363
      %v439 = vpop.permute.xlu0 %438
      %442 = vset.pattern.permute.xlu0 0
      %443 = vperm.xlu0 %442, %v364
      %v444 = vpop.permute.xlu0 %443
      %447 = vset.pattern.permute.xlu0 0
      %448 = vperm.xlu0 %447, %v365
      %v449 = vpop.permute.xlu0 %448
      %452 = vset.pattern.permute.xlu0 0
      %453 = vperm.xlu0 %452, %v366
      %v454 = vpop.permute.xlu0 %453
      %457 = vset.pattern.permute.xlu0 0
      %458 = vperm.xlu0 %457, %v367
      %v459 = vpop.permute.xlu0 %458
      %462 = vset.pattern.permute.xlu0 0
      %463 = vperm.xlu0 %462, %v368
      %v464 = vpop.permute.xlu0 %463
      %467 = vset.pattern.permute.xlu0 0
      %468 = vperm.xlu0 %467, %v369
      %v469 = vpop.permute.xlu0 %468
      %472 = vset.pattern.permute.xlu0 0
      %473 = vperm.xlu0 %472, %v370
      %v474 = vpop.permute.xlu0 %473
      %477 = vset.pattern.permute.xlu0 0
      %478 = vperm.xlu0 %477, %v371
      %v479 = vpop.permute.xlu0 %478
      %482 = vset.pattern.permute.xlu0 0
      %483 = vperm.xlu0 %482, %v372
      %v484 = vpop.permute.xlu0 %483
      %487 = vset.pattern.permute.xlu0 0
      %488 = vperm.xlu0 %487, %v373
      %v489 = vpop.permute.xlu0 %488
      %492 = vset.pattern.permute.xlu0 0
      %493 = vperm.xlu0 %492, %v374
      %v494 = vpop.permute.xlu0 %493
      %497 = vset.pattern.permute.xlu0 0
      %498 = vperm.xlu0 %497, %v375
      %v499 = vpop.permute.xlu0 %498
      %502 = vset.pattern.permute.xlu0 0
      %503 = vperm.xlu0 %502, %v376
      %v504 = vpop.permute.xlu0 %503
      %507 = vset.pattern.permute.xlu0 0
      %508 = vperm.xlu0 %507, %v377
      %v509 = vpop.permute.xlu0 %508
      %512 = vset.pattern.permute.xlu0 0
      %513 = vperm.xlu0 %512, %v378
      %v514 = vpop.permute.xlu0 %513
      %517 = vset.pattern.permute.xlu0 0
      %518 = vperm.xlu0 %517, %v379
      %v519 = vpop.permute.xlu0 %518
      %522 = vset.pattern.permute.xlu0 0
      %523 = vperm.xlu0 %522, %v380
      %v524 = vpop.permute.xlu0 %523
      %527 = vset.pattern.permute.xlu0 0
      %528 = vperm.xlu0 %527, %v381
      %v529 = vpop.permute.xlu0 %528
      %532 = vset.pattern.permute.xlu0 0
      %533 = vperm.xlu0 %532, %v382
      %v534 = vpop.permute.xlu0 %533
      %537 = vset.pattern.permute.xlu0 0
      %538 = vperm.xlu0 %537, %v383
      %v539 = vpop.permute.xlu0 %538
      %542 = vset.pattern.permute.xlu0 0
      %543 = vperm.xlu0 %542, %v384
      %v544 = vpop.permute.xlu0 %543
      %v546 = vlaneseq
      %v547 = vshrl.u32 %v546, 7
      %v548 = vsub.s32 0, %v547
      %v549 = vrot.slane %v385, %v548
      %v550 = vmul.f32 %v389, %v549
      %v551 = vmul.f32 %v394, %v549
      %v552 = vmul.f32 %v399, %v549
      %v553 = vmul.f32 %v404, %v549
      %v554 = vmul.f32 %v409, %v549
      %v555 = vmul.f32 %v414, %v549
      %v556 = vmul.f32 %v419, %v549
      %v557 = vmul.f32 %v424, %v549
      %v558 = vmul.f32 %v429, %v549
      %v559 = vmul.f32 %v434, %v549
      %v560 = vmul.f32 %v439, %v549
      %v561 = vmul.f32 %v444, %v549
      %v562 = vmul.f32 %v449, %v549
      %v563 = vmul.f32 %v454, %v549
      %v564 = vmul.f32 %v459, %v549
      %v565 = vmul.f32 %v464, %v549
      %v566 = vmul.f32 %v469, %v549
      %v567 = vmul.f32 %v474, %v549
      %v568 = vmul.f32 %v479, %v549
      %v569 = vmul.f32 %v484, %v549
      %v570 = vmul.f32 %v489, %v549
      %v571 = vmul.f32 %v494, %v549
      %v572 = vmul.f32 %v499, %v549
      %v573 = vmul.f32 %v504, %v549
      %v574 = vmul.f32 %v509, %v549
      %v575 = vmul.f32 %v514, %v549
      %v576 = vmul.f32 %v519, %v549
      %v577 = vmul.f32 %v524, %v549
      %v578 = vmul.f32 %v529, %v549
      %v579 = vmul.f32 %v534, %v549
      %v580 = vmul.f32 %v539, %v549
      %v581 = vmul.f32 %v544, %v549
      %v582 = vadd.f32 %v550, 0.0
      %v583 = vadd.f32 %v551, 0.0
      %v584 = vadd.f32 %v552, 0.0
      %v585 = vadd.f32 %v553, 0.0
      %v586 = vadd.f32 %v554, 0.0
      %v587 = vadd.f32 %v555, 0.0
      %v588 = vadd.f32 %v556, 0.0
      %v589 = vadd.f32 %v557, 0.0
      %v590 = vadd.f32 %v558, 0.0
      %v591 = vadd.f32 %v559, 0.0
      %v592 = vadd.f32 %v560, 0.0
      %v593 = vadd.f32 %v561, 0.0
      %v594 = vadd.f32 %v562, 0.0
      %v595 = vadd.f32 %v563, 0.0
      %v596 = vadd.f32 %v564, 0.0
      %v597 = vadd.f32 %v565, 0.0
      %v598 = vadd.f32 %v566, 0.0
      %v599 = vadd.f32 %v567, 0.0
      %v600 = vadd.f32 %v568, 0.0
      %v601 = vadd.f32 %v569, 0.0
      %v602 = vadd.f32 %v570, 0.0
      %v603 = vadd.f32 %v571, 0.0
      %v604 = vadd.f32 %v572, 0.0
      %v605 = vadd.f32 %v573, 0.0
      %v606 = vadd.f32 %v574, 0.0
      %v607 = vadd.f32 %v575, 0.0
      %v608 = vadd.f32 %v576, 0.0
      %v609 = vadd.f32 %v577, 0.0
      %v610 = vadd.f32 %v578, 0.0
      %v611 = vadd.f32 %v579, 0.0
      %v612 = vadd.f32 %v580, 0.0
      %v613 = vadd.f32 %v581, 0.0
      %614 = vset.pattern.permute.xlu0 1
      %615 = vperm.xlu0 %614, %v353
      %v616 = vpop.permute.xlu0 %615
      %618 = vset.pattern.permute.xlu0 1
      %619 = vperm.xlu0 %618, %v354
      %v620 = vpop.permute.xlu0 %619
      %622 = vset.pattern.permute.xlu0 1
      %623 = vperm.xlu0 %622, %v355
      %v624 = vpop.permute.xlu0 %623
      %626 = vset.pattern.permute.xlu0 1
      %627 = vperm.xlu0 %626, %v356
      %v628 = vpop.permute.xlu0 %627
      %630 = vset.pattern.permute.xlu0 1
      %631 = vperm.xlu0 %630, %v357
      %v632 = vpop.permute.xlu0 %631
      %634 = vset.pattern.permute.xlu0 1
      %635 = vperm.xlu0 %634, %v358
      %v636 = vpop.permute.xlu0 %635
      %638 = vset.pattern.permute.xlu0 1
      %639 = vperm.xlu0 %638, %v359
      %v640 = vpop.permute.xlu0 %639
      %642 = vset.pattern.permute.xlu0 1
      %643 = vperm.xlu0 %642, %v360
      %v644 = vpop.permute.xlu0 %643
      %646 = vset.pattern.permute.xlu0 1
      %647 = vperm.xlu0 %646, %v361
      %v648 = vpop.permute.xlu0 %647
      %650 = vset.pattern.permute.xlu0 1
      %651 = vperm.xlu0 %650, %v362
      %v652 = vpop.permute.xlu0 %651
      %654 = vset.pattern.permute.xlu0 1
      %655 = vperm.xlu0 %654, %v363
      %v656 = vpop.permute.xlu0 %655
      %658 = vset.pattern.permute.xlu0 1
      %659 = vperm.xlu0 %658, %v364
      %v660 = vpop.permute.xlu0 %659
      %662 = vset.pattern.permute.xlu0 1
      %663 = vperm.xlu0 %662, %v365
      %v664 = vpop.permute.xlu0 %663
      %666 = vset.pattern.permute.xlu0 1
      %667 = vperm.xlu0 %666, %v366
      %v668 = vpop.permute.xlu0 %667
      %670 = vset.pattern.permute.xlu0 1
      %671 = vperm.xlu0 %670, %v367
      %v672 = vpop.permute.xlu0 %671
      %674 = vset.pattern.permute.xlu0 1
      %675 = vperm.xlu0 %674, %v368
      %v676 = vpop.permute.xlu0 %675
      %678 = vset.pattern.permute.xlu0 1
      %679 = vperm.xlu0 %678, %v369
      %v680 = vpop.permute.xlu0 %679
      %682 = vset.pattern.permute.xlu0 1
      %683 = vperm.xlu0 %682, %v370
      %v684 = vpop.permute.xlu0 %683
      %686 = vset.pattern.permute.xlu0 1
      %687 = vperm.xlu0 %686, %v371
      %v688 = vpop.permute.xlu0 %687
      %690 = vset.pattern.permute.xlu0 1
      %691 = vperm.xlu0 %690, %v372
      %v692 = vpop.permute.xlu0 %691
      %694 = vset.pattern.permute.xlu0 1
      %695 = vperm.xlu0 %694, %v373
      %v696 = vpop.permute.xlu0 %695
      %698 = vset.pattern.permute.xlu0 1
      %699 = vperm.xlu0 %698, %v374
      %v700 = vpop.permute.xlu0 %699
      %702 = vset.pattern.permute.xlu0 1
      %703 = vperm.xlu0 %702, %v375
      %v704 = vpop.permute.xlu0 %703
      %706 = vset.pattern.permute.xlu0 1
      %707 = vperm.xlu0 %706, %v376
      %v708 = vpop.permute.xlu0 %707
      %710 = vset.pattern.permute.xlu0 1
      %711 = vperm.xlu0 %710, %v377
      %v712 = vpop.permute.xlu0 %711
      %714 = vset.pattern.permute.xlu0 1
      %715 = vperm.xlu0 %714, %v378
      %v716 = vpop.permute.xlu0 %715
      %718 = vset.pattern.permute.xlu0 1
      %719 = vperm.xlu0 %718, %v379
      %v720 = vpop.permute.xlu0 %719
      %722 = vset.pattern.permute.xlu0 1
      %723 = vperm.xlu0 %722, %v380
      %v724 = vpop.permute.xlu0 %723
      %726 = vset.pattern.permute.xlu0 1
      %727 = vperm.xlu0 %726, %v381
      %v728 = vpop.permute.xlu0 %727
      %730 = vset.pattern.permute.xlu0 1
      %731 = vperm.xlu0 %730, %v382
      %v732 = vpop.permute.xlu0 %731
      %734 = vset.pattern.permute.xlu0 1
      %735 = vperm.xlu0 %734, %v383
      %v736 = vpop.permute.xlu0 %735
      %738 = vset.pattern.permute.xlu0 1
      %739 = vperm.xlu0 %738, %v384
      %v740 = vpop.permute.xlu0 %739
      %v742 = vlaneseq
      %v743 = vshrl.u32 %v742, 7
      %v744 = vsub.s32 1, %v743
      %v745 = vrot.slane %v385, %v744
      %v746 = vmul.f32 %v616, %v745
      %v747 = vmul.f32 %v620, %v745
      %v748 = vmul.f32 %v624, %v745
      %v749 = vmul.f32 %v628, %v745
      %v750 = vmul.f32 %v632, %v745
      %v751 = vmul.f32 %v636, %v745
      %v752 = vmul.f32 %v640, %v745
      %v753 = vmul.f32 %v644, %v745
      %v754 = vmul.f32 %v648, %v745
      %v755 = vmul.f32 %v652, %v745
      %v756 = vmul.f32 %v656, %v745
      %v757 = vmul.f32 %v660, %v745
      %v758 = vmul.f32 %v664, %v745
      %v759 = vmul.f32 %v668, %v745
      %v760 = vmul.f32 %v672, %v745
      %v761 = vmul.f32 %v676, %v745
      %v762 = vmul.f32 %v680, %v745
      %v763 = vmul.f32 %v684, %v745
      %v764 = vmul.f32 %v688, %v745
      %v765 = vmul.f32 %v692, %v745
      %v766 = vmul.f32 %v696, %v745
      %v767 = vmul.f32 %v700, %v745
      %v768 = vmul.f32 %v704, %v745
      %v769 = vmul.f32 %v708, %v745
      %v770 = vmul.f32 %v712, %v745
      %v771 = vmul.f32 %v716, %v745
      %v772 = vmul.f32 %v720, %v745
      %v773 = vmul.f32 %v724, %v745
      %v774 = vmul.f32 %v728, %v745
      %v775 = vmul.f32 %v732, %v745
      %v776 = vmul.f32 %v736, %v745
      %v777 = vmul.f32 %v740, %v745
      %v778 = vadd.f32 %v582, %v746
      %v779 = vadd.f32 %v583, %v747
      %v780 = vadd.f32 %v584, %v748
      %v781 = vadd.f32 %v585, %v749
      %v782 = vadd.f32 %v586, %v750
      %v783 = vadd.f32 %v587, %v751
      %v784 = vadd.f32 %v588, %v752
      %v785 = vadd.f32 %v589, %v753
      %v786 = vadd.f32 %v590, %v754
      %v787 = vadd.f32 %v591, %v755
      %v788 = vadd.f32 %v592, %v756
      %v789 = vadd.f32 %v593, %v757
      %v790 = vadd.f32 %v594, %v758
      %v791 = vadd.f32 %v595, %v759
      %v792 = vadd.f32 %v596, %v760
      %v793 = vadd.f32 %v597, %v761
      %v794 = vadd.f32 %v598, %v762
      %v795 = vadd.f32 %v599, %v763
      %v796 = vadd.f32 %v600, %v764
      %v797 = vadd.f32 %v601, %v765
      %v798 = vadd.f32 %v602, %v766
      %v799 = vadd.f32 %v603, %v767
      %v800 = vadd.f32 %v604, %v768
      %v801 = vadd.f32 %v605, %v769
      %v802 = vadd.f32 %v606, %v770
      %v803 = vadd.f32 %v607, %v771
      %v804 = vadd.f32 %v608, %v772
      %v805 = vadd.f32 %v609, %v773
      %v806 = vadd.f32 %v610, %v774
      %v807 = vadd.f32 %v611, %v775
      %v808 = vadd.f32 %v612, %v776
      %v809 = vadd.f32 %v613, %v777
      %810 = vset.pattern.permute.xlu0 2
      %811 = vperm.xlu0 %810, %v353
      %v812 = vpop.permute.xlu0 %811
      %814 = vset.pattern.permute.xlu0 2
      %815 = vperm.xlu0 %814, %v354
      %v816 = vpop.permute.xlu0 %815
      %818 = vset.pattern.permute.xlu0 2
      %819 = vperm.xlu0 %818, %v355
      %v820 = vpop.permute.xlu0 %819
      %822 = vset.pattern.permute.xlu0 2
      %823 = vperm.xlu0 %822, %v356
      %v824 = vpop.permute.xlu0 %823
      %826 = vset.pattern.permute.xlu0 2
      %827 = vperm.xlu0 %826, %v357
      %v828 = vpop.permute.xlu0 %827
      %830 = vset.pattern.permute.xlu0 2
      %831 = vperm.xlu0 %830, %v358
      %v832 = vpop.permute.xlu0 %831
      %834 = vset.pattern.permute.xlu0 2
      %835 = vperm.xlu0 %834, %v359
      %v836 = vpop.permute.xlu0 %835
      %838 = vset.pattern.permute.xlu0 2
      %839 = vperm.xlu0 %838, %v360
      %v840 = vpop.permute.xlu0 %839
      %842 = vset.pattern.permute.xlu0 2
      %843 = vperm.xlu0 %842, %v361
      %v844 = vpop.permute.xlu0 %843
      %846 = vset.pattern.permute.xlu0 2
      %847 = vperm.xlu0 %846, %v362
      %v848 = vpop.permute.xlu0 %847
      %850 = vset.pattern.permute.xlu0 2
      %851 = vperm.xlu0 %850, %v363
      %v852 = vpop.permute.xlu0 %851
      %854 = vset.pattern.permute.xlu0 2
      %855 = vperm.xlu0 %854, %v364
      %v856 = vpop.permute.xlu0 %855
      %858 = vset.pattern.permute.xlu0 2
      %859 = vperm.xlu0 %858, %v365
      %v860 = vpop.permute.xlu0 %859
      %862 = vset.pattern.permute.xlu0 2
      %863 = vperm.xlu0 %862, %v366
      %v864 = vpop.permute.xlu0 %863
      %866 = vset.pattern.permute.xlu0 2
      %867 = vperm.xlu0 %866, %v367
      %v868 = vpop.permute.xlu0 %867
      %870 = vset.pattern.permute.xlu0 2
      %871 = vperm.xlu0 %870, %v368
      %v872 = vpop.permute.xlu0 %871
      %874 = vset.pattern.permute.xlu0 2
      %875 = vperm.xlu0 %874, %v369
      %v876 = vpop.permute.xlu0 %875
      %878 = vset.pattern.permute.xlu0 2
      %879 = vperm.xlu0 %878, %v370
      %v880 = vpop.permute.xlu0 %879
      %882 = vset.pattern.permute.xlu0 2
      %883 = vperm.xlu0 %882, %v371
      %v884 = vpop.permute.xlu0 %883
      %886 = vset.pattern.permute.xlu0 2
      %887 = vperm.xlu0 %886, %v372
      %v888 = vpop.permute.xlu0 %887
      %890 = vset.pattern.permute.xlu0 2
      %891 = vperm.xlu0 %890, %v373
      %v892 = vpop.permute.xlu0 %891
      %894 = vset.pattern.permute.xlu0 2
      %895 = vperm.xlu0 %894, %v374
      %v896 = vpop.permute.xlu0 %895
      %898 = vset.pattern.permute.xlu0 2
      %899 = vperm.xlu0 %898, %v375
      %v900 = vpop.permute.xlu0 %899
      %902 = vset.pattern.permute.xlu0 2
      %903 = vperm.xlu0 %902, %v376
      %v904 = vpop.permute.xlu0 %903
      %906 = vset.pattern.permute.xlu0 2
      %907 = vperm.xlu0 %906, %v377
      %v908 = vpop.permute.xlu0 %907
      %910 = vset.pattern.permute.xlu0 2
      %911 = vperm.xlu0 %910, %v378
      %v912 = vpop.permute.xlu0 %911
      %914 = vset.pattern.permute.xlu0 2
      %915 = vperm.xlu0 %914, %v379
      %v916 = vpop.permute.xlu0 %915
      %918 = vset.pattern.permute.xlu0 2
      %919 = vperm.xlu0 %918, %v380
      %v920 = vpop.permute.xlu0 %919
      %922 = vset.pattern.permute.xlu0 2
      %923 = vperm.xlu0 %922, %v381
      %v924 = vpop.permute.xlu0 %923
      %926 = vset.pattern.permute.xlu0 2
      %927 = vperm.xlu0 %926, %v382
      %v928 = vpop.permute.xlu0 %927
      %930 = vset.pattern.permute.xlu0 2
      %931 = vperm.xlu0 %930, %v383
      %v932 = vpop.permute.xlu0 %931
      %934 = vset.pattern.permute.xlu0 2
      %935 = vperm.xlu0 %934, %v384
      %v936 = vpop.permute.xlu0 %935
      %v938 = vlaneseq
      %v939 = vshrl.u32 %v938, 7
      %v940 = vsub.s32 2, %v939
      %v941 = vrot.slane %v385, %v940
      %v942 = vmul.f32 %v812, %v941
      %v943 = vmul.f32 %v816, %v941
      %v944 = vmul.f32 %v820, %v941
      %v945 = vmul.f32 %v824, %v941
      %v946 = vmul.f32 %v828, %v941
      %v947 = vmul.f32 %v832, %v941
      %v948 = vmul.f32 %v836, %v941
      %v949 = vmul.f32 %v840, %v941
      %v950 = vmul.f32 %v844, %v941
      %v951 = vmul.f32 %v848, %v941
      %v952 = vmul.f32 %v852, %v941
      %v953 = vmul.f32 %v856, %v941
      %v954 = vmul.f32 %v860, %v941
      %v955 = vmul.f32 %v864, %v941
      %v956 = vmul.f32 %v868, %v941
      %v957 = vmul.f32 %v872, %v941
      %v958 = vmul.f32 %v876, %v941
      %v959 = vmul.f32 %v880, %v941
      %v960 = vmul.f32 %v884, %v941
      %v961 = vmul.f32 %v888, %v941
      %v962 = vmul.f32 %v892, %v941
      %v963 = vmul.f32 %v896, %v941
      %v964 = vmul.f32 %v900, %v941
      %v965 = vmul.f32 %v904, %v941
      %v966 = vmul.f32 %v908, %v941
      %v967 = vmul.f32 %v912, %v941
      %v968 = vmul.f32 %v916, %v941
      %v969 = vmul.f32 %v920, %v941
      %v970 = vmul.f32 %v924, %v941
      %v971 = vmul.f32 %v928, %v941
      %v972 = vmul.f32 %v932, %v941
      %v973 = vmul.f32 %v936, %v941
      %v974 = vadd.f32 %v778, %v942
      %v975 = vadd.f32 %v779, %v943
      %v976 = vadd.f32 %v780, %v944
      %v977 = vadd.f32 %v781, %v945
      %v978 = vadd.f32 %v782, %v946
      %v979 = vadd.f32 %v783, %v947
      %v980 = vadd.f32 %v784, %v948
      %v981 = vadd.f32 %v785, %v949
      %v982 = vadd.f32 %v786, %v950
      %v983 = vadd.f32 %v787, %v951
      %v984 = vadd.f32 %v788, %v952
      %v985 = vadd.f32 %v789, %v953
      %v986 = vadd.f32 %v790, %v954
      %v987 = vadd.f32 %v791, %v955
      %v988 = vadd.f32 %v792, %v956
      %v989 = vadd.f32 %v793, %v957
      %v990 = vadd.f32 %v794, %v958
      %v991 = vadd.f32 %v795, %v959
      %v992 = vadd.f32 %v796, %v960
      %v993 = vadd.f32 %v797, %v961
      %v994 = vadd.f32 %v798, %v962
      %v995 = vadd.f32 %v799, %v963
      %v996 = vadd.f32 %v800, %v964
      %v997 = vadd.f32 %v801, %v965
      %v998 = vadd.f32 %v802, %v966
      %v999 = vadd.f32 %v803, %v967
      %v1000 = vadd.f32 %v804, %v968
      %v1001 = vadd.f32 %v805, %v969
      %v1002 = vadd.f32 %v806, %v970
      %v1003 = vadd.f32 %v807, %v971
      %v1004 = vadd.f32 %v808, %v972
      %v1005 = vadd.f32 %v809, %v973
      %1006 = vset.pattern.permute.xlu0 3
      %1007 = vperm.xlu0 %1006, %v353
      %v1008 = vpop.permute.xlu0 %1007
      %1010 = vset.pattern.permute.xlu0 3
      %1011 = vperm.xlu0 %1010, %v354
      %v1012 = vpop.permute.xlu0 %1011
      %1014 = vset.pattern.permute.xlu0 3
      %1015 = vperm.xlu0 %1014, %v355
      %v1016 = vpop.permute.xlu0 %1015
      %1018 = vset.pattern.permute.xlu0 3
      %1019 = vperm.xlu0 %1018, %v356
      %v1020 = vpop.permute.xlu0 %1019
      %1022 = vset.pattern.permute.xlu0 3
      %1023 = vperm.xlu0 %1022, %v357
      %v1024 = vpop.permute.xlu0 %1023
      %1026 = vset.pattern.permute.xlu0 3
      %1027 = vperm.xlu0 %1026, %v358
      %v1028 = vpop.permute.xlu0 %1027
      %1030 = vset.pattern.permute.xlu0 3
      %1031 = vperm.xlu0 %1030, %v359
      %v1032 = vpop.permute.xlu0 %1031
      %1034 = vset.pattern.permute.xlu0 3
      %1035 = vperm.xlu0 %1034, %v360
      %v1036 = vpop.permute.xlu0 %1035
      %1038 = vset.pattern.permute.xlu0 3
      %1039 = vperm.xlu0 %1038, %v361
      %v1040 = vpop.permute.xlu0 %1039
      %1042 = vset.pattern.permute.xlu0 3
      %1043 = vperm.xlu0 %1042, %v362
      %v1044 = vpop.permute.xlu0 %1043
      %1046 = vset.pattern.permute.xlu0 3
      %1047 = vperm.xlu0 %1046, %v363
      %v1048 = vpop.permute.xlu0 %1047
      %1050 = vset.pattern.permute.xlu0 3
      %1051 = vperm.xlu0 %1050, %v364
      %v1052 = vpop.permute.xlu0 %1051
      %1054 = vset.pattern.permute.xlu0 3
      %1055 = vperm.xlu0 %1054, %v365
      %v1056 = vpop.permute.xlu0 %1055
      %1058 = vset.pattern.permute.xlu0 3
      %1059 = vperm.xlu0 %1058, %v366
      %v1060 = vpop.permute.xlu0 %1059
      %1062 = vset.pattern.permute.xlu0 3
      %1063 = vperm.xlu0 %1062, %v367
      %v1064 = vpop.permute.xlu0 %1063
      %1066 = vset.pattern.permute.xlu0 3
      %1067 = vperm.xlu0 %1066, %v368
      %v1068 = vpop.permute.xlu0 %1067
      %1070 = vset.pattern.permute.xlu0 3
      %1071 = vperm.xlu0 %1070, %v369
      %v1072 = vpop.permute.xlu0 %1071
      %1074 = vset.pattern.permute.xlu0 3
      %1075 = vperm.xlu0 %1074, %v370
      %v1076 = vpop.permute.xlu0 %1075
      %1078 = vset.pattern.permute.xlu0 3
      %1079 = vperm.xlu0 %1078, %v371
      %v1080 = vpop.permute.xlu0 %1079
      %1082 = vset.pattern.permute.xlu0 3
      %1083 = vperm.xlu0 %1082, %v372
      %v1084 = vpop.permute.xlu0 %1083
      %1086 = vset.pattern.permute.xlu0 3
      %1087 = vperm.xlu0 %1086, %v373
      %v1088 = vpop.permute.xlu0 %1087
      %1090 = vset.pattern.permute.xlu0 3
      %1091 = vperm.xlu0 %1090, %v374
      %v1092 = vpop.permute.xlu0 %1091
      %1094 = vset.pattern.permute.xlu0 3
      %1095 = vperm.xlu0 %1094, %v375
      %v1096 = vpop.permute.xlu0 %1095
      %1098 = vset.pattern.permute.xlu0 3
      %1099 = vperm.xlu0 %1098, %v376
      %v1100 = vpop.permute.xlu0 %1099
      %1102 = vset.pattern.permute.xlu0 3
      %1103 = vperm.xlu0 %1102, %v377
      %v1104 = vpop.permute.xlu0 %1103
      %1106 = vset.pattern.permute.xlu0 3
      %1107 = vperm.xlu0 %1106, %v378
      %v1108 = vpop.permute.xlu0 %1107
      %1110 = vset.pattern.permute.xlu0 3
      %1111 = vperm.xlu0 %1110, %v379
      %v1112 = vpop.permute.xlu0 %1111
      %1114 = vset.pattern.permute.xlu0 3
      %1115 = vperm.xlu0 %1114, %v380
      %v1116 = vpop.permute.xlu0 %1115
      %1118 = vset.pattern.permute.xlu0 3
      %1119 = vperm.xlu0 %1118, %v381
      %v1120 = vpop.permute.xlu0 %1119
      %1122 = vset.pattern.permute.xlu0 3
      %1123 = vperm.xlu0 %1122, %v382
      %v1124 = vpop.permute.xlu0 %1123
      %1126 = vset.pattern.permute.xlu0 3
      %1127 = vperm.xlu0 %1126, %v383
      %v1128 = vpop.permute.xlu0 %1127
      %1130 = vset.pattern.permute.xlu0 3
      %1131 = vperm.xlu0 %1130, %v384
      %v1132 = vpop.permute.xlu0 %1131
      %v1134 = vlaneseq
      %v1135 = vshrl.u32 %v1134, 7
      %v1136 = vsub.s32 3, %v1135
      %v1137 = vrot.slane %v385, %v1136
      %v1138 = vmul.f32 %v1008, %v1137
      %v1139 = vmul.f32 %v1012, %v1137
      %v1140 = vmul.f32 %v1016, %v1137
      %v1141 = vmul.f32 %v1020, %v1137
      %v1142 = vmul.f32 %v1024, %v1137
      %v1143 = vmul.f32 %v1028, %v1137
      %v1144 = vmul.f32 %v1032, %v1137
      %v1145 = vmul.f32 %v1036, %v1137
      %v1146 = vmul.f32 %v1040, %v1137
      %v1147 = vmul.f32 %v1044, %v1137
      %v1148 = vmul.f32 %v1048, %v1137
      %v1149 = vmul.f32 %v1052, %v1137
      %v1150 = vmul.f32 %v1056, %v1137
      %v1151 = vmul.f32 %v1060, %v1137
      %v1152 = vmul.f32 %v1064, %v1137
      %v1153 = vmul.f32 %v1068, %v1137
      %v1154 = vmul.f32 %v1072, %v1137
      %v1155 = vmul.f32 %v1076, %v1137
      %v1156 = vmul.f32 %v1080, %v1137
      %v1157 = vmul.f32 %v1084, %v1137
      %v1158 = vmul.f32 %v1088, %v1137
      %v1159 = vmul.f32 %v1092, %v1137
      %v1160 = vmul.f32 %v1096, %v1137
      %v1161 = vmul.f32 %v1100, %v1137
      %v1162 = vmul.f32 %v1104, %v1137
      %v1163 = vmul.f32 %v1108, %v1137
      %v1164 = vmul.f32 %v1112, %v1137
      %v1165 = vmul.f32 %v1116, %v1137
      %v1166 = vmul.f32 %v1120, %v1137
      %v1167 = vmul.f32 %v1124, %v1137
      %v1168 = vmul.f32 %v1128, %v1137
      %v1169 = vmul.f32 %v1132, %v1137
      %v1170 = vadd.f32 %v974, %v1138
      %v1171 = vadd.f32 %v975, %v1139
      %v1172 = vadd.f32 %v976, %v1140
      %v1173 = vadd.f32 %v977, %v1141
      %v1174 = vadd.f32 %v978, %v1142
      %v1175 = vadd.f32 %v979, %v1143
      %v1176 = vadd.f32 %v980, %v1144
      %v1177 = vadd.f32 %v981, %v1145
      %v1178 = vadd.f32 %v982, %v1146
      %v1179 = vadd.f32 %v983, %v1147
      %v1180 = vadd.f32 %v984, %v1148
      %v1181 = vadd.f32 %v985, %v1149
      %v1182 = vadd.f32 %v986, %v1150
      %v1183 = vadd.f32 %v987, %v1151
      %v1184 = vadd.f32 %v988, %v1152
      %v1185 = vadd.f32 %v989, %v1153
      %v1186 = vadd.f32 %v990, %v1154
      %v1187 = vadd.f32 %v991, %v1155
      %v1188 = vadd.f32 %v992, %v1156
      %v1189 = vadd.f32 %v993, %v1157
      %v1190 = vadd.f32 %v994, %v1158
      %v1191 = vadd.f32 %v995, %v1159
      %v1192 = vadd.f32 %v996, %v1160
      %v1193 = vadd.f32 %v997, %v1161
      %v1194 = vadd.f32 %v998, %v1162
      %v1195 = vadd.f32 %v999, %v1163
      %v1196 = vadd.f32 %v1000, %v1164
      %v1197 = vadd.f32 %v1001, %v1165
      %v1198 = vadd.f32 %v1002, %v1166
      %v1199 = vadd.f32 %v1003, %v1167
      %v1200 = vadd.f32 %v1004, %v1168
      %v1201 = vadd.f32 %v1005, %v1169
      %v1202 = vld [vmem:[%s2] sm:$0x1]
      %v1204 = vlaneseq
      %v1205 = vshrl.u32 %v1204, 7
      %v1206 = vsub.s32 0, %v1205
      %v1207 = vrot.slane %v1202, %v1206
      %v1209 = vadd.f32 %v1170, %v1207
      %v1210 = vadd.f32 %v1171, %v1207
      %v1211 = vadd.f32 %v1172, %v1207
      %v1212 = vadd.f32 %v1173, %v1207
      %v1213 = vadd.f32 %v1174, %v1207
      %v1214 = vadd.f32 %v1175, %v1207
      %v1215 = vadd.f32 %v1176, %v1207
      %v1216 = vadd.f32 %v1177, %v1207
      %v1217 = vadd.f32 %v1178, %v1207
      %v1218 = vadd.f32 %v1179, %v1207
      %v1219 = vadd.f32 %v1180, %v1207
      %v1220 = vadd.f32 %v1181, %v1207
      %v1221 = vadd.f32 %v1182, %v1207
      %v1222 = vadd.f32 %v1183, %v1207
      %v1223 = vadd.f32 %v1184, %v1207
      %v1224 = vadd.f32 %v1185, %v1207
      %v1225 = vadd.f32 %v1186, %v1207
      %v1226 = vadd.f32 %v1187, %v1207
      %v1227 = vadd.f32 %v1188, %v1207
      %v1228 = vadd.f32 %v1189, %v1207
      %v1229 = vadd.f32 %v1190, %v1207
      %v1230 = vadd.f32 %v1191, %v1207
      %v1231 = vadd.f32 %v1192, %v1207
      %v1232 = vadd.f32 %v1193, %v1207
      %v1233 = vadd.f32 %v1194, %v1207
      %v1234 = vadd.f32 %v1195, %v1207
      %v1235 = vadd.f32 %v1196, %v1207
      %v1236 = vadd.f32 %v1197, %v1207
      %v1237 = vadd.f32 %v1198, %v1207
      %v1238 = vadd.f32 %v1199, %v1207
      %v1239 = vadd.f32 %v1200, %v1207
      %v1240 = vadd.f32 %v1201, %v1207
      %v1241 = vmax.f32 %v1209, 0.0
      %v1242 = vmax.f32 %v1210, 0.0
      %v1243 = vmax.f32 %v1211, 0.0
      %v1244 = vmax.f32 %v1212, 0.0
      %v1245 = vmax.f32 %v1213, 0.0
      %v1246 = vmax.f32 %v1214, 0.0
      %v1247 = vmax.f32 %v1215, 0.0
      %v1248 = vmax.f32 %v1216, 0.0
      %v1249 = vmax.f32 %v1217, 0.0
      %v1250 = vmax.f32 %v1218, 0.0
      %v1251 = vmax.f32 %v1219, 0.0
      %v1252 = vmax.f32 %v1220, 0.0
      %v1253 = vmax.f32 %v1221, 0.0
      %v1254 = vmax.f32 %v1222, 0.0
      %v1255 = vmax.f32 %v1223, 0.0
      %v1256 = vmax.f32 %v1224, 0.0
      %v1257 = vmax.f32 %v1225, 0.0
      %v1258 = vmax.f32 %v1226, 0.0
      %v1259 = vmax.f32 %v1227, 0.0
      %v1260 = vmax.f32 %v1228, 0.0
      %v1261 = vmax.f32 %v1229, 0.0
      %v1262 = vmax.f32 %v1230, 0.0
      %v1263 = vmax.f32 %v1231, 0.0
      %v1264 = vmax.f32 %v1232, 0.0
      %v1265 = vmax.f32 %v1233, 0.0
      %v1266 = vmax.f32 %v1234, 0.0
      %v1267 = vmax.f32 %v1235, 0.0
      %v1268 = vmax.f32 %v1236, 0.0
      %v1269 = vmax.f32 %v1237, 0.0
      %v1270 = vmax.f32 %v1238, 0.0
      %v1271 = vmax.f32 %v1239, 0.0
      %v1272 = vmax.f32 %v1240, 0.0
      %v1273 = vmin.f32 %v1241, 6.0
      %v1274 = vmin.f32 %v1242, 6.0
      %v1275 = vmin.f32 %v1243, 6.0
      %v1276 = vmin.f32 %v1244, 6.0
      %v1277 = vmin.f32 %v1245, 6.0
      %v1278 = vmin.f32 %v1246, 6.0
      %v1279 = vmin.f32 %v1247, 6.0
      %v1280 = vmin.f32 %v1248, 6.0
      %v1281 = vmin.f32 %v1249, 6.0
      %v1282 = vmin.f32 %v1250, 6.0
      %v1283 = vmin.f32 %v1251, 6.0
      %v1284 = vmin.f32 %v1252, 6.0
      %v1285 = vmin.f32 %v1253, 6.0
      %v1286 = vmin.f32 %v1254, 6.0
      %v1287 = vmin.f32 %v1255, 6.0
      %v1288 = vmin.f32 %v1256, 6.0
      %v1289 = vmin.f32 %v1257, 6.0
      %v1290 = vmin.f32 %v1258, 6.0
      %v1291 = vmin.f32 %v1259, 6.0
      %v1292 = vmin.f32 %v1260, 6.0
      %v1293 = vmin.f32 %v1261, 6.0
      %v1294 = vmin.f32 %v1262, 6.0
      %v1295 = vmin.f32 %v1263, 6.0
      %v1296 = vmin.f32 %v1264, 6.0
      %v1297 = vmin.f32 %v1265, 6.0
      %v1298 = vmin.f32 %v1266, 6.0
      %v1299 = vmin.f32 %v1267, 6.0
      %v1300 = vmin.f32 %v1268, 6.0
      %v1301 = vmin.f32 %v1269, 6.0
      %v1302 = vmin.f32 %v1270, 6.0
      %v1303 = vmin.f32 %v1271, 6.0
      %v1304 = vmin.f32 %v1272, 6.0
      %s1305 = scalar_lea.vmem [#allocation2], 432
      %1306 = vst.msk [vmem:[%s1305] sm:$0xff] %vm279, %v1273
      %1307 = vst.msk [vmem:[%s1305 + $0x10] sm:$0xff] %vm279, %v1274
      %1308 = vst.msk [vmem:[%s1305 + $0x20] sm:$0xff] %vm279, %v1275
      %1309 = vst.msk [vmem:[%s1305 + $0x30] sm:$0xff] %vm279, %v1276
      %1310 = vst.msk [vmem:[%s1305 + $0x40] sm:$0xff] %vm279, %v1277
      %1311 = vst.msk [vmem:[%s1305 + $0x50] sm:$0xff] %vm279, %v1278
      %1312 = vst.msk [vmem:[%s1305 + $0x60] sm:$0xff] %vm279, %v1279
      %1313 = vst.msk [vmem:[%s1305 + $0x70] sm:$0xff] %vm279, %v1280
      %s1314 = scalar_lea.vmem [#allocation2], 288
      %1315 = vst.msk [vmem:[%s1314 + $0x1] sm:$0xff] %vm279, %v1281
      %1316 = vst.msk [vmem:[%s1314 + $0x11] sm:$0xff] %vm279, %v1282
      %1317 = vst.msk [vmem:[%s1314 + $0x21] sm:$0xff] %vm279, %v1283
      %1318 = vst.msk [vmem:[%s1314 + $0x31] sm:$0xff] %vm279, %v1284
      %1319 = vst.msk [vmem:[%s1314 + $0x41] sm:$0xff] %vm279, %v1285
      %1320 = vst.msk [vmem:[%s1314 + $0x51] sm:$0xff] %vm279, %v1286
      %1321 = vst.msk [vmem:[%s1314 + $0x61] sm:$0xff] %vm279, %v1287
      %1322 = vst.msk [vmem:[%s1314 + $0x71] sm:$0xff] %vm279, %v1288
      %s1323 = scalar_lea.vmem [#allocation2], 160
      %1324 = vst.msk [vmem:[%s1323] sm:$0xff] %vm279, %v1289
      %1325 = vst.msk [vmem:[%s1323 + $0x10] sm:$0xff] %vm279, %v1290
      %1326 = vst.msk [vmem:[%s1323 + $0x20] sm:$0xff] %vm279, %v1291
      %1327 = vst.msk [vmem:[%s1323 + $0x30] sm:$0xff] %vm279, %v1292
      %1328 = vst.msk [vmem:[%s1323 + $0x40] sm:$0xff] %vm279, %v1293
      %1329 = vst.msk [vmem:[%s1323 + $0x50] sm:$0xff] %vm279, %v1294
      %1330 = vst.msk [vmem:[%s1323 + $0x60] sm:$0xff] %vm279, %v1295
      %1331 = vst.msk [vmem:[%s1323 + $0x70] sm:$0xff] %vm279, %v1296
      %s1332 = scalar_lea.vmem [#allocation2], 16
      %1333 = vst.msk [vmem:[%s1332 + $0x1] sm:$0xff] %vm279, %v1297
      %1334 = vst.msk [vmem:[%s1332 + $0x11] sm:$0xff] %vm279, %v1298
      %1335 = vst.msk [vmem:[%s1332 + $0x21] sm:$0xff] %vm279, %v1299
      %1336 = vst.msk [vmem:[%s1332 + $0x31] sm:$0xff] %vm279, %v1300
      %1337 = vst.msk [vmem:[%s1332 + $0x41] sm:$0xff] %vm279, %v1301
      %1338 = vst.msk [vmem:[%s1332 + $0x51] sm:$0xff] %vm279, %v1302
      %1339 = vst.msk [vmem:[%s1332 + $0x61] sm:$0xff] %vm279, %v1303
      %1340 = vst.msk [vmem:[%s1332 + $0x71] sm:$0xff] %vm279, %v1304
      %v1341 = vld [vmem:[%s3] sm:$0xff]
      %v1342 = vld [vmem:[%s3 + $0x8] sm:$0x1]
      %v1343 = vld [vmem:[#allocation2] sm:$0xff]
      %v1344 = vld [vmem:[#allocation2 + $0x10] sm:$0xff]
      %v1345 = vld [vmem:[#allocation2 + $0x20] sm:$0xff]
      %v1346 = vld [vmem:[#allocation2 + $0x30] sm:$0xff]
      %v1347 = vld [vmem:[#allocation2 + $0x40] sm:$0xff]
      %v1348 = vld [vmem:[#allocation2 + $0x50] sm:$0xff]
      %v1349 = vld [vmem:[#allocation2 + $0x60] sm:$0xff]
      %v1350 = vld [vmem:[#allocation2 + $0x70] sm:$0xff]
      %v1351 = vlaneseq
      %v1352 = vshrl.u32 %v1351, 7
      %v1353 = vsub.s32 0, %v1352
      %v1354 = vrot.slane %v1341, %v1353
      %v1355 = vmul.f32 %v1343, %v1354
      %v1356 = vmul.f32 %v1344, %v1354
      %v1357 = vmul.f32 %v1345, %v1354
      %v1358 = vmul.f32 %v1346, %v1354
      %v1359 = vmul.f32 %v1347, %v1354
      %v1360 = vmul.f32 %v1348, %v1354
      %v1361 = vmul.f32 %v1349, %v1354
      %v1362 = vmul.f32 %v1350, %v1354
      %v1363 = vadd.f32 %v1355, 0.0
      %v1364 = vadd.f32 %v1356, 0.0
      %v1365 = vadd.f32 %v1357, 0.0
      %v1366 = vadd.f32 %v1358, 0.0
      %v1367 = vadd.f32 %v1359, 0.0
      %v1368 = vadd.f32 %v1360, 0.0
      %v1369 = vadd.f32 %v1361, 0.0
      %v1370 = vadd.f32 %v1362, 0.0
      %s1371 = scalar_lea.vmem [#allocation2], 144
      %v1372 = vld [vmem:[%s1371] sm:$0xff]
      %v1373 = vld [vmem:[%s1371 + $0x10] sm:$0xff]
      %v1374 = vld [vmem:[%s1371 + $0x20] sm:$0xff]
      %v1375 = vld [vmem:[%s1371 + $0x30] sm:$0xff]
      %v1376 = vld [vmem:[%s1371 + $0x40] sm:$0xff]
      %v1377 = vld [vmem:[%s1371 + $0x50] sm:$0xff]
      %v1378 = vld [vmem:[%s1371 + $0x60] sm:$0xff]
      %v1379 = vld [vmem:[%s1371 + $0x70] sm:$0xff]
      %v1380 = vlaneseq
      %v1381 = vshrl.u32 %v1380, 7
      %v1382 = vsub.s32 1, %v1381
      %v1383 = vrot.slane %v1341, %v1382
      %v1384 = vmul.f32 %v1372, %v1383
      %v1385 = vmul.f32 %v1373, %v1383
      %v1386 = vmul.f32 %v1374, %v1383
      %v1387 = vmul.f32 %v1375, %v1383
      %v1388 = vmul.f32 %v1376, %v1383
      %v1389 = vmul.f32 %v1377, %v1383
      %v1390 = vmul.f32 %v1378, %v1383
      %v1391 = vmul.f32 %v1379, %v1383
      %v1392 = vadd.f32 %v1363, %v1384
      %v1393 = vadd.f32 %v1364, %v1385
      %v1394 = vadd.f32 %v1365, %v1386
      %v1395 = vadd.f32 %v1366, %v1387
      %v1396 = vadd.f32 %v1367, %v1388
      %v1397 = vadd.f32 %v1368, %v1389
      %v1398 = vadd.f32 %v1369, %v1390
      %v1399 = vadd.f32 %v1370, %v1391
      %v1400 = vld [vmem:[#allocation2 + $0x1] sm:$0xff]
      %v1401 = vld [vmem:[#allocation2 + $0x11] sm:$0xff]
      %v1402 = vld [vmem:[#allocation2 + $0x21] sm:$0xff]
      %v1403 = vld [vmem:[#allocation2 + $0x31] sm:$0xff]
      %v1404 = vld [vmem:[#allocation2 + $0x41] sm:$0xff]
      %v1405 = vld [vmem:[#allocation2 + $0x51] sm:$0xff]
      %v1406 = vld [vmem:[#allocation2 + $0x61] sm:$0xff]
      %v1407 = vld [vmem:[#allocation2 + $0x71] sm:$0xff]
      %v1408 = vlaneseq
      %v1409 = vshrl.u32 %v1408, 7
      %v1410 = vsub.s32 2, %v1409
      %v1411 = vrot.slane %v1341, %v1410
      %v1412 = vmul.f32 %v1400, %v1411
      %v1413 = vmul.f32 %v1401, %v1411
      %v1414 = vmul.f32 %v1402, %v1411
      %v1415 = vmul.f32 %v1403, %v1411
      %v1416 = vmul.f32 %v1404, %v1411
      %v1417 = vmul.f32 %v1405, %v1411
      %v1418 = vmul.f32 %v1406, %v1411
      %v1419 = vmul.f32 %v1407, %v1411
      %v1420 = vadd.f32 %v1392, %v1412
      %v1421 = vadd.f32 %v1393, %v1413
      %v1422 = vadd.f32 %v1394, %v1414
      %v1423 = vadd.f32 %v1395, %v1415
      %v1424 = vadd.f32 %v1396, %v1416
      %v1425 = vadd.f32 %v1397, %v1417
      %v1426 = vadd.f32 %v1398, %v1418
      %v1427 = vadd.f32 %v1399, %v1419
      %v1428 = vld [vmem:[%s1314] sm:$0xff]
      %v1429 = vld [vmem:[%s1314 + $0x10] sm:$0xff]
      %v1430 = vld [vmem:[%s1314 + $0x20] sm:$0xff]
      %v1431 = vld [vmem:[%s1314 + $0x30] sm:$0xff]
      %v1432 = vld [vmem:[%s1314 + $0x40] sm:$0xff]
      %v1433 = vld [vmem:[%s1314 + $0x50] sm:$0xff]
      %v1434 = vld [vmem:[%s1314 + $0x60] sm:$0xff]
      %v1435 = vld [vmem:[%s1314 + $0x70] sm:$0xff]
      %v1436 = vlaneseq
      %v1437 = vshrl.u32 %v1436, 7
      %v1438 = vsub.s32 3, %v1437
      %v1439 = vrot.slane %v1341, %v1438
      %v1440 = vmul.f32 %v1428, %v1439
      %v1441 = vmul.f32 %v1429, %v1439
      %v1442 = vmul.f32 %v1430, %v1439
      %v1443 = vmul.f32 %v1431, %v1439
      %v1444 = vmul.f32 %v1432, %v1439
      %v1445 = vmul.f32 %v1433, %v1439
      %v1446 = vmul.f32 %v1434, %v1439
      %v1447 = vmul.f32 %v1435, %v1439
      %v1448 = vadd.f32 %v1420, %v1440
      %v1449 = vadd.f32 %v1421, %v1441
      %v1450 = vadd.f32 %v1422, %v1442
      %v1451 = vadd.f32 %v1423, %v1443
      %v1452 = vadd.f32 %v1424, %v1444
      %v1453 = vadd.f32 %v1425, %v1445
      %v1454 = vadd.f32 %v1426, %v1446
      %v1455 = vadd.f32 %v1427, %v1447
      %v1456 = vld [vmem:[%s1305] sm:$0xff]
      %v1457 = vld [vmem:[%s1305 + $0x10] sm:$0xff]
      %v1458 = vld [vmem:[%s1305 + $0x20] sm:$0xff]
      %v1459 = vld [vmem:[%s1305 + $0x30] sm:$0xff]
      %v1460 = vld [vmem:[%s1305 + $0x40] sm:$0xff]
      %v1461 = vld [vmem:[%s1305 + $0x50] sm:$0xff]
      %v1462 = vld [vmem:[%s1305 + $0x60] sm:$0xff]
      %v1463 = vld [vmem:[%s1305 + $0x70] sm:$0xff]
      %v1464 = vlaneseq
      %v1465 = vshrl.u32 %v1464, 7
      %v1466 = vsub.s32 4, %v1465
      %v1467 = vrot.slane %v1341, %v1466
      %v1468 = vmul.f32 %v1456, %v1467
      %v1469 = vmul.f32 %v1457, %v1467
      %v1470 = vmul.f32 %v1458, %v1467
      %v1471 = vmul.f32 %v1459, %v1467
      %v1472 = vmul.f32 %v1460, %v1467
      %v1473 = vmul.f32 %v1461, %v1467
      %v1474 = vmul.f32 %v1462, %v1467
      %v1475 = vmul.f32 %v1463, %v1467
      %v1476 = vadd.f32 %v1448, %v1468
      %v1477 = vadd.f32 %v1449, %v1469
      %v1478 = vadd.f32 %v1450, %v1470
      %v1479 = vadd.f32 %v1451, %v1471
      %v1480 = vadd.f32 %v1452, %v1472
      %v1481 = vadd.f32 %v1453, %v1473
      %v1482 = vadd.f32 %v1454, %v1474
      %v1483 = vadd.f32 %v1455, %v1475
      %v1484 = vld [vmem:[%s1314 + $0x1] sm:$0xff]
      %v1485 = vld [vmem:[%s1314 + $0x11] sm:$0xff]
      %v1486 = vld [vmem:[%s1314 + $0x21] sm:$0xff]
      %v1487 = vld [vmem:[%s1314 + $0x31] sm:$0xff]
      %v1488 = vld [vmem:[%s1314 + $0x41] sm:$0xff]
      %v1489 = vld [vmem:[%s1314 + $0x51] sm:$0xff]
      %v1490 = vld [vmem:[%s1314 + $0x61] sm:$0xff]
      %v1491 = vld [vmem:[%s1314 + $0x71] sm:$0xff]
      %v1492 = vlaneseq
      %v1493 = vshrl.u32 %v1492, 7
      %v1494 = vsub.s32 5, %v1493
      %v1495 = vrot.slane %v1341, %v1494
      %v1496 = vmul.f32 %v1484, %v1495
      %v1497 = vmul.f32 %v1485, %v1495
      %v1498 = vmul.f32 %v1486, %v1495
      %v1499 = vmul.f32 %v1487, %v1495
      %v1500 = vmul.f32 %v1488, %v1495
      %v1501 = vmul.f32 %v1489, %v1495
      %v1502 = vmul.f32 %v1490, %v1495
      %v1503 = vmul.f32 %v1491, %v1495
      %v1504 = vadd.f32 %v1476, %v1496
      %v1505 = vadd.f32 %v1477, %v1497
      %v1506 = vadd.f32 %v1478, %v1498
      %v1507 = vadd.f32 %v1479, %v1499
      %v1508 = vadd.f32 %v1480, %v1500
      %v1509 = vadd.f32 %v1481, %v1501
      %v1510 = vadd.f32 %v1482, %v1502
      %v1511 = vadd.f32 %v1483, %v1503
      %v1512 = vld [vmem:[%s1332] sm:$0xff]
      %v1513 = vld [vmem:[%s1332 + $0x10] sm:$0xff]
      %v1514 = vld [vmem:[%s1332 + $0x20] sm:$0xff]
      %v1515 = vld [vmem:[%s1332 + $0x30] sm:$0xff]
      %v1516 = vld [vmem:[%s1332 + $0x40] sm:$0xff]
      %v1517 = vld [vmem:[%s1332 + $0x50] sm:$0xff]
      %v1518 = vld [vmem:[%s1332 + $0x60] sm:$0xff]
      %v1519 = vld [vmem:[%s1332 + $0x70] sm:$0xff]
      %v1520 = vlaneseq
      %v1521 = vshrl.u32 %v1520, 7
      %v1522 = vsub.s32 6, %v1521
      %v1523 = vrot.slane %v1341, %v1522
      %v1524 = vmul.f32 %v1512, %v1523
      %v1525 = vmul.f32 %v1513, %v1523
      %v1526 = vmul.f32 %v1514, %v1523
      %v1527 = vmul.f32 %v1515, %v1523
      %v1528 = vmul.f32 %v1516, %v1523
      %v1529 = vmul.f32 %v1517, %v1523
      %v1530 = vmul.f32 %v1518, %v1523
      %v1531 = vmul.f32 %v1519, %v1523
      %v1532 = vadd.f32 %v1504, %v1524
      %v1533 = vadd.f32 %v1505, %v1525
      %v1534 = vadd.f32 %v1506, %v1526
      %v1535 = vadd.f32 %v1507, %v1527
      %v1536 = vadd.f32 %v1508, %v1528
      %v1537 = vadd.f32 %v1509, %v1529
      %v1538 = vadd.f32 %v1510, %v1530
      %v1539 = vadd.f32 %v1511, %v1531
      %v1540 = vld [vmem:[%s1323] sm:$0xff]
      %v1541 = vld [vmem:[%s1323 + $0x10] sm:$0xff]
      %v1542 = vld [vmem:[%s1323 + $0x20] sm:$0xff]
      %v1543 = vld [vmem:[%s1323 + $0x30] sm:$0xff]
      %v1544 = vld [vmem:[%s1323 + $0x40] sm:$0xff]
      %v1545 = vld [vmem:[%s1323 + $0x50] sm:$0xff]
      %v1546 = vld [vmem:[%s1323 + $0x60] sm:$0xff]
      %v1547 = vld [vmem:[%s1323 + $0x70] sm:$0xff]
      %v1548 = vlaneseq
      %v1549 = vshrl.u32 %v1548, 7
      %v1550 = vsub.s32 7, %v1549
      %v1551 = vrot.slane %v1341, %v1550
      %v1552 = vmul.f32 %v1540, %v1551
      %v1553 = vmul.f32 %v1541, %v1551
      %v1554 = vmul.f32 %v1542, %v1551
      %v1555 = vmul.f32 %v1543, %v1551
      %v1556 = vmul.f32 %v1544, %v1551
      %v1557 = vmul.f32 %v1545, %v1551
      %v1558 = vmul.f32 %v1546, %v1551
      %v1559 = vmul.f32 %v1547, %v1551
      %v1560 = vadd.f32 %v1532, %v1552
      %v1561 = vadd.f32 %v1533, %v1553
      %v1562 = vadd.f32 %v1534, %v1554
      %v1563 = vadd.f32 %v1535, %v1555
      %v1564 = vadd.f32 %v1536, %v1556
      %v1565 = vadd.f32 %v1537, %v1557
      %v1566 = vadd.f32 %v1538, %v1558
      %v1567 = vadd.f32 %v1539, %v1559
      %v1568 = vld [vmem:[%s1332 + $0x1] sm:$0xff]
      %v1569 = vld [vmem:[%s1332 + $0x11] sm:$0xff]
      %v1570 = vld [vmem:[%s1332 + $0x21] sm:$0xff]
      %v1571 = vld [vmem:[%s1332 + $0x31] sm:$0xff]
      %v1572 = vld [vmem:[%s1332 + $0x41] sm:$0xff]
      %v1573 = vld [vmem:[%s1332 + $0x51] sm:$0xff]
      %v1574 = vld [vmem:[%s1332 + $0x61] sm:$0xff]
      %v1575 = vld [vmem:[%s1332 + $0x71] sm:$0xff]
      %v1576 = vlaneseq
      %v1577 = vshrl.u32 %v1576, 7
      %v1578 = vsub.s32 0, %v1577
      %v1579 = vrot.slane %v1342, %v1578
      %v1580 = vmul.f32 %v1568, %v1579
      %v1581 = vmul.f32 %v1569, %v1579
      %v1582 = vmul.f32 %v1570, %v1579
      %v1583 = vmul.f32 %v1571, %v1579
      %v1584 = vmul.f32 %v1572, %v1579
      %v1585 = vmul.f32 %v1573, %v1579
      %v1586 = vmul.f32 %v1574, %v1579
      %v1587 = vmul.f32 %v1575, %v1579
      %v1588 = vadd.f32 %v1560, %v1580
      %v1589 = vadd.f32 %v1561, %v1581
      %v1590 = vadd.f32 %v1562, %v1582
      %v1591 = vadd.f32 %v1563, %v1583
      %v1592 = vadd.f32 %v1564, %v1584
      %v1593 = vadd.f32 %v1565, %v1585
      %v1594 = vadd.f32 %v1566, %v1586
      %v1595 = vadd.f32 %v1567, %v1587
      %v1596 = vld [vmem:[%s4] sm:$0x1]
      %v1598 = vlaneseq
      %v1599 = vshrl.u32 %v1598, 7
      %v1600 = vsub.s32 0, %v1599
      %v1601 = vrot.slane %v1596, %v1600
      %v1603 = vadd.f32 %v1588, %v1601
      %v1604 = vadd.f32 %v1589, %v1601
      %v1605 = vadd.f32 %v1590, %v1601
      %v1606 = vadd.f32 %v1591, %v1601
      %v1607 = vadd.f32 %v1592, %v1601
      %v1608 = vadd.f32 %v1593, %v1601
      %v1609 = vadd.f32 %v1594, %v1601
      %v1610 = vadd.f32 %v1595, %v1601
      %v1611 = vmax.f32 %v1603, 0.0
      %v1612 = vmax.f32 %v1604, 0.0
      %v1613 = vmax.f32 %v1605, 0.0
      %v1614 = vmax.f32 %v1606, 0.0
      %v1615 = vmax.f32 %v1607, 0.0
      %v1616 = vmax.f32 %v1608, 0.0
      %v1617 = vmax.f32 %v1609, 0.0
      %v1618 = vmax.f32 %v1610, 0.0
      %v1619 = vmin.f32 %v1611, 6.0
      %v1620 = vmin.f32 %v1612, 6.0
      %v1621 = vmin.f32 %v1613, 6.0
      %v1622 = vmin.f32 %v1614, 6.0
      %v1623 = vmin.f32 %v1615, 6.0
      %v1624 = vmin.f32 %v1616, 6.0
      %v1625 = vmin.f32 %v1617, 6.0
      %v1626 = vmin.f32 %v1618, 6.0
      %v1627 = vld [vmem:[%s5] sm:$0xff]
      %v1628 = vld [vmem:[%s5 + $0x8] sm:$0xff]
      %v1629 = vld [vmem:[%s5 + $0x10] sm:$0xff]
      %v1630 = vld [vmem:[%s6] sm:$0x1]
      %v1632 = vlaneseq
      %v1633 = vshrl.u32 %v1632, 7
      %v1634 = vsub.s32 0, %v1633
      %v1635 = vrot.slane %v1630, %v1634
      %v1638 = vsel %vm279, %v1619, 0
      %v1641 = vsel %vm279, %v1620, 0
      %v1644 = vsel %vm279, %v1621, 0
      %v1647 = vsel %vm279, %v1622, 0
      %v1650 = vsel %vm279, %v1623, 0
      %v1653 = vsel %vm279, %v1624, 0
      %v1656 = vsel %vm279, %v1625, 0
      %v1659 = vsel %vm279, %v1626, 0
      %1661 = vmatprep.subr.mxu0 0.0
      %1662 = vmatpush1.msra.mxu0 0.0
      %1663 = vmatprep.subr.mxu0 0.0
      %1664 = vmatpush1.msra.mxu0 0.0
      %1665 = vmatprep.subr.mxu0 0.0
      %1666 = vmatpush1.msra.mxu0 0.0
      %1667 = vmatprep.subr.mxu0 0.0
      %1668 = vmatpush1.msra.mxu0 0.0
      %1669 = vmatprep.subr.mxu0 0.0
      %1670 = vmatpush1.msra.mxu0 0.0
      %1671 = vmatprep.subr.mxu0 0.0
      %1672 = vmatpush1.msra.mxu0 0.0
      %1673 = vmatprep.subr.mxu0 0.0
      %1674 = vmatpush1.msra.mxu0 0.0
      %1675 = vmatprep.subr.mxu0 0.0
      %1676 = vmatpush1.msra.mxu0 0.0
      %1677 = vmatprep.subr.mxu0 0.0
      %1678 = vmatpush1.msra.mxu0 0.0
      %1679 = vmatprep.subr.mxu0 0.0
      %1680 = vmatpush1.msra.mxu0 0.0
      %1681 = vmatprep.subr.mxu0 0.0
      %1682 = vmatpush1.msra.mxu0 0.0
      %1683 = vmatprep.subr.mxu0 0.0
      %1684 = vmatpush1.msra.mxu0 0.0
      %1685 = vmatprep.subr.mxu0 0.0
      %1686 = vmatpush1.msra.mxu0 0.0
      %1687 = vmatprep.subr.mxu0 0.0
      %1688 = vmatpush1.msra.mxu0 %v1629
      %1689 = vmatprep.subr.mxu0 0.0
      %1690 = vmatpush1.msra.mxu0 %v1628
      %1691 = vmatprep.subr.mxu0 0.0
      %1692 = vmatpush1.msra.mxu0 %v1627
      %1693 = vmatprep.subr.mxu0 0.0
      %1694 = vmatpush2.msra.mxu0 0.0
      %1695 = vmatprep.subr.mxu0 0.0
      %1696 = vmatpush2.msra.mxu0 0.0
      %1697 = vmatprep.subr.mxu0 0.0
      %1698 = vmatpush2.msra.mxu0 0.0
      %1699 = vmatprep.subr.mxu0 0.0
      %1700 = vmatpush2.msra.mxu0 0.0
      %1701 = vmatprep.subr.mxu0 0.0
      %1702 = vmatpush2.msra.mxu0 0.0
      %1703 = vmatprep.subr.mxu0 0.0
      %1704 = vmatpush2.msra.mxu0 0.0
      %1705 = vmatprep.subr.mxu0 0.0
      %1706 = vmatpush2.msra.mxu0 0.0
      %1707 = vmatprep.subr.mxu0 0.0
      %1708 = vmatpush2.msra.mxu0 0.0
      %1709 = vmatprep.subr.mxu0 0.0
      %1710 = vmatpush2.msra.mxu0 0.0
      %1711 = vmatprep.subr.mxu0 0.0
      %1712 = vmatpush2.msra.mxu0 0.0
      %1713 = vmatprep.subr.mxu0 0.0
      %1714 = vmatpush2.msra.mxu0 0.0
      %1715 = vmatprep.subr.mxu0 0.0
      %1716 = vmatpush2.msra.mxu0 0.0
      %1717 = vmatprep.subr.mxu0 0.0
      %1718 = vmatpush2.msra.mxu0 0.0
      %1719 = vmatprep.subr.mxu0 0.0
      %1720 = vmatpush2.msra.mxu0 0.0
      %1721 = vmatprep.subr.mxu0 0.0
      %1722 = vmatpush2.msra.mxu0 0.0
      %1723 = vmatprep.subr.mxu0 0.0
      %1724 = vmatpush2.msra.mxu0 0.0
      %1725 = vmatprep.mubr.f32.mxu0 0.0
      %1726 = vmatmul.mubr.f32.gmra.mxu0 %v1638
      %v1727 = vpop.f32.mrf.mxu0
      %v1728 = vadd.f32 %v1635, %v1727
      %v1729 = vpop.f32.mrf.mxu0
      %1730 = vmatprep.mubr.f32.mxu0 0.0
      %1731 = vmatmul.mubr.f32.gmra.mxu0 %v1641
      %v1732 = vpop.f32.mrf.mxu0
      %v1733 = vadd.f32 %v1635, %v1732
      %v1734 = vpop.f32.mrf.mxu0
      %1735 = vmatprep.mubr.f32.mxu0 0.0
      %1736 = vmatmul.mubr.f32.gmra.mxu0 %v1644
      %v1737 = vpop.f32.mrf.mxu0
      %v1738 = vadd.f32 %v1635, %v1737
      %v1739 = vpop.f32.mrf.mxu0
      %1740 = vmatprep.mubr.f32.mxu0 0.0
      %1741 = vmatmul.mubr.f32.gmra.mxu0 %v1647
      %v1742 = vpop.f32.mrf.mxu0
      %v1743 = vadd.f32 %v1635, %v1742
      %v1744 = vpop.f32.mrf.mxu0
      %1745 = vmatprep.mubr.f32.mxu0 0.0
      %1746 = vmatmul.mubr.f32.gmra.mxu0 %v1650
      %v1747 = vpop.f32.mrf.mxu0
      %v1748 = vadd.f32 %v1635, %v1747
      %v1749 = vpop.f32.mrf.mxu0
      %1750 = vmatprep.mubr.f32.mxu0 0.0
      %1751 = vmatmul.mubr.f32.gmra.mxu0 %v1653
      %v1752 = vpop.f32.mrf.mxu0
      %v1753 = vadd.f32 %v1635, %v1752
      %v1754 = vpop.f32.mrf.mxu0
      %1755 = vmatprep.mubr.f32.mxu0 0.0
      %1756 = vmatmul.mubr.f32.gmra.mxu0 %v1656
      %v1757 = vpop.f32.mrf.mxu0
      %v1758 = vadd.f32 %v1635, %v1757
      %v1759 = vpop.f32.mrf.mxu0
      %1760 = vmatprep.mubr.f32.mxu0 0.0
      %1761 = vmatmul.mubr.f32.gmra.mxu0 %v1659
      %v1762 = vpop.f32.mrf.mxu0
      %v1763 = vadd.f32 %v1635, %v1762
      %v1764 = vpop.f32.mrf.mxu0
      %1765 = vdwg.mxu0
      %vm1766 = vcmask 64512
      %1767 = vst.msk [vmem:[%s278] sm:$0xff] %vm1766, %v1728
      %1768 = vst.msk [vmem:[%s278 + $0x8] sm:$0xff] %vm1766, %v1733
      %1769 = vst.msk [vmem:[%s278 + $0x10] sm:$0xff] %vm1766, %v1738
      %1770 = vst.msk [vmem:[%s278 + $0x18] sm:$0xff] %vm1766, %v1743
      %1771 = vst.msk [vmem:[%s278 + $0x20] sm:$0xff] %vm1766, %v1748
      %1772 = vst.msk [vmem:[%s278 + $0x28] sm:$0xff] %vm1766, %v1753
      %1773 = vst.msk [vmem:[%s278 + $0x30] sm:$0xff] %vm1766, %v1758
      %1774 = vst.msk [vmem:[%s278 + $0x38] sm:$0xff] %vm1766, %v1763
      %p1775 = scmp.lt.s32.totalorder %s18, 1
      %s1776 = scalar_select %p1775, %s18, 1
      %s1777 = smul.addr %s1776, 8
      %s1778 = smul.addr %s1777, 8
      %s1779 = scalar_lea.vmem %s7, %s1778
      // Predicated region
      $region49: #{forward.2} parent=47 // pred_check
        %p1780 = pneg %p188
      $region50: #{forward.2} parent=47 // pred_check_branch
        %1782 = sbr.rel (%p1780) target = $region52
      $region51: #{forward.2} parent=47 // pred_region
        _
      $region52: #{forward.2} parent=47 // pred_fallthru
        _
    $region48: #{forward.2} parent=5 // pred_fallthru
      _
    %p1783 = scmp.le.s32.totalorder 2, %s13
    // Predicated region
    $region53: #{forward.2} parent=5 // pred_check
      %p1784 = pneg %p1783
    $region54: #{forward.2} parent=5 // pred_check_branch
      %1786 = sbr.rel (%p1784) target = $region56
    $region55: #{forward.2} parent=5 // pred_region
      %s1787 = ssub.s32 %s13, 2
      // Predicated region
      $region57: #{forward.2} parent=55 // pred_check
        %p1788 = pneg %p194
      $region58: #{forward.2} parent=55 // pred_check_branch
        %1790 = sbr.rel (%p1788) target = $region60
      $region59: #{forward.2} parent=55 // pred_region
        %p1791 = scmp.lt.s32.totalorder %s19, 1
        %s1792 = scalar_select %p1791, %s19, 1
        %s1793 = smul.addr %s1792, 8
        %s1794 = smul.addr %s1793, 8
        %s1795 = scalar_lea.vmem %s7, %s1794
      $region60: #{forward.2} parent=55 // pred_fallthru
        _
    $region56: #{forward.2} parent=5 // pred_fallthru
      _
  $region6: #{forward.2} parent=0 // loop_footer
    %s17 = sadd.s32 1, %s13
  $region7: #{forward.2} parent=0 // loop_footer_branch
    %12 = sbr.rel target = $region3
  $region8: #{forward.2} parent=0 // loop_exit
    _

</llo_original>
